<compile_context>
chip_gen: v7x
topology: tpu7x:2x2x1
jax: 0.10.0
libtpu: 0.0.40
codegen_flags: <defaults>
</compile_context>

<pallas_src>
import functools
import math

import jax
import jax.numpy as jnp
from jax.experimental import pallas as pl
from jax.experimental.pallas import tpu as pltpu

# ---------------- configuration (small shapes consistent with the module) -------------
N_NODES = 16          # batch of graph nodes
Z4_DIM = 32           # z4_dim
XC_DIM = 20           # xc_dim
LAMBDA_CENTER = 0.99      # module defaults (adaptive_weights=False)
LAMBDA_STRUCTURE = 0.56
HARD_THRESHOLD = 0.7
SIM_EPS = 1e-8
VAR_EPS = 1e-8


def _round_up(x, m):
    return ((x + m - 1) // m) * m


def _slab_layout(xc_dim, z4_dim):
    """Row/col offsets of the packed center-projection parameter slab."""
    hidden = 2 * z4_dim
    row_w1 = 0
    row_b1 = xc_dim
    row_w2 = _round_up(xc_dim + 1, 8)          # keep w2 sublane-aligned
    row_b2 = row_w2 + hidden
    rows = _round_up(row_b2 + 1, 8)
    cols = _round_up(max(hidden, z4_dim), 128)  # lane-dense slab
    return row_w1, row_b1, row_w2, row_b2, rows, cols


def pack_center_projection(w1, b1, w2, b2):
    """Pack (w1,b1,w2,b2) into one (8,128)-aligned f32 slab -> a single input DMA."""
    xc_dim, hidden = w1.shape
    z4_dim = w2.shape[1]
    row_w1, row_b1, row_w2, row_b2, rows, cols = _slab_layout(xc_dim, z4_dim)
    slab = jnp.zeros((rows, cols), jnp.float32)
    slab = slab.at[row_w1:row_w1 + xc_dim, 0:hidden].set(w1.astype(jnp.float32))
    slab = slab.at[row_b1, 0:hidden].set(b1.reshape(-1).astype(jnp.float32))
    slab = slab.at[row_w2:row_w2 + hidden, 0:z4_dim].set(w2.astype(jnp.float32))
    slab = slab.at[row_b2, 0:z4_dim].set(b2.reshape(-1).astype(jnp.float32))
    return slab


# ---------------- fused Pallas kernel --------------------------------------------------
def _alignment_kernel(z4_ref, xc_ref, slab_ref, out_ref, col_scr, *,
                      n, xc_dim, z4_dim, eps, lam_c, lam_s,
                      use_hard_mining, q_lo, q_hi, q_frac):
    f32 = jnp.float32
    hidden = 2 * z4_dim
    _, row_b1, row_w2, row_b2, _, _ = _slab_layout(xc_dim, z4_dim)

    z4 = z4_ref[...].astype(f32)                      # (n, z4_dim)
    xc = xc_ref[...].astype(f32)                      # (n, xc_dim)

    # --- robust cosine similarity: F.normalize(p=2, dim=1, eps) -> Xn Xn^T -> clamp ----
    def robust_sim(x):
        norm = jnp.sqrt(jnp.sum(x * x, axis=1, keepdims=True))
        inv = pl.reciprocal(jnp.maximum(norm, eps), approx=True)       # EUP slot (free)
        xn = x * inv
        sim = jax.lax.dot_general(xn, xn, (((1,), (1,)), ((), ())),    # Xn @ Xn.T (MXU)
                                  preferred_element_type=f32)
        return jnp.clip(sim, -1.0 + eps, 1.0 - eps)

    diff = jnp.abs(robust_sim(z4) - robust_sim(xc))   # (n, n); (sim_z - sim_x)^2 == diff^2

    # --- structure loss with fused hard-sample mining (rank-by-counting quantile) ------
    if use_hard_mining:
        # torch.quantile(diff, q) = linear interp between order statistics q_lo / q_hi of
        # the flattened n*n values.  Select them by counting, no sort needed:
        #   cnt[a] = #{values <= candidate a};   s_k = min{ cand : cnt >= k+1 }.
        for j in range(n):                             # flatten diff into a (n*n,1) column
            col_scr[j * n:(j + 1) * n, :] = diff[:, j:j + 1]
        cand = col_scr[...]                            # (n*n, 1)
        cnt = jnp.zeros((n * n, 1), f32)
        for p in range(n):                             # count "<=" over all n*n values
            cnt = cnt + jnp.sum((diff[p:p + 1, :] <= cand).astype(f32),
                                axis=1, keepdims=True)
        big = 3.0                                      # > max possible |sim diff| (== 2)
        v_lo = jnp.min(jnp.where(cnt >= float(q_lo + 1), cand, big),
                       axis=0, keepdims=True)          # (1, 1)
        if q_hi != q_lo and q_frac > 0.0:
            v_hi = jnp.min(jnp.where(cnt >= float(q_hi + 1), cand, big),
                           axis=0, keepdims=True)
            thr = v_lo + q_frac * (v_hi - v_lo)
        else:
            thr = v_lo
        weights = 1.0 + (diff >= thr).astype(f32)      # hard mask uses >=, as in torch
    else:
        weights = jnp.ones_like(diff)
    wsq = diff * diff * weights
    structure_loss = jnp.sum(jnp.sum(wsq, axis=1, keepdims=True),
                             axis=0, keepdims=True) * (1.0 / (n * n))   # (1, 1)

    # --- center loss: Linear -> ReLU -> (Dropout = identity in eval) -> Linear ---------
    # TODO(synk): nn.Dropout(0.1) between ReLU and the 2nd Linear is identity in eval.
    # The M=1 matvecs stay on the otherwise-idle MXU; a VPU rewrite needs a feature
    # transpose/relayout and is only secondary polish per the perf review.
    w1 = slab_ref[0:xc_dim, 0:hidden]
    b1 = slab_ref[row_b1:row_b1 + 1, 0:hidden]
    w2 = slab_ref[row_w2:row_w2 + hidden, 0:z4_dim]
    b2 = slab_ref[row_b2:row_b2 + 1, 0:z4_dim]

    center = jnp.mean(xc, axis=0, keepdims=True)                         # (1, xc_dim)
    h = jnp.maximum(jnp.dot(center, w1, preferred_element_type=f32) + b1, 0.0)
    pc = jnp.dot(h, w2, preferred_element_type=f32) + b2                 # (1, z4_dim)

    delta = z4 - pc
    dist = jnp.sqrt(jnp.sum(delta * delta, axis=1, keepdims=True))       # (n, 1)
    center_loss = jnp.sum(dist, axis=0, keepdims=True) * (1.0 / n)       # (1, 1)

    # --- variance loss: -mean(log(var(Z4, dim=0) + 1e-8)); torch.var is unbiased -------
    mu = jnp.mean(z4, axis=0, keepdims=True)
    var = jnp.sum((z4 - mu) ** 2, axis=0, keepdims=True) * (1.0 / (n - 1.0))
    variance_loss = -jnp.mean(jnp.log(var + VAR_EPS), axis=1, keepdims=True)   # (1, 1)

    total = lam_c * center_loss + lam_s * structure_loss + 0.1 * variance_loss
    out_ref[...] = jnp.broadcast_to(total, out_ref.shape)   # single lane-dense store


# ---------------- wrapper ---------------------------------------------------------------
def alignment_loss(center_proj_slab, Z4, x_c, *,
                   lambda_center=LAMBDA_CENTER,
                   lambda_structure=LAMBDA_STRUCTURE,
                   use_hard_mining=True,
                   hard_threshold=HARD_THRESHOLD):
    """Forward pass of AlignmentLoss (adaptive_weights=False path) -> scalar loss."""
    n, z4_dim = Z4.shape
    xc_dim = x_c.shape[1]
    if x_c.shape[0] != n:
        raise ValueError("Z4 and x_c must have the same number of nodes (dim 0)")
    if n < 2:
        raise ValueError("need at least 2 nodes for the unbiased variance term")
    # TODO(synk): adaptive_weights=True clamp path not implemented (module default False).

    m = n * n
    pos = hard_threshold * (m - 1)
    q_lo = int(math.floor(pos))
    q_hi = min(q_lo + 1, m - 1)
    q_frac = float(pos - q_lo)

    kernel = functools.partial(
        _alignment_kernel, n=n, xc_dim=xc_dim, z4_dim=z4_dim, eps=SIM_EPS,
        lam_c=float(lambda_center), lam_s=float(lambda_structure),
        use_hard_mining=use_hard_mining, q_lo=q_lo, q_hi=q_hi, q_frac=q_frac)

    hidden = 2 * z4_dim
    cost = pl.CostEstimate(
        flops=(2 * m * (z4_dim + xc_dim)                      # two Gram matmuls
               + 2 * (xc_dim * hidden + hidden * z4_dim)      # center-projection MLP
               + 3 * m * m                                    # rank-by-counting quantile
               + 32 * m),                                     # misc elementwise
        transcendentals=5 * n + z4_dim,                       # sqrt / reciprocal / log
        bytes_accessed=(Z4.size * Z4.dtype.itemsize
                        + x_c.size * x_c.dtype.itemsize
                        + center_proj_slab.size * 4 + 128 * 4))

    out = pl.pallas_call(
        kernel,
        out_shape=jax.ShapeDtypeStruct((1, 128), jnp.float32),
        scratch_shapes=[pltpu.VMEM((m, 1), jnp.float32)],     # flattened-diff column
        cost_estimate=cost,
    )(Z4, x_c, center_proj_slab)
    return out[0, 0]


# ---------------- parameter init (deterministic, nn.Linear-style uniform) --------------
def init_params(key, xc_dim=XC_DIM, z4_dim=Z4_DIM):
    k1, k2, k3, k4 = jax.random.split(key, 4)

    def u(k, shape, fan_in):
        bound = 1.0 / math.sqrt(fan_in)
        return jax.random.uniform(k, shape, jnp.float32, -bound, bound)

    hidden = z4_dim * 2
    # nn.Linear weights stored transposed (in, out) so the kernel computes x @ W + b.
    w1 = u(k1, (xc_dim, hidden), xc_dim)
    b1 = u(k2, (1, hidden), xc_dim)
    w2 = u(k3, (hidden, z4_dim), hidden)
    b2 = u(k4, (1, z4_dim), hidden)
    return {"w1": w1, "b1": b1, "w2": w2, "b2": b2,
            "slab": pack_center_projection(w1, b1, w2, b2)}


# ---------------- pure-JAX reference (for a correctness check) -------------------------
def _reference_alignment_loss(params, Z4, x_c):
    eps = SIM_EPS

    def sim(x):
        xn = x / jnp.maximum(jnp.linalg.norm(x, axis=1, keepdims=True), eps)
        return jnp.clip(xn @ xn.T, -1.0 + eps, 1.0 - eps)

    sim_z, sim_x = sim(Z4), sim(x_c)
    diff = jnp.abs(sim_z - sim_x)
    thr = jnp.quantile(diff, HARD_THRESHOLD)          # linear interpolation, as torch
    w = 1.0 + (diff >= thr).astype(jnp.float32)
    structure_loss = jnp.mean((sim_z - sim_x) ** 2 * w)

    center = jnp.mean(x_c, axis=0, keepdims=True)
    h = jax.nn.relu(center @ params["w1"] + params["b1"])
    pc = h @ params["w2"] + params["b2"]
    center_loss = jnp.mean(jnp.linalg.norm(Z4 - pc, axis=1))
    variance_loss = -jnp.mean(jnp.log(jnp.var(Z4, axis=0, ddof=1) + VAR_EPS))
    return (LAMBDA_CENTER * center_loss
            + LAMBDA_STRUCTURE * structure_loss
            + 0.1 * variance_loss)


# ---------------- main ------------------------------------------------------------------
if __name__ == "__main__":
    key = jax.random.PRNGKey(0)
    kz, kx, kp = jax.random.split(key, 3)
    Z4 = jax.random.normal(kz, (N_NODES, Z4_DIM), jnp.float32)
    x_c = jax.random.normal(kx, (N_NODES, XC_DIM), jnp.float32)
    params = init_params(kp)

    loss_fn = jax.jit(alignment_loss)
    loss = loss_fn(params["slab"], Z4, x_c)
    jax.block_until_ready(loss)

    ref = _reference_alignment_loss(params, Z4, x_c)
    assert loss.shape == ()
    assert bool(jnp.isfinite(loss))
    assert bool(jnp.allclose(loss, ref, rtol=2e-3, atol=2e-3)), (float(loss), float(ref))
    print("KERNEL_OK")
</pallas_src>

<mosaic_0001>
module attributes {stable_mosaic.version = 11 : i64} {
  func.func @_alignment_kernel(%arg0: memref<16x32xf32, #tpu.memory_space<vmem>>, %arg1: memref<16x20xf32, #tpu.memory_space<vmem>>, %arg2: memref<96x128xf32, #tpu.memory_space<vmem>>, %arg3: memref<1x128xf32, #tpu.memory_space<vmem>>, %arg4: memref<256x1xf32, #tpu.memory_space<vmem>>) attributes {dimension_semantics = [], scalar_prefetch = 0 : i64, scratch_operands = 1 : i64, tpu.core_type = #tpu.core_type<tc>} {
    %c0 = arith.constant 0 : index
    %c0_0 = arith.constant 0 : index
    %0 = vector.load %arg0[%c0, %c0_0] : memref<16x32xf32, #tpu.memory_space<vmem>>, vector<16x32xf32>
    %c0_1 = arith.constant 0 : index
    %c0_2 = arith.constant 0 : index
    %1 = vector.load %arg1[%c0_1, %c0_2] : memref<16x20xf32, #tpu.memory_space<vmem>>, vector<16x20xf32>
    %2 = arith.mulf %0, %0 : vector<16x32xf32>
    %cst = arith.constant dense<0.000000e+00> : vector<16xf32>
    %3 = vector.multi_reduction <add>, %2, %cst [1] : vector<16x32xf32> to vector<16xf32>
    %4 = vector.shape_cast %3 : vector<16xf32> to vector<16x1xf32>
    %5 = math.sqrt %4 : vector<16x1xf32>
    %cst_3 = arith.constant 9.99999993E-9 : f32
    %6 = vector.broadcast %cst_3 : f32 to vector<16x1xf32>
    %7 = arith.maximumf %5, %6 : vector<16x1xf32>
    %8 = tpu.reciprocal %7 {approx = true} : vector<16x1xf32> -> vector<16x1xf32>
    %9 = vector.broadcast %8 : vector<16x1xf32> to vector<16x32xf32>
    %10 = arith.mulf %0, %9 : vector<16x32xf32>
    %cst_4 = arith.constant dense<0.000000e+00> : vector<16x16xf32>
    %11 = tpu.matmul %10, %10, %cst_4 {dimension_numbers = #tpu.dot_dimension_numbers<[1], [1], [0], [0], [0, 0, 1, 0], [], []>} : vector<16x32xf32>, vector<16x32xf32>, vector<16x16xf32> -> vector<16x16xf32>
    %cst_5 = arith.constant -1.000000e+00 : f32
    %cst_6 = arith.constant 1.000000e+00 : f32
    %12 = vector.broadcast %cst_5 : f32 to vector<16x16xf32>
    %13 = arith.maximumf %12, %11 : vector<16x16xf32>
    %14 = vector.broadcast %cst_6 : f32 to vector<16x16xf32>
    %15 = arith.minimumf %14, %13 : vector<16x16xf32>
    %16 = arith.mulf %1, %1 : vector<16x20xf32>
    %cst_7 = arith.constant dense<0.000000e+00> : vector<16xf32>
    %17 = vector.multi_reduction <add>, %16, %cst_7 [1] : vector<16x20xf32> to vector<16xf32>
    %18 = vector.shape_cast %17 : vector<16xf32> to vector<16x1xf32>
    %19 = math.sqrt %18 : vector<16x1xf32>
    %cst_8 = arith.constant 9.99999993E-9 : f32
    %20 = vector.broadcast %cst_8 : f32 to vector<16x1xf32>
    %21 = arith.maximumf %19, %20 : vector<16x1xf32>
    %22 = tpu.reciprocal %21 {approx = true} : vector<16x1xf32> -> vector<16x1xf32>
    %23 = vector.broadcast %22 : vector<16x1xf32> to vector<16x20xf32>
    %24 = arith.mulf %1, %23 : vector<16x20xf32>
    %cst_9 = arith.constant dense<0.000000e+00> : vector<16x16xf32>
    %25 = tpu.matmul %24, %24, %cst_9 {dimension_numbers = #tpu.dot_dimension_numbers<[1], [1], [0], [0], [0, 0, 1, 0], [], []>} : vector<16x20xf32>, vector<16x20xf32>, vector<16x16xf32> -> vector<16x16xf32>
    %cst_10 = arith.constant -1.000000e+00 : f32
    %cst_11 = arith.constant 1.000000e+00 : f32
    %26 = vector.broadcast %cst_10 : f32 to vector<16x16xf32>
    %27 = arith.maximumf %26, %25 : vector<16x16xf32>
    %28 = vector.broadcast %cst_11 : f32 to vector<16x16xf32>
    %29 = arith.minimumf %28, %27 : vector<16x16xf32>
    %30 = arith.subf %15, %29 : vector<16x16xf32>
    %31 = math.absf %30 : vector<16x16xf32>
    %32 = vector.extract_strided_slice %31 {offsets = [0, 0], sizes = [16, 1], strides = [1, 1]} : vector<16x16xf32> to vector<16x1xf32>
    %c0_12 = arith.constant 0 : index
    %c0_13 = arith.constant 0 : index
    %33 = vector.load %arg4[%c0_12, %c0_13] : memref<256x1xf32, #tpu.memory_space<vmem>>, vector<16x1xf32>
    tpu.vector_store %arg4[%c0_12, %c0_13], %32 {strides = array<i32>} : memref<256x1xf32, #tpu.memory_space<vmem>>, vector<16x1xf32>,
    %34 = vector.extract_strided_slice %31 {offsets = [0, 1], sizes = [16, 1], strides = [1, 1]} : vector<16x16xf32> to vector<16x1xf32>
    %c16 = arith.constant 16 : index
    %c0_14 = arith.constant 0 : index
    %35 = vector.load %arg4[%c16, %c0_14] : memref<256x1xf32, #tpu.memory_space<vmem>>, vector<16x1xf32>
    tpu.vector_store %arg4[%c16, %c0_14], %34 {strides = array<i32>} : memref<256x1xf32, #tpu.memory_space<vmem>>, vector<16x1xf32>,
    %36 = vector.extract_strided_slice %31 {offsets = [0, 2], sizes = [16, 1], strides = [1, 1]} : vector<16x16xf32> to vector<16x1xf32>
    %c32 = arith.constant 32 : index
    %c0_15 = arith.constant 0 : index
    %37 = vector.load %arg4[%c32, %c0_15] : memref<256x1xf32, #tpu.memory_space<vmem>>, vector<16x1xf32>
    tpu.vector_store %arg4[%c32, %c0_15], %36 {strides = array<i32>} : memref<256x1xf32, #tpu.memory_space<vmem>>, vector<16x1xf32>,
    %38 = vector.extract_strided_slice %31 {offsets = [0, 3], sizes = [16, 1], strides = [1, 1]} : vector<16x16xf32> to vector<16x1xf32>
    %c48 = arith.constant 48 : index
    %c0_16 = arith.constant 0 : index
    %39 = vector.load %arg4[%c48, %c0_16] : memref<256x1xf32, #tpu.memory_space<vmem>>, vector<16x1xf32>
    tpu.vector_store %arg4[%c48, %c0_16], %38 {strides = array<i32>} : memref<256x1xf32, #tpu.memory_space<vmem>>, vector<16x1xf32>,
    %40 = vector.extract_strided_slice %31 {offsets = [0, 4], sizes = [16, 1], strides = [1, 1]} : vector<16x16xf32> to vector<16x1xf32>
    %c64 = arith.constant 64 : index
    %c0_17 = arith.constant 0 : index
    %41 = vector.load %arg4[%c64, %c0_17] : memref<256x1xf32, #tpu.memory_space<vmem>>, vector<16x1xf32>
    tpu.vector_store %arg4[%c64, %c0_17], %40 {strides = array<i32>} : memref<256x1xf32, #tpu.memory_space<vmem>>, vector<16x1xf32>,
    %42 = vector.extract_strided_slice %31 {offsets = [0, 5], sizes = [16, 1], strides = [1, 1]} : vector<16x16xf32> to vector<16x1xf32>
    %c80 = arith.constant 80 : index
    %c0_18 = arith.constant 0 : index
    %43 = vector.load %arg4[%c80, %c0_18] : memref<256x1xf32, #tpu.memory_space<vmem>>, vector<16x1xf32>
    tpu.vector_store %arg4[%c80, %c0_18], %42 {strides = array<i32>} : memref<256x1xf32, #tpu.memory_space<vmem>>, vector<16x1xf32>,
    %44 = vector.extract_strided_slice %31 {offsets = [0, 6], sizes = [16, 1], strides = [1, 1]} : vector<16x16xf32> to vector<16x1xf32>
    %c96 = arith.constant 96 : index
    %c0_19 = arith.constant 0 : index
    %45 = vector.load %arg4[%c96, %c0_19] : memref<256x1xf32, #tpu.memory_space<vmem>>, vector<16x1xf32>
    tpu.vector_store %arg4[%c96, %c0_19], %44 {strides = array<i32>} : memref<256x1xf32, #tpu.memory_space<vmem>>, vector<16x1xf32>,
    %46 = vector.extract_strided_slice %31 {offsets = [0, 7], sizes = [16, 1], strides = [1, 1]} : vector<16x16xf32> to vector<16x1xf32>
    %c112 = arith.constant 112 : index
    %c0_20 = arith.constant 0 : index
    %47 = vector.load %arg4[%c112, %c0_20] : memref<256x1xf32, #tpu.memory_space<vmem>>, vector<16x1xf32>
    tpu.vector_store %arg4[%c112, %c0_20], %46 {strides = array<i32>} : memref<256x1xf32, #tpu.memory_space<vmem>>, vector<16x1xf32>,
    %48 = vector.extract_strided_slice %31 {offsets = [0, 8], sizes = [16, 1], strides = [1, 1]} : vector<16x16xf32> to vector<16x1xf32>
    %c128 = arith.constant 128 : index
    %c0_21 = arith.constant 0 : index
    %49 = vector.load %arg4[%c128, %c0_21] : memref<256x1xf32, #tpu.memory_space<vmem>>, vector<16x1xf32>
    tpu.vector_store %arg4[%c128, %c0_21], %48 {strides = array<i32>} : memref<256x1xf32, #tpu.memory_space<vmem>>, vector<16x1xf32>,
    %50 = vector.extract_strided_slice %31 {offsets = [0, 9], sizes = [16, 1], strides = [1, 1]} : vector<16x16xf32> to vector<16x1xf32>
    %c144 = arith.constant 144 : index
    %c0_22 = arith.constant 0 : index
    %51 = vector.load %arg4[%c144, %c0_22] : memref<256x1xf32, #tpu.memory_space<vmem>>, vector<16x1xf32>
    tpu.vector_store %arg4[%c144, %c0_22], %50 {strides = array<i32>} : memref<256x1xf32, #tpu.memory_space<vmem>>, vector<16x1xf32>,
    %52 = vector.extract_strided_slice %31 {offsets = [0, 10], sizes = [16, 1], strides = [1, 1]} : vector<16x16xf32> to vector<16x1xf32>
    %c160 = arith.constant 160 : index
    %c0_23 = arith.constant 0 : index
    %53 = vector.load %arg4[%c160, %c0_23] : memref<256x1xf32, #tpu.memory_space<vmem>>, vector<16x1xf32>
    tpu.vector_store %arg4[%c160, %c0_23], %52 {strides = array<i32>} : memref<256x1xf32, #tpu.memory_space<vmem>>, vector<16x1xf32>,
    %54 = vector.extract_strided_slice %31 {offsets = [0, 11], sizes = [16, 1], strides = [1, 1]} : vector<16x16xf32> to vector<16x1xf32>
    %c176 = arith.constant 176 : index
    %c0_24 = arith.constant 0 : index
    %55 = vector.load %arg4[%c176, %c0_24] : memref<256x1xf32, #tpu.memory_space<vmem>>, vector<16x1xf32>
    tpu.vector_store %arg4[%c176, %c0_24], %54 {strides = array<i32>} : memref<256x1xf32, #tpu.memory_space<vmem>>, vector<16x1xf32>,
    %56 = vector.extract_strided_slice %31 {offsets = [0, 12], sizes = [16, 1], strides = [1, 1]} : vector<16x16xf32> to vector<16x1xf32>
    %c192 = arith.constant 192 : index
    %c0_25 = arith.constant 0 : index
    %57 = vector.load %arg4[%c192, %c0_25] : memref<256x1xf32, #tpu.memory_space<vmem>>, vector<16x1xf32>
    tpu.vector_store %arg4[%c192, %c0_25], %56 {strides = array<i32>} : memref<256x1xf32, #tpu.memory_space<vmem>>, vector<16x1xf32>,
    %58 = vector.extract_strided_slice %31 {offsets = [0, 13], sizes = [16, 1], strides = [1, 1]} : vector<16x16xf32> to vector<16x1xf32>
    %c208 = arith.constant 208 : index
    %c0_26 = arith.constant 0 : index
    %59 = vector.load %arg4[%c208, %c0_26] : memref<256x1xf32, #tpu.memory_space<vmem>>, vector<16x1xf32>
    tpu.vector_store %arg4[%c208, %c0_26], %58 {strides = array<i32>} : memref<256x1xf32, #tpu.memory_space<vmem>>, vector<16x1xf32>,
    %60 = vector.extract_strided_slice %31 {offsets = [0, 14], sizes = [16, 1], strides = [1, 1]} : vector<16x16xf32> to vector<16x1xf32>
    %c224 = arith.constant 224 : index
    %c0_27 = arith.constant 0 : index
    %61 = vector.load %arg4[%c224, %c0_27] : memref<256x1xf32, #tpu.memory_space<vmem>>, vector<16x1xf32>
    tpu.vector_store %arg4[%c224, %c0_27], %60 {strides = array<i32>} : memref<256x1xf32, #tpu.memory_space<vmem>>, vector<16x1xf32>,
    %62 = vector.extract_strided_slice %31 {offsets = [0, 15], sizes = [16, 1], strides = [1, 1]} : vector<16x16xf32> to vector<16x1xf32>
    %c240 = arith.constant 240 : index
    %c0_28 = arith.constant 0 : index
    %63 = vector.load %arg4[%c240, %c0_28] : memref<256x1xf32, #tpu.memory_space<vmem>>, vector<16x1xf32>
    tpu.vector_store %arg4[%c240, %c0_28], %62 {strides = array<i32>} : memref<256x1xf32, #tpu.memory_space<vmem>>, vector<16x1xf32>,
    %c0_29 = arith.constant 0 : index
    %c0_30 = arith.constant 0 : index
    %64 = vector.load %arg4[%c0_29, %c0_30] : memref<256x1xf32, #tpu.memory_space<vmem>>, vector<256x1xf32>
    %cst_31 = arith.constant 0.000000e+00 : f32
    %65 = vector.broadcast %cst_31 : f32 to vector<256x1xf32>
    %66 = vector.extract_strided_slice %31 {offsets = [0, 0], sizes = [1, 16], strides = [1, 1]} : vector<16x16xf32> to vector<1x16xf32>
    %67 = vector.broadcast %66 : vector<1x16xf32> to vector<256x16xf32>
    %68 = vector.broadcast %64 : vector<256x1xf32> to vector<256x16xf32>
    %69 = arith.cmpf ole, %67, %68 : vector<256x16xf32>
    %70 = arith.extui %69 : vector<256x16xi1> to vector<256x16xi32>
    %71 = arith.sitofp %70 : vector<256x16xi32> to vector<256x16xf32>
    %cst_32 = arith.constant dense<0.000000e+00> : vector<256xf32>
    %72 = vector.multi_reduction <add>, %71, %cst_32 [1] : vector<256x16xf32> to vector<256xf32>
    %73 = vector.shape_cast %72 : vector<256xf32> to vector<256x1xf32>
    %74 = arith.addf %65, %73 : vector<256x1xf32>
    %75 = vector.extract_strided_slice %31 {offsets = [1, 0], sizes = [1, 16], strides = [1, 1]} : vector<16x16xf32> to vector<1x16xf32>
    %76 = vector.broadcast %75 : vector<1x16xf32> to vector<256x16xf32>
    %77 = vector.broadcast %64 : vector<256x1xf32> to vector<256x16xf32>
    %78 = arith.cmpf ole, %76, %77 : vector<256x16xf32>
    %79 = arith.extui %78 : vector<256x16xi1> to vector<256x16xi32>
    %80 = arith.sitofp %79 : vector<256x16xi32> to vector<256x16xf32>
    %cst_33 = arith.constant dense<0.000000e+00> : vector<256xf32>
    %81 = vector.multi_reduction <add>, %80, %cst_33 [1] : vector<256x16xf32> to vector<256xf32>
    %82 = vector.shape_cast %81 : vector<256xf32> to vector<256x1xf32>
    %83 = arith.addf %74, %82 : vector<256x1xf32>
    %84 = vector.extract_strided_slice %31 {offsets = [2, 0], sizes = [1, 16], strides = [1, 1]} : vector<16x16xf32> to vector<1x16xf32>
    %85 = vector.broadcast %84 : vector<1x16xf32> to vector<256x16xf32>
    %86 = vector.broadcast %64 : vector<256x1xf32> to vector<256x16xf32>
    %87 = arith.cmpf ole, %85, %86 : vector<256x16xf32>
    %88 = arith.extui %87 : vector<256x16xi1> to vector<256x16xi32>
    %89 = arith.sitofp %88 : vector<256x16xi32> to vector<256x16xf32>
    %cst_34 = arith.constant dense<0.000000e+00> : vector<256xf32>
    %90 = vector.multi_reduction <add>, %89, %cst_34 [1] : vector<256x16xf32> to vector<256xf32>
    %91 = vector.shape_cast %90 : vector<256xf32> to vector<256x1xf32>
    %92 = arith.addf %83, %91 : vector<256x1xf32>
    %93 = vector.extract_strided_slice %31 {offsets = [3, 0], sizes = [1, 16], strides = [1, 1]} : vector<16x16xf32> to vector<1x16xf32>
    %94 = vector.broadcast %93 : vector<1x16xf32> to vector<256x16xf32>
    %95 = vector.broadcast %64 : vector<256x1xf32> to vector<256x16xf32>
    %96 = arith.cmpf ole, %94, %95 : vector<256x16xf32>
    %97 = arith.extui %96 : vector<256x16xi1> to vector<256x16xi32>
    %98 = arith.sitofp %97 : vector<256x16xi32> to vector<256x16xf32>
    %cst_35 = arith.constant dense<0.000000e+00> : vector<256xf32>
    %99 = vector.multi_reduction <add>, %98, %cst_35 [1] : vector<256x16xf32> to vector<256xf32>
    %100 = vector.shape_cast %99 : vector<256xf32> to vector<256x1xf32>
    %101 = arith.addf %92, %100 : vector<256x1xf32>
    %102 = vector.extract_strided_slice %31 {offsets = [4, 0], sizes = [1, 16], strides = [1, 1]} : vector<16x16xf32> to vector<1x16xf32>
    %103 = vector.broadcast %102 : vector<1x16xf32> to vector<256x16xf32>
    %104 = vector.broadcast %64 : vector<256x1xf32> to vector<256x16xf32>
    %105 = arith.cmpf ole, %103, %104 : vector<256x16xf32>
    %106 = arith.extui %105 : vector<256x16xi1> to vector<256x16xi32>
    %107 = arith.sitofp %106 : vector<256x16xi32> to vector<256x16xf32>
    %cst_36 = arith.constant dense<0.000000e+00> : vector<256xf32>
    %108 = vector.multi_reduction <add>, %107, %cst_36 [1] : vector<256x16xf32> to vector<256xf32>
    %109 = vector.shape_cast %108 : vector<256xf32> to vector<256x1xf32>
    %110 = arith.addf %101, %109 : vector<256x1xf32>
    %111 = vector.extract_strided_slice %31 {offsets = [5, 0], sizes = [1, 16], strides = [1, 1]} : vector<16x16xf32> to vector<1x16xf32>
    %112 = vector.broadcast %111 : vector<1x16xf32> to vector<256x16xf32>
    %113 = vector.broadcast %64 : vector<256x1xf32> to vector<256x16xf32>
    %114 = arith.cmpf ole, %112, %113 : vector<256x16xf32>
    %115 = arith.extui %114 : vector<256x16xi1> to vector<256x16xi32>
    %116 = arith.sitofp %115 : vector<256x16xi32> to vector<256x16xf32>
    %cst_37 = arith.constant dense<0.000000e+00> : vector<256xf32>
    %117 = vector.multi_reduction <add>, %116, %cst_37 [1] : vector<256x16xf32> to vector<256xf32>
    %118 = vector.shape_cast %117 : vector<256xf32> to vector<256x1xf32>
    %119 = arith.addf %110, %118 : vector<256x1xf32>
    %120 = vector.extract_strided_slice %31 {offsets = [6, 0], sizes = [1, 16], strides = [1, 1]} : vector<16x16xf32> to vector<1x16xf32>
    %121 = vector.broadcast %120 : vector<1x16xf32> to vector<256x16xf32>
    %122 = vector.broadcast %64 : vector<256x1xf32> to vector<256x16xf32>
    %123 = arith.cmpf ole, %121, %122 : vector<256x16xf32>
    %124 = arith.extui %123 : vector<256x16xi1> to vector<256x16xi32>
    %125 = arith.sitofp %124 : vector<256x16xi32> to vector<256x16xf32>
    %cst_38 = arith.constant dense<0.000000e+00> : vector<256xf32>
    %126 = vector.multi_reduction <add>, %125, %cst_38 [1] : vector<256x16xf32> to vector<256xf32>
    %127 = vector.shape_cast %126 : vector<256xf32> to vector<256x1xf32>
    %128 = arith.addf %119, %127 : vector<256x1xf32>
    %129 = vector.extract_strided_slice %31 {offsets = [7, 0], sizes = [1, 16], strides = [1, 1]} : vector<16x16xf32> to vector<1x16xf32>
    %130 = vector.broadcast %129 : vector<1x16xf32> to vector<256x16xf32>
    %131 = vector.broadcast %64 : vector<256x1xf32> to vector<256x16xf32>
    %132 = arith.cmpf ole, %130, %131 : vector<256x16xf32>
    %133 = arith.extui %132 : vector<256x16xi1> to vector<256x16xi32>
    %134 = arith.sitofp %133 : vector<256x16xi32> to vector<256x16xf32>
    %cst_39 = arith.constant dense<0.000000e+00> : vector<256xf32>
    %135 = vector.multi_reduction <add>, %134, %cst_39 [1] : vector<256x16xf32> to vector<256xf32>
    %136 = vector.shape_cast %135 : vector<256xf32> to vector<256x1xf32>
    %137 = arith.addf %128, %136 : vector<256x1xf32>
    %138 = vector.extract_strided_slice %31 {offsets = [8, 0], sizes = [1, 16], strides = [1, 1]} : vector<16x16xf32> to vector<1x16xf32>
    %139 = vector.broadcast %138 : vector<1x16xf32> to vector<256x16xf32>
    %140 = vector.broadcast %64 : vector<256x1xf32> to vector<256x16xf32>
    %141 = arith.cmpf ole, %139, %140 : vector<256x16xf32>
    %142 = arith.extui %141 : vector<256x16xi1> to vector<256x16xi32>
    %143 = arith.sitofp %142 : vector<256x16xi32> to vector<256x16xf32>
    %cst_40 = arith.constant dense<0.000000e+00> : vector<256xf32>
    %144 = vector.multi_reduction <add>, %143, %cst_40 [1] : vector<256x16xf32> to vector<256xf32>
    %145 = vector.shape_cast %144 : vector<256xf32> to vector<256x1xf32>
    %146 = arith.addf %137, %145 : vector<256x1xf32>
    %147 = vector.extract_strided_slice %31 {offsets = [9, 0], sizes = [1, 16], strides = [1, 1]} : vector<16x16xf32> to vector<1x16xf32>
    %148 = vector.broadcast %147 : vector<1x16xf32> to vector<256x16xf32>
    %149 = vector.broadcast %64 : vector<256x1xf32> to vector<256x16xf32>
    %150 = arith.cmpf ole, %148, %149 : vector<256x16xf32>
    %151 = arith.extui %150 : vector<256x16xi1> to vector<256x16xi32>
    %152 = arith.sitofp %151 : vector<256x16xi32> to vector<256x16xf32>
    %cst_41 = arith.constant dense<0.000000e+00> : vector<256xf32>
    %153 = vector.multi_reduction <add>, %152, %cst_41 [1] : vector<256x16xf32> to vector<256xf32>
    %154 = vector.shape_cast %153 : vector<256xf32> to vector<256x1xf32>
    %155 = arith.addf %146, %154 : vector<256x1xf32>
    %156 = vector.extract_strided_slice %31 {offsets = [10, 0], sizes = [1, 16], strides = [1, 1]} : vector<16x16xf32> to vector<1x16xf32>
    %157 = vector.broadcast %156 : vector<1x16xf32> to vector<256x16xf32>
    %158 = vector.broadcast %64 : vector<256x1xf32> to vector<256x16xf32>
    %159 = arith.cmpf ole, %157, %158 : vector<256x16xf32>
    %160 = arith.extui %159 : vector<256x16xi1> to vector<256x16xi32>
    %161 = arith.sitofp %160 : vector<256x16xi32> to vector<256x16xf32>
    %cst_42 = arith.constant dense<0.000000e+00> : vector<256xf32>
    %162 = vector.multi_reduction <add>, %161, %cst_42 [1] : vector<256x16xf32> to vector<256xf32>
    %163 = vector.shape_cast %162 : vector<256xf32> to vector<256x1xf32>
    %164 = arith.addf %155, %163 : vector<256x1xf32>
    %165 = vector.extract_strided_slice %31 {offsets = [11, 0], sizes = [1, 16], strides = [1, 1]} : vector<16x16xf32> to vector<1x16xf32>
    %166 = vector.broadcast %165 : vector<1x16xf32> to vector<256x16xf32>
    %167 = vector.broadcast %64 : vector<256x1xf32> to vector<256x16xf32>
    %168 = arith.cmpf ole, %166, %167 : vector<256x16xf32>
    %169 = arith.extui %168 : vector<256x16xi1> to vector<256x16xi32>
    %170 = arith.sitofp %169 : vector<256x16xi32> to vector<256x16xf32>
    %cst_43 = arith.constant dense<0.000000e+00> : vector<256xf32>
    %171 = vector.multi_reduction <add>, %170, %cst_43 [1] : vector<256x16xf32> to vector<256xf32>
    %172 = vector.shape_cast %171 : vector<256xf32> to vector<256x1xf32>
    %173 = arith.addf %164, %172 : vector<256x1xf32>
    %174 = vector.extract_strided_slice %31 {offsets = [12, 0], sizes = [1, 16], strides = [1, 1]} : vector<16x16xf32> to vector<1x16xf32>
    %175 = vector.broadcast %174 : vector<1x16xf32> to vector<256x16xf32>
    %176 = vector.broadcast %64 : vector<256x1xf32> to vector<256x16xf32>
    %177 = arith.cmpf ole, %175, %176 : vector<256x16xf32>
    %178 = arith.extui %177 : vector<256x16xi1> to vector<256x16xi32>
    %179 = arith.sitofp %178 : vector<256x16xi32> to vector<256x16xf32>
    %cst_44 = arith.constant dense<0.000000e+00> : vector<256xf32>
    %180 = vector.multi_reduction <add>, %179, %cst_44 [1] : vector<256x16xf32> to vector<256xf32>
    %181 = vector.shape_cast %180 : vector<256xf32> to vector<256x1xf32>
    %182 = arith.addf %173, %181 : vector<256x1xf32>
    %183 = vector.extract_strided_slice %31 {offsets = [13, 0], sizes = [1, 16], strides = [1, 1]} : vector<16x16xf32> to vector<1x16xf32>
    %184 = vector.broadcast %183 : vector<1x16xf32> to vector<256x16xf32>
    %185 = vector.broadcast %64 : vector<256x1xf32> to vector<256x16xf32>
    %186 = arith.cmpf ole, %184, %185 : vector<256x16xf32>
    %187 = arith.extui %186 : vector<256x16xi1> to vector<256x16xi32>
    %188 = arith.sitofp %187 : vector<256x16xi32> to vector<256x16xf32>
    %cst_45 = arith.constant dense<0.000000e+00> : vector<256xf32>
    %189 = vector.multi_reduction <add>, %188, %cst_45 [1] : vector<256x16xf32> to vector<256xf32>
    %190 = vector.shape_cast %189 : vector<256xf32> to vector<256x1xf32>
    %191 = arith.addf %182, %190 : vector<256x1xf32>
    %192 = vector.extract_strided_slice %31 {offsets = [14, 0], sizes = [1, 16], strides = [1, 1]} : vector<16x16xf32> to vector<1x16xf32>
    %193 = vector.broadcast %192 : vector<1x16xf32> to vector<256x16xf32>
    %194 = vector.broadcast %64 : vector<256x1xf32> to vector<256x16xf32>
    %195 = arith.cmpf ole, %193, %194 : vector<256x16xf32>
    %196 = arith.extui %195 : vector<256x16xi1> to vector<256x16xi32>
    %197 = arith.sitofp %196 : vector<256x16xi32> to vector<256x16xf32>
    %cst_46 = arith.constant dense<0.000000e+00> : vector<256xf32>
    %198 = vector.multi_reduction <add>, %197, %cst_46 [1] : vector<256x16xf32> to vector<256xf32>
    %199 = vector.shape_cast %198 : vector<256xf32> to vector<256x1xf32>
    %200 = arith.addf %191, %199 : vector<256x1xf32>
    %201 = vector.extract_strided_slice %31 {offsets = [15, 0], sizes = [1, 16], strides = [1, 1]} : vector<16x16xf32> to vector<1x16xf32>
    %202 = vector.broadcast %201 : vector<1x16xf32> to vector<256x16xf32>
    %203 = vector.broadcast %64 : vector<256x1xf32> to vector<256x16xf32>
    %204 = arith.cmpf ole, %202, %203 : vector<256x16xf32>
    %205 = arith.extui %204 : vector<256x16xi1> to vector<256x16xi32>
    %206 = arith.sitofp %205 : vector<256x16xi32> to vector<256x16xf32>
    %cst_47 = arith.constant dense<0.000000e+00> : vector<256xf32>
    %207 = vector.multi_reduction <add>, %206, %cst_47 [1] : vector<256x16xf32> to vector<256xf32>
    %208 = vector.shape_cast %207 : vector<256xf32> to vector<256x1xf32>
    %209 = arith.addf %200, %208 : vector<256x1xf32>
    %cst_48 = arith.constant 1.790000e+02 : f32
    %210 = vector.broadcast %cst_48 : f32 to vector<256x1xf32>
    %211 = arith.cmpf oge, %209, %210 : vector<256x1xf32>
    %cst_49 = arith.constant 3.000000e+00 : f32
    %212 = vector.broadcast %cst_49 : f32 to vector<256x1xf32>
    %213 = arith.select %211, %64, %212 : vector<256x1xi1>, vector<256x1xf32>
    %cst_50 = arith.constant dense<0x7F800000> : vector<1xf32>
    %214 = vector.multi_reduction <minimumf>, %213, %cst_50 [0] : vector<256x1xf32> to vector<1xf32>
    %215 = vector.shape_cast %214 : vector<1xf32> to vector<1x1xf32>
    %cst_51 = arith.constant 1.800000e+02 : f32
    %216 = vector.broadcast %cst_51 : f32 to vector<256x1xf32>
    %217 = arith.cmpf oge, %209, %216 : vector<256x1xf32>
    %cst_52 = arith.constant 3.000000e+00 : f32
    %218 = vector.broadcast %cst_52 : f32 to vector<256x1xf32>
    %219 = arith.select %217, %64, %218 : vector<256x1xi1>, vector<256x1xf32>
    %cst_53 = arith.constant dense<0x7F800000> : vector<1xf32>
    %220 = vector.multi_reduction <minimumf>, %219, %cst_53 [0] : vector<256x1xf32> to vector<1xf32>
    %221 = vector.shape_cast %220 : vector<1xf32> to vector<1x1xf32>
    %222 = arith.subf %221, %215 : vector<1x1xf32>
    %cst_54 = arith.constant 5.000000e-01 : f32
    %223 = vector.broadcast %cst_54 : f32 to vector<1x1xf32>
    %224 = arith.mulf %223, %222 : vector<1x1xf32>
    %225 = arith.addf %215, %224 : vector<1x1xf32>
    %226 = vector.broadcast %225 : vector<1x1xf32> to vector<16x16xf32>
    %227 = arith.cmpf oge, %31, %226 : vector<16x16xf32>
    %228 = arith.extui %227 : vector<16x16xi1> to vector<16x16xi32>
    %229 = arith.sitofp %228 : vector<16x16xi32> to vector<16x16xf32>
    %cst_55 = arith.constant 1.000000e+00 : f32
    %230 = vector.broadcast %cst_55 : f32 to vector<16x16xf32>
    %231 = arith.addf %230, %229 : vector<16x16xf32>
    %232 = arith.mulf %31, %31 : vector<16x16xf32>
    %233 = arith.mulf %232, %231 : vector<16x16xf32>
    %cst_56 = arith.constant dense<0.000000e+00> : vector<16xf32>
    %234 = vector.multi_reduction <add>, %233, %cst_56 [1] : vector<16x16xf32> to vector<16xf32>
    %235 = vector.shape_cast %234 : vector<16xf32> to vector<16x1xf32>
    %cst_57 = arith.constant dense<0.000000e+00> : vector<1xf32>
    %236 = vector.multi_reduction <add>, %235, %cst_57 [0] : vector<16x1xf32> to vector<1xf32>
    %237 = vector.shape_cast %236 : vector<1xf32> to vector<1x1xf32>
    %cst_58 = arith.constant 3.906250e-03 : f32
    %238 = vector.broadcast %cst_58 : f32 to vector<1x1xf32>
    %239 = arith.mulf %237, %238 : vector<1x1xf32>
    %c0_59 = arith.constant 0 : index
    %c0_60 = arith.constant 0 : index
    %240 = vector.load %arg2[%c0_59, %c0_60] : memref<96x128xf32, #tpu.memory_space<vmem>>, vector<20x64xf32>
    %c20 = arith.constant 20 : index
    %c0_61 = arith.constant 0 : index
    %241 = vector.load %arg2[%c20, %c0_61] : memref<96x128xf32, #tpu.memory_space<vmem>>, vector<1x64xf32>
    %c24 = arith.constant 24 : index
    %c0_62 = arith.constant 0 : index
    %242 = vector.load %arg2[%c24, %c0_62] : memref<96x128xf32, #tpu.memory_space<vmem>>, vector<64x32xf32>
    %c88 = arith.constant 88 : index
    %c0_63 = arith.constant 0 : index
    %243 = vector.load %arg2[%c88, %c0_63] : memref<96x128xf32, #tpu.memory_space<vmem>>, vector<1x32xf32>
    %cst_64 = arith.constant dense<0.000000e+00> : vector<20xf32>
    %244 = vector.multi_reduction <add>, %1, %cst_64 [0] : vector<16x20xf32> to vector<20xf32>
    %245 = vector.shape_cast %244 : vector<20xf32> to vector<1x20xf32>
    %cst_65 = arith.constant 1.600000e+01 : f32
    %246 = vector.broadcast %cst_65 : f32 to vector<1x20xf32>
    %247 = arith.divf %245, %246 : vector<1x20xf32>
    %cst_66 = arith.constant dense<0.000000e+00> : vector<1x64xf32>
    %248 = tpu.matmul %247, %240, %cst_66 {dimension_numbers = #tpu.dot_dimension_numbers<[1], [0], [0], [1], [0, 0, 1, 1], [], []>} : vector<1x20xf32>, vector<20x64xf32>, vector<1x64xf32> -> vector<1x64xf32>
    %249 = arith.addf %248, %241 : vector<1x64xf32>
    %cst_67 = arith.constant 0.000000e+00 : f32
    %250 = vector.broadcast %cst_67 : f32 to vector<1x64xf32>
    %251 = arith.maximumf %249, %250 : vector<1x64xf32>
    %cst_68 = arith.constant dense<0.000000e+00> : vector<1x32xf32>
    %252 = tpu.matmul %251, %242, %cst_68 {dimension_numbers = #tpu.dot_dimension_numbers<[1], [0], [0], [1], [0, 0, 1, 1], [], []>} : vector<1x64xf32>, vector<64x32xf32>, vector<1x32xf32> -> vector<1x32xf32>
    %253 = arith.addf %252, %243 : vector<1x32xf32>
    %254 = vector.broadcast %253 : vector<1x32xf32> to vector<16x32xf32>
    %255 = arith.subf %0, %254 : vector<16x32xf32>
    %256 = arith.mulf %255, %255 : vector<16x32xf32>
    %cst_69 = arith.constant dense<0.000000e+00> : vector<16xf32>
    %257 = vector.multi_reduction <add>, %256, %cst_69 [1] : vector<16x32xf32> to vector<16xf32>
    %258 = vector.shape_cast %257 : vector<16xf32> to vector<16x1xf32>
    %259 = math.sqrt %258 : vector<16x1xf32>
    %cst_70 = arith.constant dense<0.000000e+00> : vector<1xf32>
    %260 = vector.multi_reduction <add>, %259, %cst_70 [0] : vector<16x1xf32> to vector<1xf32>
    %261 = vector.shape_cast %260 : vector<1xf32> to vector<1x1xf32>
    %cst_71 = arith.constant 6.250000e-02 : f32
    %262 = vector.broadcast %cst_71 : f32 to vector<1x1xf32>
    %263 = arith.mulf %261, %262 : vector<1x1xf32>
    %cst_72 = arith.constant dense<0.000000e+00> : vector<32xf32>
    %264 = vector.multi_reduction <add>, %0, %cst_72 [0] : vector<16x32xf32> to vector<32xf32>
    %265 = vector.shape_cast %264 : vector<32xf32> to vector<1x32xf32>
    %cst_73 = arith.constant 1.600000e+01 : f32
    %266 = vector.broadcast %cst_73 : f32 to vector<1x32xf32>
    %267 = arith.divf %265, %266 : vector<1x32xf32>
    %268 = vector.broadcast %267 : vector<1x32xf32> to vector<16x32xf32>
    %269 = arith.subf %0, %268 : vector<16x32xf32>
    %270 = arith.mulf %269, %269 : vector<16x32xf32>
    %cst_74 = arith.constant dense<0.000000e+00> : vector<32xf32>
    %271 = vector.multi_reduction <add>, %270, %cst_74 [0] : vector<16x32xf32> to vector<32xf32>
    %272 = vector.shape_cast %271 : vector<32xf32> to vector<1x32xf32>
    %cst_75 = arith.constant 0.0666666701 : f32
    %273 = vector.broadcast %cst_75 : f32 to vector<1x32xf32>
    %274 = arith.mulf %272, %273 : vector<1x32xf32>
    %cst_76 = arith.constant 9.99999993E-9 : f32
    %275 = vector.broadcast %cst_76 : f32 to vector<1x32xf32>
    %276 = arith.addf %274, %275 : vector<1x32xf32>
    %277 = math.log %276 : vector<1x32xf32>
    %cst_77 = arith.constant dense<0.000000e+00> : vector<1xf32>
    %278 = vector.multi_reduction <add>, %277, %cst_77 [1] : vector<1x32xf32> to vector<1xf32>
    %279 = vector.shape_cast %278 : vector<1xf32> to vector<1x1xf32>
    %cst_78 = arith.constant 3.200000e+01 : f32
    %280 = vector.broadcast %cst_78 : f32 to vector<1x1xf32>
    %281 = arith.divf %279, %280 : vector<1x1xf32>
    %cst_79 = arith.constant 0.000000e+00 : f32
    %282 = vector.broadcast %cst_79 : f32 to vector<1x1xf32>
    %283 = arith.subf %282, %281 : vector<1x1xf32>
    %cst_80 = arith.constant 9.900000e-01 : f32
    %284 = vector.broadcast %cst_80 : f32 to vector<1x1xf32>
    %285 = arith.mulf %284, %263 : vector<1x1xf32>
    %cst_81 = arith.constant 5.600000e-01 : f32
    %286 = vector.broadcast %cst_81 : f32 to vector<1x1xf32>
    %287 = arith.mulf %286, %239 : vector<1x1xf32>
    %288 = arith.addf %285, %287 : vector<1x1xf32>
    %cst_82 = arith.constant 1.000000e-01 : f32
    %289 = vector.broadcast %cst_82 : f32 to vector<1x1xf32>
    %290 = arith.mulf %289, %283 : vector<1x1xf32>
    %291 = arith.addf %288, %290 : vector<1x1xf32>
    %292 = vector.shape_cast %291 : vector<1x1xf32> to vector<1x1xf32>
    %293 = vector.broadcast %292 : vector<1x1xf32> to vector<1x128xf32>
    %c0_83 = arith.constant 0 : index
    %c0_84 = arith.constant 0 : index
    %294 = vector.load %arg3[%c0_83, %c0_84] : memref<1x128xf32, #tpu.memory_space<vmem>>, vector<1x128xf32>
    tpu.vector_store %arg3[%c0_83, %c0_84], %293 {strides = array<i32>} : memref<1x128xf32, #tpu.memory_space<vmem>>, vector<1x128xf32>,
    return
  }
}

</mosaic_0001>

<llo_original>
// kernel: alignment_loss.1
$region0: #{alignment_loss.1}
  #allocation0 [shape = 'u32[]', space=smem, size = 0x4, offset = 0x4, fixed_abs, tag = 'smem constant byte address 0x4 - core index']
  #allocation1 [shape = 'u32[144,128]{1,0:T(1,128)}', space=vmem, size = 0x12000, scoped, tag = 'internal scratch']
  #allocation2 [shape = 'f32[256,1]{1,0:T(8,128)}', space=vmem, size = 0x20000, scoped, tag = 'scratch operand']
  %s0 = inlined_call_operand.hbm [shape: f32[16,32], index: 0, kind: input, shape index: {}]
  %s1 = inlined_call_operand.hbm [shape: f32[16,20], index: 1, kind: input, shape index: {}]
  %s2 = inlined_call_operand.hbm [shape: f32[96,128], index: 2, kind: input, shape index: {}]
  %s3 = inlined_call_operand.hbm [shape: f32[1,128], index: 3, kind: output, shape index: {}]
  %s4 = sld [smem:[#allocation0]]
  $region34: #{alignment_loss.1} parent=0
    _
  %s6 = ssub.s32 1, %s4
  %s7 = scalar_select 0, %s6, %s4
  $region1: #{alignment_loss.1} parent=0
    #allocation3 [shape = 'u8[8192]{0}', space=vmem, size = 0x2000, scoped, tag = 'input window, operand 0, single buffered']
    #allocation4 [shape = 's32[1]{0}', space=sflag, size = 0x4, scoped, tag = 'scoped memory for alignment_loss.1']
    #allocation5 [shape = 's32[1]{0}', space=sflag, size = 0x4, scoped, tag = 'scoped memory for alignment_loss.1']
    #allocation6 [shape = 'u8[8192]{0}', space=vmem, size = 0x2000, scoped, tag = 'input window, operand 1, single buffered']
    #allocation7 [shape = 's32[1]{0}', space=sflag, size = 0x4, scoped, tag = 'scoped memory for alignment_loss.1']
    #allocation8 [shape = 'u8[49152]{0}', space=vmem, size = 0xc000, scoped, tag = 'input window, operand 2, single buffered']
    #allocation9 [shape = 'u8[512]{0}', space=vmem, size = 0x400, scoped, tag = 'output window, operand 0, single buffered']
    %8 = vsyncpa [#allocation4], 0
    %9 = vsyncpa [#allocation7], 0
    %10 = vsyncpa [#allocation5], 0
    // Predicated region
    $region2: #{alignment_loss.1} parent=1 // pred_check
      _
    $region3: #{alignment_loss.1} parent=1 // pred_check_branch
      %12 = sbr.rel (0) target = $region5
    $region4: #{alignment_loss.1} parent=1 // pred_region
      %s14 = ssub.s32 256, 256
      %15 = vsyncadd [#allocation4], %s14
      %s16 = sshll.u32 [#allocation3], 4
      %s17 = int_to_ptr.vmem [resolvable:$true] %s16
      %22 = dma.hbm_to_vmem [thread:$0]  %s0, 256, %s17, [#allocation4], 128, 128, 8
    $region5: #{alignment_loss.1} parent=1 // pred_fallthru
      _
    // Predicated region
    $region6: #{alignment_loss.1} parent=1 // pred_check
      _
    $region7: #{alignment_loss.1} parent=1 // pred_check_branch
      %24 = sbr.rel (0) target = $region9
    $region8: #{alignment_loss.1} parent=1 // pred_region
      %s26 = ssub.s32 256, 256
      %27 = vsyncadd [#allocation7], %s26
      %s28 = sshll.u32 [#allocation6], 4
      %s29 = int_to_ptr.vmem [resolvable:$true] %s28
      %34 = dma.hbm_to_vmem [thread:$0]  %s1, 256, %s29, [#allocation7], 128, 128, 8
    $region9: #{alignment_loss.1} parent=1 // pred_fallthru
      _
    // Predicated region
    $region10: #{alignment_loss.1} parent=1 // pred_check
      _
    $region11: #{alignment_loss.1} parent=1 // pred_check_branch
      %36 = sbr.rel (0) target = $region13
    $region12: #{alignment_loss.1} parent=1 // pred_region
      %s38 = ssub.s32 1536, 1536
      %39 = vsyncadd [#allocation7], %s38
      %s40 = sshll.u32 [#allocation8], 4
      %s41 = int_to_ptr.vmem [resolvable:$true] %s40
      %46 = dma.hbm_to_vmem [thread:$0]  %s2, 1536, %s41, [#allocation7], 128, 128, 8
    $region13: #{alignment_loss.1} parent=1 // pred_fallthru
      _
    // Predicated region
    $region14: #{alignment_loss.1} parent=1 // pred_check
      _
    $region15: #{alignment_loss.1} parent=1 // pred_check_branch
      %48 = sbr.rel (0) target = $region17
    $region16: #{alignment_loss.1} parent=1 // pred_region
      %49 = dma.done [#allocation4], 256
    $region17: #{alignment_loss.1} parent=1 // pred_fallthru
      _
    // Predicated region
    $region18: #{alignment_loss.1} parent=1 // pred_check
      _
    $region19: #{alignment_loss.1} parent=1 // pred_check_branch
      %51 = sbr.rel (0) target = $region21
    $region20: #{alignment_loss.1} parent=1 // pred_region
      %52 = dma.done [#allocation7], 256
    $region21: #{alignment_loss.1} parent=1 // pred_fallthru
      _
    // Predicated region
    $region22: #{alignment_loss.1} parent=1 // pred_check
      _
    $region23: #{alignment_loss.1} parent=1 // pred_check_branch
      %54 = sbr.rel (0) target = $region25
    $region24: #{alignment_loss.1} parent=1 // pred_region
      %55 = dma.done [#allocation7], 1536
    $region25: #{alignment_loss.1} parent=1 // pred_fallthru
      _
    %v56 = vld [vmem:[#allocation3] sm:$0xff]
    %v57 = vld [vmem:[#allocation3 + $0x8] sm:$0xff]
    %v58 = vld [vmem:[#allocation6] sm:$0xff]
    %v59 = vld [vmem:[#allocation6 + $0x8] sm:$0xff]
    %v60 = vmul.f32 %v56, %v56
    %v61 = vmul.f32 %v57, %v57
    %vm62 = vcmask 261120
    %v63 = vsel %vm62, %v60, 0.0
    %64 = vadd.xlane.f32.xlu0 %v63
    %v65 = vpop.xlane.xlu0 %64
    %v66 = vsel %vm62, %v61, 0.0
    %67 = vadd.xlane.f32.xlu0 %v66
    %v68 = vpop.xlane.xlu0 %67
    %v69 = vrsqrt.pop %v65
    %v70 = vmul.f32 %v65, %v69
    %vm71 = vcmp.eq.f32.partialorder %v65, inf
    %v72 = vsel %vm71, %v65, %v70
    %vm73 = vcmp.eq.f32.partialorder %v65, 0.0
    %v74 = vand.u32 %v65, 2147483648
    %v75 = vsel %vm73, %v74, %v72
    %v76 = vrsqrt.pop %v68
    %v77 = vmul.f32 %v68, %v76
    %vm78 = vcmp.eq.f32.partialorder %v68, inf
    %v79 = vsel %vm78, %v68, %v77
    %vm80 = vcmp.eq.f32.partialorder %v68, 0.0
    %v81 = vand.u32 %v68, 2147483648
    %v82 = vsel %vm80, %v81, %v79
    %v83 = vmax.f32 %v75, 1e-08
    %v84 = vmax.f32 %v82, 1e-08
    %v85 = vrcp.pop %v83
    %v86 = vrcp.pop %v84
    %v87 = vmul.f32 %v56, %v85
    %v88 = vmul.f32 %v57, %v86
    %v90 = vsel %vm62, %v87, 0
    %v93 = vsel %vm62, %v88, 0
    %95 = vmatprep.subr.mxu0 0.0
    %96 = vmatpush1.xpose.msra.mxu0 %v90
    %97 = vmatprep.subr.mxu0 0.0
    %98 = vmatpush1.xpose.msra.mxu0 %v93
    %99 = vmatprep.subr.mxu0 0.0
    %100 = vmatpush1.xpose.msra.mxu0 0.0
    %101 = vmatprep.subr.mxu0 0.0
    %102 = vmatpush1.xpose.msra.mxu0 0.0
    %103 = vmatprep.subr.mxu0 0.0
    %104 = vmatpush1.xpose.msra.mxu0 0.0
    %105 = vmatprep.subr.mxu0 0.0
    %106 = vmatpush1.xpose.msra.mxu0 0.0
    %107 = vmatprep.subr.mxu0 0.0
    %108 = vmatpush1.xpose.msra.mxu0 0.0
    %109 = vmatprep.subr.mxu0 0.0
    %110 = vmatpush1.xpose.msra.mxu0 0.0
    %111 = vmatprep.subr.mxu0 0.0
    %112 = vmatpush1.xpose.msra.mxu0 0.0
    %113 = vmatprep.subr.mxu0 0.0
    %114 = vmatpush1.xpose.msra.mxu0 0.0
    %115 = vmatprep.subr.mxu0 0.0
    %116 = vmatpush1.xpose.msra.mxu0 0.0
    %117 = vmatprep.subr.mxu0 0.0
    %118 = vmatpush1.xpose.msra.mxu0 0.0
    %119 = vmatprep.subr.mxu0 0.0
    %120 = vmatpush1.xpose.msra.mxu0 0.0
    %121 = vmatprep.subr.mxu0 0.0
    %122 = vmatpush1.xpose.msra.mxu0 0.0
    %123 = vmatprep.subr.mxu0 0.0
    %124 = vmatpush1.xpose.msra.mxu0 0.0
    %125 = vmatprep.subr.mxu0 0.0
    %126 = vmatpush1.xpose.msra.mxu0 0.0
    %127 = vmatprep.subr.mxu0 0.0
    %128 = vmatpush1.xpose.msra.mxu0 0.0
    %129 = vmatprep.subr.mxu0 0.0
    %130 = vmatpush1.xpose.msra.mxu0 0.0
    %131 = vmatprep.subr.mxu0 0.0
    %132 = vmatpush1.xpose.msra.mxu0 0.0
    %133 = vmatprep.subr.mxu0 0.0
    %134 = vmatpush1.xpose.msra.mxu0 0.0
    %135 = vmatprep.subr.mxu0 0.0
    %136 = vmatpush1.xpose.msra.mxu0 0.0
    %137 = vmatprep.subr.mxu0 0.0
    %138 = vmatpush1.xpose.msra.mxu0 0.0
    %139 = vmatprep.subr.mxu0 0.0
    %140 = vmatpush1.xpose.msra.mxu0 0.0
    %141 = vmatprep.subr.mxu0 0.0
    %142 = vmatpush1.xpose.msra.mxu0 0.0
    %143 = vmatprep.subr.mxu0 0.0
    %144 = vmatpush1.xpose.msra.mxu0 0.0
    %145 = vmatprep.subr.mxu0 0.0
    %146 = vmatpush1.xpose.msra.mxu0 0.0
    %147 = vmatprep.subr.mxu0 0.0
    %148 = vmatpush1.xpose.msra.mxu0 0.0
    %149 = vmatprep.subr.mxu0 0.0
    %150 = vmatpush1.xpose.msra.mxu0 0.0
    %151 = vmatprep.subr.mxu0 0.0
    %152 = vmatpush1.xpose.msra.mxu0 0.0
    %153 = vmatprep.subr.mxu0 0.0
    %154 = vmatpush1.xpose.msra.mxu0 0.0
    %155 = vmatprep.subr.mxu0 0.0
    %156 = vmatpush1.xpose.msra.mxu0 0.0
    %157 = vmatprep.subr.mxu0 0.0
    %158 = vmatpush1.xpose.msra.mxu0 0.0
    %159 = vmatprep.mubr.f32.mxu0 0.0
    %160 = vmatmul.mubr.f32.gmra.mrb[0].mxu0 %v90
    %v161 = vpop.f32.mrb[0].mxu0
    %v162 = vadd.f32 0.0, %v161
    %v163 = vpop.f32.mrb[0].mxu0
    %164 = vmatprep.mubr.f32.mxu0 0.0
    %165 = vmatmul.mubr.f32.gmra.mrb[0].mxu0 %v93
    %v166 = vpop.f32.mrb[0].mxu0
    %v167 = vadd.f32 0.0, %v166
    %v168 = vpop.f32.mrb[0].mxu0
    %169 = vdwg.mxu0
    %v170 = vmax.f32 %v162, -1.0
    %v171 = vmax.f32 %v167, -1.0
    %v172 = vmin.f32 %v170, 1.0
    %v173 = vmin.f32 %v171, 1.0
    %v174 = vmul.f32 %v58, %v58
    %v175 = vmul.f32 %v59, %v59
    %vm176 = vcmask 162816
    %v177 = vsel %vm176, %v174, 0.0
    %178 = vadd.xlane.f32.xlu0 %v177
    %v179 = vpop.xlane.xlu0 %178
    %v180 = vsel %vm176, %v175, 0.0
    %181 = vadd.xlane.f32.xlu0 %v180
    %v182 = vpop.xlane.xlu0 %181
    %v183 = vrsqrt.pop %v179
    %v184 = vmul.f32 %v179, %v183
    %vm185 = vcmp.eq.f32.partialorder %v179, inf
    %v186 = vsel %vm185, %v179, %v184
    %vm187 = vcmp.eq.f32.partialorder %v179, 0.0
    %v188 = vand.u32 %v179, 2147483648
    %v189 = vsel %vm187, %v188, %v186
    %v190 = vrsqrt.pop %v182
    %v191 = vmul.f32 %v182, %v190
    %vm192 = vcmp.eq.f32.partialorder %v182, inf
    %v193 = vsel %vm192, %v182, %v191
    %vm194 = vcmp.eq.f32.partialorder %v182, 0.0
    %v195 = vand.u32 %v182, 2147483648
    %v196 = vsel %vm194, %v195, %v193
    %v197 = vmax.f32 %v189, 1e-08
    %v198 = vmax.f32 %v196, 1e-08
    %v199 = vrcp.pop %v197
    %v200 = vrcp.pop %v198
    %v201 = vmul.f32 %v58, %v199
    %v202 = vmul.f32 %v59, %v200
    %v204 = vsel %vm176, %v201, 0
    %v207 = vsel %vm176, %v202, 0
    %209 = vmatprep.subr.mxu0 0.0
    %210 = vmatpush1.xpose.msra.mxu0 %v204
    %211 = vmatprep.subr.mxu0 0.0
    %212 = vmatpush1.xpose.msra.mxu0 %v207
    %213 = vmatprep.subr.mxu0 0.0
    %214 = vmatpush1.xpose.msra.mxu0 0.0
    %215 = vmatprep.subr.mxu0 0.0
    %216 = vmatpush1.xpose.msra.mxu0 0.0
    %217 = vmatprep.subr.mxu0 0.0
    %218 = vmatpush1.xpose.msra.mxu0 0.0
    %219 = vmatprep.subr.mxu0 0.0
    %220 = vmatpush1.xpose.msra.mxu0 0.0
    %221 = vmatprep.subr.mxu0 0.0
    %222 = vmatpush1.xpose.msra.mxu0 0.0
    %223 = vmatprep.subr.mxu0 0.0
    %224 = vmatpush1.xpose.msra.mxu0 0.0
    %225 = vmatprep.subr.mxu0 0.0
    %226 = vmatpush1.xpose.msra.mxu0 0.0
    %227 = vmatprep.subr.mxu0 0.0
    %228 = vmatpush1.xpose.msra.mxu0 0.0
    %229 = vmatprep.subr.mxu0 0.0
    %230 = vmatpush1.xpose.msra.mxu0 0.0
    %231 = vmatprep.subr.mxu0 0.0
    %232 = vmatpush1.xpose.msra.mxu0 0.0
    %233 = vmatprep.subr.mxu0 0.0
    %234 = vmatpush1.xpose.msra.mxu0 0.0
    %235 = vmatprep.subr.mxu0 0.0
    %236 = vmatpush1.xpose.msra.mxu0 0.0
    %237 = vmatprep.subr.mxu0 0.0
    %238 = vmatpush1.xpose.msra.mxu0 0.0
    %239 = vmatprep.subr.mxu0 0.0
    %240 = vmatpush1.xpose.msra.mxu0 0.0
    %241 = vmatprep.subr.mxu0 0.0
    %242 = vmatpush1.xpose.msra.mxu0 0.0
    %243 = vmatprep.subr.mxu0 0.0
    %244 = vmatpush1.xpose.msra.mxu0 0.0
    %245 = vmatprep.subr.mxu0 0.0
    %246 = vmatpush1.xpose.msra.mxu0 0.0
    %247 = vmatprep.subr.mxu0 0.0
    %248 = vmatpush1.xpose.msra.mxu0 0.0
    %249 = vmatprep.subr.mxu0 0.0
    %250 = vmatpush1.xpose.msra.mxu0 0.0
    %251 = vmatprep.subr.mxu0 0.0
    %252 = vmatpush1.xpose.msra.mxu0 0.0
    %253 = vmatprep.subr.mxu0 0.0
    %254 = vmatpush1.xpose.msra.mxu0 0.0
    %255 = vmatprep.subr.mxu0 0.0
    %256 = vmatpush1.xpose.msra.mxu0 0.0
    %257 = vmatprep.subr.mxu0 0.0
    %258 = vmatpush1.xpose.msra.mxu0 0.0
    %259 = vmatprep.subr.mxu0 0.0
    %260 = vmatpush1.xpose.msra.mxu0 0.0
    %261 = vmatprep.subr.mxu0 0.0
    %262 = vmatpush1.xpose.msra.mxu0 0.0
    %263 = vmatprep.subr.mxu0 0.0
    %264 = vmatpush1.xpose.msra.mxu0 0.0
    %265 = vmatprep.subr.mxu0 0.0
    %266 = vmatpush1.xpose.msra.mxu0 0.0
    %267 = vmatprep.subr.mxu0 0.0
    %268 = vmatpush1.xpose.msra.mxu0 0.0
    %269 = vmatprep.subr.mxu0 0.0
    %270 = vmatpush1.xpose.msra.mxu0 0.0
    %271 = vmatprep.subr.mxu0 0.0
    %272 = vmatpush1.xpose.msra.mxu0 0.0
    %273 = vmatprep.mubr.f32.mxu0 0.0
    %274 = vmatmul.mubr.f32.gmra.mrb[0].mxu0 %v204
    %v275 = vpop.f32.mrb[0].mxu0
    %v276 = vadd.f32 0.0, %v275
    %v277 = vpop.f32.mrb[0].mxu0
    %278 = vmatprep.mubr.f32.mxu0 0.0
    %279 = vmatmul.mubr.f32.gmra.mrb[0].mxu0 %v207
    %v280 = vpop.f32.mrb[0].mxu0
    %v281 = vadd.f32 0.0, %v280
    %v282 = vpop.f32.mrb[0].mxu0
    %283 = vdwg.mxu0
    %v284 = vmax.f32 %v276, -1.0
    %v285 = vmax.f32 %v281, -1.0
    %v286 = vmin.f32 %v284, 1.0
    %v287 = vmin.f32 %v285, 1.0
    %v288 = vsub.f32 %v172, %v286
    %v289 = vsub.f32 %v173, %v287
    %v290 = vand.u32 2147483647, %v288
    %v291 = vand.u32 2147483647, %v289
    %vm292 = vcmask 7168
    %293 = vst.msk [vmem:[#allocation2] sm:$0xff] %vm292, %v290
    %294 = vst.msk [vmem:[#allocation2 + $0x8] sm:$0xff] %vm292, %v291
    %297 = vrot.lane.b32.xlu0 %v290, 127
    %v298 = vpop.permute.xlu0 %297
    %299 = vrot.lane.b32.xlu0 %v291, 127
    %v300 = vpop.permute.xlu0 %299
    %303 = vst.msk [vmem:[#allocation2 + $0x10] sm:$0xff] %vm292, %v298
    %304 = vst.msk [vmem:[#allocation2 + $0x18] sm:$0xff] %vm292, %v300
    %305 = vrot.lane.b32.xlu0 %v290, 126
    %v306 = vpop.permute.xlu0 %305
    %307 = vrot.lane.b32.xlu0 %v291, 126
    %v308 = vpop.permute.xlu0 %307
    %311 = vst.msk [vmem:[#allocation2 + $0x20] sm:$0xff] %vm292, %v306
    %312 = vst.msk [vmem:[#allocation2 + $0x28] sm:$0xff] %vm292, %v308
    %313 = vrot.lane.b32.xlu0 %v290, 125
    %v314 = vpop.permute.xlu0 %313
    %315 = vrot.lane.b32.xlu0 %v291, 125
    %v316 = vpop.permute.xlu0 %315
    %319 = vst.msk [vmem:[#allocation2 + $0x30] sm:$0xff] %vm292, %v314
    %320 = vst.msk [vmem:[#allocation2 + $0x38] sm:$0xff] %vm292, %v316
    %321 = vrot.lane.b32.xlu0 %v290, 124
    %v322 = vpop.permute.xlu0 %321
    %323 = vrot.lane.b32.xlu0 %v291, 124
    %v324 = vpop.permute.xlu0 %323
    %327 = vst.msk [vmem:[#allocation2 + $0x40] sm:$0xff] %vm292, %v322
    %328 = vst.msk [vmem:[#allocation2 + $0x48] sm:$0xff] %vm292, %v324
    %329 = vrot.lane.b32.xlu0 %v290, 123
    %v330 = vpop.permute.xlu0 %329
    %331 = vrot.lane.b32.xlu0 %v291, 123
    %v332 = vpop.permute.xlu0 %331
    %335 = vst.msk [vmem:[#allocation2 + $0x50] sm:$0xff] %vm292, %v330
    %336 = vst.msk [vmem:[#allocation2 + $0x58] sm:$0xff] %vm292, %v332
    %337 = vrot.lane.b32.xlu0 %v290, 122
    %v338 = vpop.permute.xlu0 %337
    %339 = vrot.lane.b32.xlu0 %v291, 122
    %v340 = vpop.permute.xlu0 %339
    %343 = vst.msk [vmem:[#allocation2 + $0x60] sm:$0xff] %vm292, %v338
    %344 = vst.msk [vmem:[#allocation2 + $0x68] sm:$0xff] %vm292, %v340
    %345 = vrot.lane.b32.xlu0 %v290, 121
    %v346 = vpop.permute.xlu0 %345
    %347 = vrot.lane.b32.xlu0 %v291, 121
    %v348 = vpop.permute.xlu0 %347
    %351 = vst.msk [vmem:[#allocation2 + $0x70] sm:$0xff] %vm292, %v346
    %352 = vst.msk [vmem:[#allocation2 + $0x78] sm:$0xff] %vm292, %v348
    %353 = vrot.lane.b32.xlu0 %v290, 120
    %v354 = vpop.permute.xlu0 %353
    %355 = vrot.lane.b32.xlu0 %v291, 120
    %v356 = vpop.permute.xlu0 %355
    %359 = vst.msk [vmem:[#allocation2 + $0x80] sm:$0xff] %vm292, %v354
    %360 = vst.msk [vmem:[#allocation2 + $0x88] sm:$0xff] %vm292, %v356
    %361 = vrot.lane.b32.xlu0 %v290, 119
    %v362 = vpop.permute.xlu0 %361
    %363 = vrot.lane.b32.xlu0 %v291, 119
    %v364 = vpop.permute.xlu0 %363
    %367 = vst.msk [vmem:[#allocation2 + $0x90] sm:$0xff] %vm292, %v362
    %368 = vst.msk [vmem:[#allocation2 + $0x98] sm:$0xff] %vm292, %v364
    %369 = vrot.lane.b32.xlu0 %v290, 118
    %v370 = vpop.permute.xlu0 %369
    %371 = vrot.lane.b32.xlu0 %v291, 118
    %v372 = vpop.permute.xlu0 %371
    %375 = vst.msk [vmem:[#allocation2 + $0xa0] sm:$0xff] %vm292, %v370
    %376 = vst.msk [vmem:[#allocation2 + $0xa8] sm:$0xff] %vm292, %v372
    %377 = vrot.lane.b32.xlu0 %v290, 117
    %v378 = vpop.permute.xlu0 %377
    %379 = vrot.lane.b32.xlu0 %v291, 117
    %v380 = vpop.permute.xlu0 %379
    %383 = vst.msk [vmem:[#allocation2 + $0xb0] sm:$0xff] %vm292, %v378
    %384 = vst.msk [vmem:[#allocation2 + $0xb8] sm:$0xff] %vm292, %v380
    %385 = vrot.lane.b32.xlu0 %v290, 116
    %v386 = vpop.permute.xlu0 %385
    %387 = vrot.lane.b32.xlu0 %v291, 116
    %v388 = vpop.permute.xlu0 %387
    %391 = vst.msk [vmem:[#allocation2 + $0xc0] sm:$0xff] %vm292, %v386
    %392 = vst.msk [vmem:[#allocation2 + $0xc8] sm:$0xff] %vm292, %v388
    %393 = vrot.lane.b32.xlu0 %v290, 115
    %v394 = vpop.permute.xlu0 %393
    %395 = vrot.lane.b32.xlu0 %v291, 115
    %v396 = vpop.permute.xlu0 %395
    %399 = vst.msk [vmem:[#allocation2 + $0xd0] sm:$0xff] %vm292, %v394
    %400 = vst.msk [vmem:[#allocation2 + $0xd8] sm:$0xff] %vm292, %v396
    %401 = vrot.lane.b32.xlu0 %v290, 114
    %v402 = vpop.permute.xlu0 %401
    %403 = vrot.lane.b32.xlu0 %v291, 114
    %v404 = vpop.permute.xlu0 %403
    %407 = vst.msk [vmem:[#allocation2 + $0xe0] sm:$0xff] %vm292, %v402
    %408 = vst.msk [vmem:[#allocation2 + $0xe8] sm:$0xff] %vm292, %v404
    %409 = vrot.lane.b32.xlu0 %v290, 113
    %v410 = vpop.permute.xlu0 %409
    %411 = vrot.lane.b32.xlu0 %v291, 113
    %v412 = vpop.permute.xlu0 %411
    %415 = vst.msk [vmem:[#allocation2 + $0xf0] sm:$0xff] %vm292, %v410
    %416 = vst.msk [vmem:[#allocation2 + $0xf8] sm:$0xff] %vm292, %v412
    %v417 = vld [vmem:[#allocation2] sm:$0xff]
    %v418 = vld [vmem:[#allocation2 + $0x8] sm:$0xff]
    %v419 = vld [vmem:[#allocation2 + $0x10] sm:$0xff]
    %v420 = vld [vmem:[#allocation2 + $0x18] sm:$0xff]
    %v421 = vld [vmem:[#allocation2 + $0x20] sm:$0xff]
    %v422 = vld [vmem:[#allocation2 + $0x28] sm:$0xff]
    %v423 = vld [vmem:[#allocation2 + $0x30] sm:$0xff]
    %v424 = vld [vmem:[#allocation2 + $0x38] sm:$0xff]
    %v425 = vld [vmem:[#allocation2 + $0x40] sm:$0xff]
    %v426 = vld [vmem:[#allocation2 + $0x48] sm:$0xff]
    %v427 = vld [vmem:[#allocation2 + $0x50] sm:$0xff]
    %v428 = vld [vmem:[#allocation2 + $0x58] sm:$0xff]
    %v429 = vld [vmem:[#allocation2 + $0x60] sm:$0xff]
    %v430 = vld [vmem:[#allocation2 + $0x68] sm:$0xff]
    %v431 = vld [vmem:[#allocation2 + $0x70] sm:$0xff]
    %v432 = vld [vmem:[#allocation2 + $0x78] sm:$0xff]
    %v433 = vld [vmem:[#allocation2 + $0x80] sm:$0xff]
    %v434 = vld [vmem:[#allocation2 + $0x88] sm:$0xff]
    %v435 = vld [vmem:[#allocation2 + $0x90] sm:$0xff]
    %v436 = vld [vmem:[#allocation2 + $0x98] sm:$0xff]
    %v437 = vld [vmem:[#allocation2 + $0xa0] sm:$0xff]
    %v438 = vld [vmem:[#allocation2 + $0xa8] sm:$0xff]
    %v439 = vld [vmem:[#allocation2 + $0xb0] sm:$0xff]
    %v440 = vld [vmem:[#allocation2 + $0xb8] sm:$0xff]
    %v441 = vld [vmem:[#allocation2 + $0xc0] sm:$0xff]
    %v442 = vld [vmem:[#allocation2 + $0xc8] sm:$0xff]
    %v443 = vld [vmem:[#allocation2 + $0xd0] sm:$0xff]
    %v444 = vld [vmem:[#allocation2 + $0xd8] sm:$0xff]
    %v445 = vld [vmem:[#allocation2 + $0xe0] sm:$0xff]
    %v446 = vld [vmem:[#allocation2 + $0xe8] sm:$0xff]
    %v447 = vld [vmem:[#allocation2 + $0xf0] sm:$0xff]
    %v448 = vld [vmem:[#allocation2 + $0xf8] sm:$0xff]
    %v449 = vlaneseq
    %v450 = vshrl.u32 %v449, 7
    %v451 = vsub.s32 0, %v450
    %v452 = vrot.slane %v290, %v451
    %454 = vset.pattern.permute.xlu0 0
    %455 = vperm.xlu0 %454, %v417
    %v456 = vpop.permute.xlu0 %455
    %459 = vset.pattern.permute.xlu0 0
    %460 = vperm.xlu0 %459, %v418
    %v461 = vpop.permute.xlu0 %460
    %464 = vset.pattern.permute.xlu0 0
    %465 = vperm.xlu0 %464, %v419
    %v466 = vpop.permute.xlu0 %465
    %469 = vset.pattern.permute.xlu0 0
    %470 = vperm.xlu0 %469, %v420
    %v471 = vpop.permute.xlu0 %470
    %474 = vset.pattern.permute.xlu0 0
    %475 = vperm.xlu0 %474, %v421
    %v476 = vpop.permute.xlu0 %475
    %479 = vset.pattern.permute.xlu0 0
    %480 = vperm.xlu0 %479, %v422
    %v481 = vpop.permute.xlu0 %480
    %484 = vset.pattern.permute.xlu0 0
    %485 = vperm.xlu0 %484, %v423
    %v486 = vpop.permute.xlu0 %485
    %489 = vset.pattern.permute.xlu0 0
    %490 = vperm.xlu0 %489, %v424
    %v491 = vpop.permute.xlu0 %490
    %494 = vset.pattern.permute.xlu0 0
    %495 = vperm.xlu0 %494, %v425
    %v496 = vpop.permute.xlu0 %495
    %499 = vset.pattern.permute.xlu0 0
    %500 = vperm.xlu0 %499, %v426
    %v501 = vpop.permute.xlu0 %500
    %504 = vset.pattern.permute.xlu0 0
    %505 = vperm.xlu0 %504, %v427
    %v506 = vpop.permute.xlu0 %505
    %509 = vset.pattern.permute.xlu0 0
    %510 = vperm.xlu0 %509, %v428
    %v511 = vpop.permute.xlu0 %510
    %514 = vset.pattern.permute.xlu0 0
    %515 = vperm.xlu0 %514, %v429
    %v516 = vpop.permute.xlu0 %515
    %519 = vset.pattern.permute.xlu0 0
    %520 = vperm.xlu0 %519, %v430
    %v521 = vpop.permute.xlu0 %520
    %524 = vset.pattern.permute.xlu0 0
    %525 = vperm.xlu0 %524, %v431
    %v526 = vpop.permute.xlu0 %525
    %529 = vset.pattern.permute.xlu0 0
    %530 = vperm.xlu0 %529, %v432
    %v531 = vpop.permute.xlu0 %530
    %534 = vset.pattern.permute.xlu0 0
    %535 = vperm.xlu0 %534, %v433
    %v536 = vpop.permute.xlu0 %535
    %539 = vset.pattern.permute.xlu0 0
    %540 = vperm.xlu0 %539, %v434
    %v541 = vpop.permute.xlu0 %540
    %544 = vset.pattern.permute.xlu0 0
    %545 = vperm.xlu0 %544, %v435
    %v546 = vpop.permute.xlu0 %545
    %549 = vset.pattern.permute.xlu0 0
    %550 = vperm.xlu0 %549, %v436
    %v551 = vpop.permute.xlu0 %550
    %554 = vset.pattern.permute.xlu0 0
    %555 = vperm.xlu0 %554, %v437
    %v556 = vpop.permute.xlu0 %555
    %559 = vset.pattern.permute.xlu0 0
    %560 = vperm.xlu0 %559, %v438
    %v561 = vpop.permute.xlu0 %560
    %564 = vset.pattern.permute.xlu0 0
    %565 = vperm.xlu0 %564, %v439
    %v566 = vpop.permute.xlu0 %565
    %569 = vset.pattern.permute.xlu0 0
    %570 = vperm.xlu0 %569, %v440
    %v571 = vpop.permute.xlu0 %570
    %574 = vset.pattern.permute.xlu0 0
    %575 = vperm.xlu0 %574, %v441
    %v576 = vpop.permute.xlu0 %575
    %579 = vset.pattern.permute.xlu0 0
    %580 = vperm.xlu0 %579, %v442
    %v581 = vpop.permute.xlu0 %580
    %584 = vset.pattern.permute.xlu0 0
    %585 = vperm.xlu0 %584, %v443
    %v586 = vpop.permute.xlu0 %585
    %589 = vset.pattern.permute.xlu0 0
    %590 = vperm.xlu0 %589, %v444
    %v591 = vpop.permute.xlu0 %590
    %594 = vset.pattern.permute.xlu0 0
    %595 = vperm.xlu0 %594, %v445
    %v596 = vpop.permute.xlu0 %595
    %599 = vset.pattern.permute.xlu0 0
    %600 = vperm.xlu0 %599, %v446
    %v601 = vpop.permute.xlu0 %600
    %604 = vset.pattern.permute.xlu0 0
    %605 = vperm.xlu0 %604, %v447
    %v606 = vpop.permute.xlu0 %605
    %609 = vset.pattern.permute.xlu0 0
    %610 = vperm.xlu0 %609, %v448
    %v611 = vpop.permute.xlu0 %610
    %vm613 = vcmp.le.f32.partialorder %v452, %v456
    %vm614 = vcmp.le.f32.partialorder %v452, %v461
    %vm615 = vcmp.le.f32.partialorder %v452, %v466
    %vm616 = vcmp.le.f32.partialorder %v452, %v471
    %vm617 = vcmp.le.f32.partialorder %v452, %v476
    %vm618 = vcmp.le.f32.partialorder %v452, %v481
    %vm619 = vcmp.le.f32.partialorder %v452, %v486
    %vm620 = vcmp.le.f32.partialorder %v452, %v491
    %vm621 = vcmp.le.f32.partialorder %v452, %v496
    %vm622 = vcmp.le.f32.partialorder %v452, %v501
    %vm623 = vcmp.le.f32.partialorder %v452, %v506
    %vm624 = vcmp.le.f32.partialorder %v452, %v511
    %vm625 = vcmp.le.f32.partialorder %v452, %v516
    %vm626 = vcmp.le.f32.partialorder %v452, %v521
    %vm627 = vcmp.le.f32.partialorder %v452, %v526
    %vm628 = vcmp.le.f32.partialorder %v452, %v531
    %vm629 = vcmp.le.f32.partialorder %v452, %v536
    %vm630 = vcmp.le.f32.partialorder %v452, %v541
    %vm631 = vcmp.le.f32.partialorder %v452, %v546
    %vm632 = vcmp.le.f32.partialorder %v452, %v551
    %vm633 = vcmp.le.f32.partialorder %v452, %v556
    %vm634 = vcmp.le.f32.partialorder %v452, %v561
    %vm635 = vcmp.le.f32.partialorder %v452, %v566
    %vm636 = vcmp.le.f32.partialorder %v452, %v571
    %vm637 = vcmp.le.f32.partialorder %v452, %v576
    %vm638 = vcmp.le.f32.partialorder %v452, %v581
    %vm639 = vcmp.le.f32.partialorder %v452, %v586
    %vm640 = vcmp.le.f32.partialorder %v452, %v591
    %vm641 = vcmp.le.f32.partialorder %v452, %v596
    %vm642 = vcmp.le.f32.partialorder %v452, %v601
    %vm643 = vcmp.le.f32.partialorder %v452, %v606
    %vm644 = vcmp.le.f32.partialorder %v452, %v611
    %v645 = vsel %vm613, 1, 0
    %v646 = vsel %vm614, 1, 0
    %v647 = vsel %vm615, 1, 0
    %v648 = vsel %vm616, 1, 0
    %v649 = vsel %vm617, 1, 0
    %v650 = vsel %vm618, 1, 0
    %v651 = vsel %vm619, 1, 0
    %v652 = vsel %vm620, 1, 0
    %v653 = vsel %vm621, 1, 0
    %v654 = vsel %vm622, 1, 0
    %v655 = vsel %vm623, 1, 0
    %v656 = vsel %vm624, 1, 0
    %v657 = vsel %vm625, 1, 0
    %v658 = vsel %vm626, 1, 0
    %v659 = vsel %vm627, 1, 0
    %v660 = vsel %vm628, 1, 0
    %v661 = vsel %vm629, 1, 0
    %v662 = vsel %vm630, 1, 0
    %v663 = vsel %vm631, 1, 0
    %v664 = vsel %vm632, 1, 0
    %v665 = vsel %vm633, 1, 0
    %v666 = vsel %vm634, 1, 0
    %v667 = vsel %vm635, 1, 0
    %v668 = vsel %vm636, 1, 0
    %v669 = vsel %vm637, 1, 0
    %v670 = vsel %vm638, 1, 0
    %v671 = vsel %vm639, 1, 0
    %v672 = vsel %vm640, 1, 0
    %v673 = vsel %vm641, 1, 0
    %v674 = vsel %vm642, 1, 0
    %v675 = vsel %vm643, 1, 0
    %v676 = vsel %vm644, 1, 0
    %v677 = vcvt.s32.f32 %v645
    %v678 = vcvt.s32.f32 %v646
    %v679 = vcvt.s32.f32 %v647
    %v680 = vcvt.s32.f32 %v648
    %v681 = vcvt.s32.f32 %v649
    %v682 = vcvt.s32.f32 %v650
    %v683 = vcvt.s32.f32 %v651
    %v684 = vcvt.s32.f32 %v652
    %v685 = vcvt.s32.f32 %v653
    %v686 = vcvt.s32.f32 %v654
    %v687 = vcvt.s32.f32 %v655
    %v688 = vcvt.s32.f32 %v656
    %v689 = vcvt.s32.f32 %v657
    %v690 = vcvt.s32.f32 %v658
    %v691 = vcvt.s32.f32 %v659
    %v692 = vcvt.s32.f32 %v660
    %v693 = vcvt.s32.f32 %v661
    %v694 = vcvt.s32.f32 %v662
    %v695 = vcvt.s32.f32 %v663
    %v696 = vcvt.s32.f32 %v664
    %v697 = vcvt.s32.f32 %v665
    %v698 = vcvt.s32.f32 %v666
    %v699 = vcvt.s32.f32 %v667
    %v700 = vcvt.s32.f32 %v668
    %v701 = vcvt.s32.f32 %v669
    %v702 = vcvt.s32.f32 %v670
    %v703 = vcvt.s32.f32 %v671
    %v704 = vcvt.s32.f32 %v672
    %v705 = vcvt.s32.f32 %v673
    %v706 = vcvt.s32.f32 %v674
    %v707 = vcvt.s32.f32 %v675
    %v708 = vcvt.s32.f32 %v676
    %vm709 = vcmask 130048
    %v710 = vsel %vm709, %v677, 0.0
    %711 = vadd.xlane.f32.xlu0 %v710
    %v712 = vpop.xlane.xlu0 %711
    %v713 = vsel %vm709, %v678, 0.0
    %714 = vadd.xlane.f32.xlu0 %v713
    %v715 = vpop.xlane.xlu0 %714
    %v716 = vsel %vm709, %v679, 0.0
    %717 = vadd.xlane.f32.xlu0 %v716
    %v718 = vpop.xlane.xlu0 %717
    %v719 = vsel %vm709, %v680, 0.0
    %720 = vadd.xlane.f32.xlu0 %v719
    %v721 = vpop.xlane.xlu0 %720
    %v722 = vsel %vm709, %v681, 0.0
    %723 = vadd.xlane.f32.xlu0 %v722
    %v724 = vpop.xlane.xlu0 %723
    %v725 = vsel %vm709, %v682, 0.0
    %726 = vadd.xlane.f32.xlu0 %v725
    %v727 = vpop.xlane.xlu0 %726
    %v728 = vsel %vm709, %v683, 0.0
    %729 = vadd.xlane.f32.xlu0 %v728
    %v730 = vpop.xlane.xlu0 %729
    %v731 = vsel %vm709, %v684, 0.0
    %732 = vadd.xlane.f32.xlu0 %v731
    %v733 = vpop.xlane.xlu0 %732
    %v734 = vsel %vm709, %v685, 0.0
    %735 = vadd.xlane.f32.xlu0 %v734
    %v736 = vpop.xlane.xlu0 %735
    %v737 = vsel %vm709, %v686, 0.0
    %738 = vadd.xlane.f32.xlu0 %v737
    %v739 = vpop.xlane.xlu0 %738
    %v740 = vsel %vm709, %v687, 0.0
    %741 = vadd.xlane.f32.xlu0 %v740
    %v742 = vpop.xlane.xlu0 %741
    %v743 = vsel %vm709, %v688, 0.0
    %744 = vadd.xlane.f32.xlu0 %v743
    %v745 = vpop.xlane.xlu0 %744
    %v746 = vsel %vm709, %v689, 0.0
    %747 = vadd.xlane.f32.xlu0 %v746
    %v748 = vpop.xlane.xlu0 %747
    %v749 = vsel %vm709, %v690, 0.0
    %750 = vadd.xlane.f32.xlu0 %v749
    %v751 = vpop.xlane.xlu0 %750
    %v752 = vsel %vm709, %v691, 0.0
    %753 = vadd.xlane.f32.xlu0 %v752
    %v754 = vpop.xlane.xlu0 %753
    %v755 = vsel %vm709, %v692, 0.0
    %756 = vadd.xlane.f32.xlu0 %v755
    %v757 = vpop.xlane.xlu0 %756
    %v758 = vsel %vm709, %v693, 0.0
    %759 = vadd.xlane.f32.xlu0 %v758
    %v760 = vpop.xlane.xlu0 %759
    %v761 = vsel %vm709, %v694, 0.0
    %762 = vadd.xlane.f32.xlu0 %v761
    %v763 = vpop.xlane.xlu0 %762
    %v764 = vsel %vm709, %v695, 0.0
    %765 = vadd.xlane.f32.xlu0 %v764
    %v766 = vpop.xlane.xlu0 %765
    %v767 = vsel %vm709, %v696, 0.0
    %768 = vadd.xlane.f32.xlu0 %v767
    %v769 = vpop.xlane.xlu0 %768
    %v770 = vsel %vm709, %v697, 0.0
    %771 = vadd.xlane.f32.xlu0 %v770
    %v772 = vpop.xlane.xlu0 %771
    %v773 = vsel %vm709, %v698, 0.0
    %774 = vadd.xlane.f32.xlu0 %v773
    %v775 = vpop.xlane.xlu0 %774
    %v776 = vsel %vm709, %v699, 0.0
    %777 = vadd.xlane.f32.xlu0 %v776
    %v778 = vpop.xlane.xlu0 %777
    %v779 = vsel %vm709, %v700, 0.0
    %780 = vadd.xlane.f32.xlu0 %v779
    %v781 = vpop.xlane.xlu0 %780
    %v782 = vsel %vm709, %v701, 0.0
    %783 = vadd.xlane.f32.xlu0 %v782
    %v784 = vpop.xlane.xlu0 %783
    %v785 = vsel %vm709, %v702, 0.0
    %786 = vadd.xlane.f32.xlu0 %v785
    %v787 = vpop.xlane.xlu0 %786
    %v788 = vsel %vm709, %v703, 0.0
    %789 = vadd.xlane.f32.xlu0 %v788
    %v790 = vpop.xlane.xlu0 %789
    %v791 = vsel %vm709, %v704, 0.0
    %792 = vadd.xlane.f32.xlu0 %v791
    %v793 = vpop.xlane.xlu0 %792
    %v794 = vsel %vm709, %v705, 0.0
    %795 = vadd.xlane.f32.xlu0 %v794
    %v796 = vpop.xlane.xlu0 %795
    %v797 = vsel %vm709, %v706, 0.0
    %798 = vadd.xlane.f32.xlu0 %v797
    %v799 = vpop.xlane.xlu0 %798
    %v800 = vsel %vm709, %v707, 0.0
    %801 = vadd.xlane.f32.xlu0 %v800
    %v802 = vpop.xlane.xlu0 %801
    %v803 = vsel %vm709, %v708, 0.0
    %804 = vadd.xlane.f32.xlu0 %v803
    %v805 = vpop.xlane.xlu0 %804
    %v806 = vadd.f32 %v712, 0.0
    %v807 = vadd.f32 %v715, 0.0
    %v808 = vadd.f32 %v718, 0.0
    %v809 = vadd.f32 %v721, 0.0
    %v810 = vadd.f32 %v724, 0.0
    %v811 = vadd.f32 %v727, 0.0
    %v812 = vadd.f32 %v730, 0.0
    %v813 = vadd.f32 %v733, 0.0
    %v814 = vadd.f32 %v736, 0.0
    %v815 = vadd.f32 %v739, 0.0
    %v816 = vadd.f32 %v742, 0.0
    %v817 = vadd.f32 %v745, 0.0
    %v818 = vadd.f32 %v748, 0.0
    %v819 = vadd.f32 %v751, 0.0
    %v820 = vadd.f32 %v754, 0.0
    %v821 = vadd.f32 %v757, 0.0
    %v822 = vadd.f32 %v760, 0.0
    %v823 = vadd.f32 %v763, 0.0
    %v824 = vadd.f32 %v766, 0.0
    %v825 = vadd.f32 %v769, 0.0
    %v826 = vadd.f32 %v772, 0.0
    %v827 = vadd.f32 %v775, 0.0
    %v828 = vadd.f32 %v778, 0.0
    %v829 = vadd.f32 %v781, 0.0
    %v830 = vadd.f32 %v784, 0.0
    %v831 = vadd.f32 %v787, 0.0
    %v832 = vadd.f32 %v790, 0.0
    %v833 = vadd.f32 %v793, 0.0
    %v834 = vadd.f32 %v796, 0.0
    %v835 = vadd.f32 %v799, 0.0
    %v836 = vadd.f32 %v802, 0.0
    %v837 = vadd.f32 %v805, 0.0
    %v838 = vlaneseq
    %v839 = vshrl.u32 %v838, 7
    %v840 = vsub.s32 1, %v839
    %v841 = vrot.slane %v290, %v840
    %vm842 = vcmp.le.f32.partialorder %v841, %v456
    %vm843 = vcmp.le.f32.partialorder %v841, %v461
    %vm844 = vcmp.le.f32.partialorder %v841, %v466
    %vm845 = vcmp.le.f32.partialorder %v841, %v471
    %vm846 = vcmp.le.f32.partialorder %v841, %v476
    %vm847 = vcmp.le.f32.partialorder %v841, %v481
    %vm848 = vcmp.le.f32.partialorder %v841, %v486
    %vm849 = vcmp.le.f32.partialorder %v841, %v491
    %vm850 = vcmp.le.f32.partialorder %v841, %v496
    %vm851 = vcmp.le.f32.partialorder %v841, %v501
    %vm852 = vcmp.le.f32.partialorder %v841, %v506
    %vm853 = vcmp.le.f32.partialorder %v841, %v511
    %vm854 = vcmp.le.f32.partialorder %v841, %v516
    %vm855 = vcmp.le.f32.partialorder %v841, %v521
    %vm856 = vcmp.le.f32.partialorder %v841, %v526
    %vm857 = vcmp.le.f32.partialorder %v841, %v531
    %vm858 = vcmp.le.f32.partialorder %v841, %v536
    %vm859 = vcmp.le.f32.partialorder %v841, %v541
    %vm860 = vcmp.le.f32.partialorder %v841, %v546
    %vm861 = vcmp.le.f32.partialorder %v841, %v551
    %vm862 = vcmp.le.f32.partialorder %v841, %v556
    %vm863 = vcmp.le.f32.partialorder %v841, %v561
    %vm864 = vcmp.le.f32.partialorder %v841, %v566
    %vm865 = vcmp.le.f32.partialorder %v841, %v571
    %vm866 = vcmp.le.f32.partialorder %v841, %v576
    %vm867 = vcmp.le.f32.partialorder %v841, %v581
    %vm868 = vcmp.le.f32.partialorder %v841, %v586
    %vm869 = vcmp.le.f32.partialorder %v841, %v591
    %vm870 = vcmp.le.f32.partialorder %v841, %v596
    %vm871 = vcmp.le.f32.partialorder %v841, %v601
    %vm872 = vcmp.le.f32.partialorder %v841, %v606
    %vm873 = vcmp.le.f32.partialorder %v841, %v611
    %v874 = vsel %vm842, 1, 0
    %v875 = vsel %vm843, 1, 0
    %v876 = vsel %vm844, 1, 0
    %v877 = vsel %vm845, 1, 0
    %v878 = vsel %vm846, 1, 0
    %v879 = vsel %vm847, 1, 0
    %v880 = vsel %vm848, 1, 0
    %v881 = vsel %vm849, 1, 0
    %v882 = vsel %vm850, 1, 0
    %v883 = vsel %vm851, 1, 0
    %v884 = vsel %vm852, 1, 0
    %v885 = vsel %vm853, 1, 0
    %v886 = vsel %vm854, 1, 0
    %v887 = vsel %vm855, 1, 0
    %v888 = vsel %vm856, 1, 0
    %v889 = vsel %vm857, 1, 0
    %v890 = vsel %vm858, 1, 0
    %v891 = vsel %vm859, 1, 0
    %v892 = vsel %vm860, 1, 0
    %v893 = vsel %vm861, 1, 0
    %v894 = vsel %vm862, 1, 0
    %v895 = vsel %vm863, 1, 0
    %v896 = vsel %vm864, 1, 0
    %v897 = vsel %vm865, 1, 0
    %v898 = vsel %vm866, 1, 0
    %v899 = vsel %vm867, 1, 0
    %v900 = vsel %vm868, 1, 0
    %v901 = vsel %vm869, 1, 0
    %v902 = vsel %vm870, 1, 0
    %v903 = vsel %vm871, 1, 0
    %v904 = vsel %vm872, 1, 0
    %v905 = vsel %vm873, 1, 0
    %v906 = vcvt.s32.f32 %v874
    %v907 = vcvt.s32.f32 %v875
    %v908 = vcvt.s32.f32 %v876
    %v909 = vcvt.s32.f32 %v877
    %v910 = vcvt.s32.f32 %v878
    %v911 = vcvt.s32.f32 %v879
    %v912 = vcvt.s32.f32 %v880
    %v913 = vcvt.s32.f32 %v881
    %v914 = vcvt.s32.f32 %v882
    %v915 = vcvt.s32.f32 %v883
    %v916 = vcvt.s32.f32 %v884
    %v917 = vcvt.s32.f32 %v885
    %v918 = vcvt.s32.f32 %v886
    %v919 = vcvt.s32.f32 %v887
    %v920 = vcvt.s32.f32 %v888
    %v921 = vcvt.s32.f32 %v889
    %v922 = vcvt.s32.f32 %v890
    %v923 = vcvt.s32.f32 %v891
    %v924 = vcvt.s32.f32 %v892
    %v925 = vcvt.s32.f32 %v893
    %v926 = vcvt.s32.f32 %v894
    %v927 = vcvt.s32.f32 %v895
    %v928 = vcvt.s32.f32 %v896
    %v929 = vcvt.s32.f32 %v897
    %v930 = vcvt.s32.f32 %v898
    %v931 = vcvt.s32.f32 %v899
    %v932 = vcvt.s32.f32 %v900
    %v933 = vcvt.s32.f32 %v901
    %v934 = vcvt.s32.f32 %v902
    %v935 = vcvt.s32.f32 %v903
    %v936 = vcvt.s32.f32 %v904
    %v937 = vcvt.s32.f32 %v905
    %v938 = vsel %vm709, %v906, 0.0
    %939 = vadd.xlane.f32.xlu0 %v938
    %v940 = vpop.xlane.xlu0 %939
    %v941 = vsel %vm709, %v907, 0.0
    %942 = vadd.xlane.f32.xlu0 %v941
    %v943 = vpop.xlane.xlu0 %942
    %v944 = vsel %vm709, %v908, 0.0
    %945 = vadd.xlane.f32.xlu0 %v944
    %v946 = vpop.xlane.xlu0 %945
    %v947 = vsel %vm709, %v909, 0.0
    %948 = vadd.xlane.f32.xlu0 %v947
    %v949 = vpop.xlane.xlu0 %948
    %v950 = vsel %vm709, %v910, 0.0
    %951 = vadd.xlane.f32.xlu0 %v950
    %v952 = vpop.xlane.xlu0 %951
    %v953 = vsel %vm709, %v911, 0.0
    %954 = vadd.xlane.f32.xlu0 %v953
    %v955 = vpop.xlane.xlu0 %954
    %v956 = vsel %vm709, %v912, 0.0
    %957 = vadd.xlane.f32.xlu0 %v956
    %v958 = vpop.xlane.xlu0 %957
    %v959 = vsel %vm709, %v913, 0.0
    %960 = vadd.xlane.f32.xlu0 %v959
    %v961 = vpop.xlane.xlu0 %960
    %v962 = vsel %vm709, %v914, 0.0
    %963 = vadd.xlane.f32.xlu0 %v962
    %v964 = vpop.xlane.xlu0 %963
    %v965 = vsel %vm709, %v915, 0.0
    %966 = vadd.xlane.f32.xlu0 %v965
    %v967 = vpop.xlane.xlu0 %966
    %v968 = vsel %vm709, %v916, 0.0
    %969 = vadd.xlane.f32.xlu0 %v968
    %v970 = vpop.xlane.xlu0 %969
    %v971 = vsel %vm709, %v917, 0.0
    %972 = vadd.xlane.f32.xlu0 %v971
    %v973 = vpop.xlane.xlu0 %972
    %v974 = vsel %vm709, %v918, 0.0
    %975 = vadd.xlane.f32.xlu0 %v974
    %v976 = vpop.xlane.xlu0 %975
    %v977 = vsel %vm709, %v919, 0.0
    %978 = vadd.xlane.f32.xlu0 %v977
    %v979 = vpop.xlane.xlu0 %978
    %v980 = vsel %vm709, %v920, 0.0
    %981 = vadd.xlane.f32.xlu0 %v980
    %v982 = vpop.xlane.xlu0 %981
    %v983 = vsel %vm709, %v921, 0.0
    %984 = vadd.xlane.f32.xlu0 %v983
    %v985 = vpop.xlane.xlu0 %984
    %v986 = vsel %vm709, %v922, 0.0
    %987 = vadd.xlane.f32.xlu0 %v986
    %v988 = vpop.xlane.xlu0 %987
    %v989 = vsel %vm709, %v923, 0.0
    %990 = vadd.xlane.f32.xlu0 %v989
    %v991 = vpop.xlane.xlu0 %990
    %v992 = vsel %vm709, %v924, 0.0
    %993 = vadd.xlane.f32.xlu0 %v992
    %v994 = vpop.xlane.xlu0 %993
    %v995 = vsel %vm709, %v925, 0.0
    %996 = vadd.xlane.f32.xlu0 %v995
    %v997 = vpop.xlane.xlu0 %996
    %v998 = vsel %vm709, %v926, 0.0
    %999 = vadd.xlane.f32.xlu0 %v998
    %v1000 = vpop.xlane.xlu0 %999
    %v1001 = vsel %vm709, %v927, 0.0
    %1002 = vadd.xlane.f32.xlu0 %v1001
    %v1003 = vpop.xlane.xlu0 %1002
    %v1004 = vsel %vm709, %v928, 0.0
    %1005 = vadd.xlane.f32.xlu0 %v1004
    %v1006 = vpop.xlane.xlu0 %1005
    %v1007 = vsel %vm709, %v929, 0.0
    %1008 = vadd.xlane.f32.xlu0 %v1007
    %v1009 = vpop.xlane.xlu0 %1008
    %v1010 = vsel %vm709, %v930, 0.0
    %1011 = vadd.xlane.f32.xlu0 %v1010
    %v1012 = vpop.xlane.xlu0 %1011
    %v1013 = vsel %vm709, %v931, 0.0
    %1014 = vadd.xlane.f32.xlu0 %v1013
    %v1015 = vpop.xlane.xlu0 %1014
    %v1016 = vsel %vm709, %v932, 0.0
    %1017 = vadd.xlane.f32.xlu0 %v1016
    %v1018 = vpop.xlane.xlu0 %1017
    %v1019 = vsel %vm709, %v933, 0.0
    %1020 = vadd.xlane.f32.xlu0 %v1019
    %v1021 = vpop.xlane.xlu0 %1020
    %v1022 = vsel %vm709, %v934, 0.0
    %1023 = vadd.xlane.f32.xlu0 %v1022
    %v1024 = vpop.xlane.xlu0 %1023
    %v1025 = vsel %vm709, %v935, 0.0
    %1026 = vadd.xlane.f32.xlu0 %v1025
    %v1027 = vpop.xlane.xlu0 %1026
    %v1028 = vsel %vm709, %v936, 0.0
    %1029 = vadd.xlane.f32.xlu0 %v1028
    %v1030 = vpop.xlane.xlu0 %1029
    %v1031 = vsel %vm709, %v937, 0.0
    %1032 = vadd.xlane.f32.xlu0 %v1031
    %v1033 = vpop.xlane.xlu0 %1032
    %v1034 = vadd.f32 %v806, %v940
    %v1035 = vadd.f32 %v807, %v943
    %v1036 = vadd.f32 %v808, %v946
    %v1037 = vadd.f32 %v809, %v949
    %v1038 = vadd.f32 %v810, %v952
    %v1039 = vadd.f32 %v811, %v955
    %v1040 = vadd.f32 %v812, %v958
    %v1041 = vadd.f32 %v813, %v961
    %v1042 = vadd.f32 %v814, %v964
    %v1043 = vadd.f32 %v815, %v967
    %v1044 = vadd.f32 %v816, %v970
    %v1045 = vadd.f32 %v817, %v973
    %v1046 = vadd.f32 %v818, %v976
    %v1047 = vadd.f32 %v819, %v979
    %v1048 = vadd.f32 %v820, %v982
    %v1049 = vadd.f32 %v821, %v985
    %v1050 = vadd.f32 %v822, %v988
    %v1051 = vadd.f32 %v823, %v991
    %v1052 = vadd.f32 %v824, %v994
    %v1053 = vadd.f32 %v825, %v997
    %v1054 = vadd.f32 %v826, %v1000
    %v1055 = vadd.f32 %v827, %v1003
    %v1056 = vadd.f32 %v828, %v1006
    %v1057 = vadd.f32 %v829, %v1009
    %v1058 = vadd.f32 %v830, %v1012
    %v1059 = vadd.f32 %v831, %v1015
    %v1060 = vadd.f32 %v832, %v1018
    %v1061 = vadd.f32 %v833, %v1021
    %v1062 = vadd.f32 %v834, %v1024
    %v1063 = vadd.f32 %v835, %v1027
    %v1064 = vadd.f32 %v836, %v1030
    %v1065 = vadd.f32 %v837, %v1033
    %v1066 = vlaneseq
    %v1067 = vshrl.u32 %v1066, 7
    %v1068 = vsub.s32 2, %v1067
    %v1069 = vrot.slane %v290, %v1068
    %vm1070 = vcmp.le.f32.partialorder %v1069, %v456
    %vm1071 = vcmp.le.f32.partialorder %v1069, %v461
    %vm1072 = vcmp.le.f32.partialorder %v1069, %v466
    %vm1073 = vcmp.le.f32.partialorder %v1069, %v471
    %vm1074 = vcmp.le.f32.partialorder %v1069, %v476
    %vm1075 = vcmp.le.f32.partialorder %v1069, %v481
    %vm1076 = vcmp.le.f32.partialorder %v1069, %v486
    %vm1077 = vcmp.le.f32.partialorder %v1069, %v491
    %vm1078 = vcmp.le.f32.partialorder %v1069, %v496
    %vm1079 = vcmp.le.f32.partialorder %v1069, %v501
    %vm1080 = vcmp.le.f32.partialorder %v1069, %v506
    %vm1081 = vcmp.le.f32.partialorder %v1069, %v511
    %vm1082 = vcmp.le.f32.partialorder %v1069, %v516
    %vm1083 = vcmp.le.f32.partialorder %v1069, %v521
    %vm1084 = vcmp.le.f32.partialorder %v1069, %v526
    %vm1085 = vcmp.le.f32.partialorder %v1069, %v531
    %vm1086 = vcmp.le.f32.partialorder %v1069, %v536
    %vm1087 = vcmp.le.f32.partialorder %v1069, %v541
    %vm1088 = vcmp.le.f32.partialorder %v1069, %v546
    %vm1089 = vcmp.le.f32.partialorder %v1069, %v551
    %vm1090 = vcmp.le.f32.partialorder %v1069, %v556
    %vm1091 = vcmp.le.f32.partialorder %v1069, %v561
    %vm1092 = vcmp.le.f32.partialorder %v1069, %v566
    %vm1093 = vcmp.le.f32.partialorder %v1069, %v571
    %vm1094 = vcmp.le.f32.partialorder %v1069, %v576
    %vm1095 = vcmp.le.f32.partialorder %v1069, %v581
    %vm1096 = vcmp.le.f32.partialorder %v1069, %v586
    %vm1097 = vcmp.le.f32.partialorder %v1069, %v591
    %vm1098 = vcmp.le.f32.partialorder %v1069, %v596
    %vm1099 = vcmp.le.f32.partialorder %v1069, %v601
    %vm1100 = vcmp.le.f32.partialorder %v1069, %v606
    %vm1101 = vcmp.le.f32.partialorder %v1069, %v611
    %v1102 = vsel %vm1070, 1, 0
    %v1103 = vsel %vm1071, 1, 0
    %v1104 = vsel %vm1072, 1, 0
    %v1105 = vsel %vm1073, 1, 0
    %v1106 = vsel %vm1074, 1, 0
    %v1107 = vsel %vm1075, 1, 0
    %v1108 = vsel %vm1076, 1, 0
    %v1109 = vsel %vm1077, 1, 0
    %v1110 = vsel %vm1078, 1, 0
    %v1111 = vsel %vm1079, 1, 0
    %v1112 = vsel %vm1080, 1, 0
    %v1113 = vsel %vm1081, 1, 0
    %v1114 = vsel %vm1082, 1, 0
    %v1115 = vsel %vm1083, 1, 0
    %v1116 = vsel %vm1084, 1, 0
    %v1117 = vsel %vm1085, 1, 0
    %v1118 = vsel %vm1086, 1, 0
    %v1119 = vsel %vm1087, 1, 0
    %v1120 = vsel %vm1088, 1, 0
    %v1121 = vsel %vm1089, 1, 0
    %v1122 = vsel %vm1090, 1, 0
    %v1123 = vsel %vm1091, 1, 0
    %v1124 = vsel %vm1092, 1, 0
    %v1125 = vsel %vm1093, 1, 0
    %v1126 = vsel %vm1094, 1, 0
    %v1127 = vsel %vm1095, 1, 0
    %v1128 = vsel %vm1096, 1, 0
    %v1129 = vsel %vm1097, 1, 0
    %v1130 = vsel %vm1098, 1, 0
    %v1131 = vsel %vm1099, 1, 0
    %v1132 = vsel %vm1100, 1, 0
    %v1133 = vsel %vm1101, 1, 0
    %v1134 = vcvt.s32.f32 %v1102
    %v1135 = vcvt.s32.f32 %v1103
    %v1136 = vcvt.s32.f32 %v1104
    %v1137 = vcvt.s32.f32 %v1105
    %v1138 = vcvt.s32.f32 %v1106
    %v1139 = vcvt.s32.f32 %v1107
    %v1140 = vcvt.s32.f32 %v1108
    %v1141 = vcvt.s32.f32 %v1109
    %v1142 = vcvt.s32.f32 %v1110
    %v1143 = vcvt.s32.f32 %v1111
    %v1144 = vcvt.s32.f32 %v1112
    %v1145 = vcvt.s32.f32 %v1113
    %v1146 = vcvt.s32.f32 %v1114
    %v1147 = vcvt.s32.f32 %v1115
    %v1148 = vcvt.s32.f32 %v1116
    %v1149 = vcvt.s32.f32 %v1117
    %v1150 = vcvt.s32.f32 %v1118
    %v1151 = vcvt.s32.f32 %v1119
    %v1152 = vcvt.s32.f32 %v1120
    %v1153 = vcvt.s32.f32 %v1121
    %v1154 = vcvt.s32.f32 %v1122
    %v1155 = vcvt.s32.f32 %v1123
    %v1156 = vcvt.s32.f32 %v1124
    %v1157 = vcvt.s32.f32 %v1125
    %v1158 = vcvt.s32.f32 %v1126
    %v1159 = vcvt.s32.f32 %v1127
    %v1160 = vcvt.s32.f32 %v1128
    %v1161 = vcvt.s32.f32 %v1129
    %v1162 = vcvt.s32.f32 %v1130
    %v1163 = vcvt.s32.f32 %v1131
    %v1164 = vcvt.s32.f32 %v1132
    %v1165 = vcvt.s32.f32 %v1133
    %v1166 = vsel %vm709, %v1134, 0.0
    %1167 = vadd.xlane.f32.xlu0 %v1166
    %v1168 = vpop.xlane.xlu0 %1167
    %v1169 = vsel %vm709, %v1135, 0.0
    %1170 = vadd.xlane.f32.xlu0 %v1169
    %v1171 = vpop.xlane.xlu0 %1170
    %v1172 = vsel %vm709, %v1136, 0.0
    %1173 = vadd.xlane.f32.xlu0 %v1172
    %v1174 = vpop.xlane.xlu0 %1173
    %v1175 = vsel %vm709, %v1137, 0.0
    %1176 = vadd.xlane.f32.xlu0 %v1175
    %v1177 = vpop.xlane.xlu0 %1176
    %v1178 = vsel %vm709, %v1138, 0.0
    %1179 = vadd.xlane.f32.xlu0 %v1178
    %v1180 = vpop.xlane.xlu0 %1179
    %v1181 = vsel %vm709, %v1139, 0.0
    %1182 = vadd.xlane.f32.xlu0 %v1181
    %v1183 = vpop.xlane.xlu0 %1182
    %v1184 = vsel %vm709, %v1140, 0.0
    %1185 = vadd.xlane.f32.xlu0 %v1184
    %v1186 = vpop.xlane.xlu0 %1185
    %v1187 = vsel %vm709, %v1141, 0.0
    %1188 = vadd.xlane.f32.xlu0 %v1187
    %v1189 = vpop.xlane.xlu0 %1188
    %v1190 = vsel %vm709, %v1142, 0.0
    %1191 = vadd.xlane.f32.xlu0 %v1190
    %v1192 = vpop.xlane.xlu0 %1191
    %v1193 = vsel %vm709, %v1143, 0.0
    %1194 = vadd.xlane.f32.xlu0 %v1193
    %v1195 = vpop.xlane.xlu0 %1194
    %v1196 = vsel %vm709, %v1144, 0.0
    %1197 = vadd.xlane.f32.xlu0 %v1196
    %v1198 = vpop.xlane.xlu0 %1197
    %v1199 = vsel %vm709, %v1145, 0.0
    %1200 = vadd.xlane.f32.xlu0 %v1199
    %v1201 = vpop.xlane.xlu0 %1200
    %v1202 = vsel %vm709, %v1146, 0.0
    %1203 = vadd.xlane.f32.xlu0 %v1202
    %v1204 = vpop.xlane.xlu0 %1203
    %v1205 = vsel %vm709, %v1147, 0.0
    %1206 = vadd.xlane.f32.xlu0 %v1205
    %v1207 = vpop.xlane.xlu0 %1206
    %v1208 = vsel %vm709, %v1148, 0.0
    %1209 = vadd.xlane.f32.xlu0 %v1208
    %v1210 = vpop.xlane.xlu0 %1209
    %v1211 = vsel %vm709, %v1149, 0.0
    %1212 = vadd.xlane.f32.xlu0 %v1211
    %v1213 = vpop.xlane.xlu0 %1212
    %v1214 = vsel %vm709, %v1150, 0.0
    %1215 = vadd.xlane.f32.xlu0 %v1214
    %v1216 = vpop.xlane.xlu0 %1215
    %v1217 = vsel %vm709, %v1151, 0.0
    %1218 = vadd.xlane.f32.xlu0 %v1217
    %v1219 = vpop.xlane.xlu0 %1218
    %v1220 = vsel %vm709, %v1152, 0.0
    %1221 = vadd.xlane.f32.xlu0 %v1220
    %v1222 = vpop.xlane.xlu0 %1221
    %v1223 = vsel %vm709, %v1153, 0.0
    %1224 = vadd.xlane.f32.xlu0 %v1223
    %v1225 = vpop.xlane.xlu0 %1224
    %v1226 = vsel %vm709, %v1154, 0.0
    %1227 = vadd.xlane.f32.xlu0 %v1226
    %v1228 = vpop.xlane.xlu0 %1227
    %v1229 = vsel %vm709, %v1155, 0.0
    %1230 = vadd.xlane.f32.xlu0 %v1229
    %v1231 = vpop.xlane.xlu0 %1230
    %v1232 = vsel %vm709, %v1156, 0.0
    %1233 = vadd.xlane.f32.xlu0 %v1232
    %v1234 = vpop.xlane.xlu0 %1233
    %v1235 = vsel %vm709, %v1157, 0.0
    %1236 = vadd.xlane.f32.xlu0 %v1235
    %v1237 = vpop.xlane.xlu0 %1236
    %v1238 = vsel %vm709, %v1158, 0.0
    %1239 = vadd.xlane.f32.xlu0 %v1238
    %v1240 = vpop.xlane.xlu0 %1239
    %v1241 = vsel %vm709, %v1159, 0.0
    %1242 = vadd.xlane.f32.xlu0 %v1241
    %v1243 = vpop.xlane.xlu0 %1242
    %v1244 = vsel %vm709, %v1160, 0.0
    %1245 = vadd.xlane.f32.xlu0 %v1244
    %v1246 = vpop.xlane.xlu0 %1245
    %v1247 = vsel %vm709, %v1161, 0.0
    %1248 = vadd.xlane.f32.xlu0 %v1247
    %v1249 = vpop.xlane.xlu0 %1248
    %v1250 = vsel %vm709, %v1162, 0.0
    %1251 = vadd.xlane.f32.xlu0 %v1250
    %v1252 = vpop.xlane.xlu0 %1251
    %v1253 = vsel %vm709, %v1163, 0.0
    %1254 = vadd.xlane.f32.xlu0 %v1253
    %v1255 = vpop.xlane.xlu0 %1254
    %v1256 = vsel %vm709, %v1164, 0.0
    %1257 = vadd.xlane.f32.xlu0 %v1256
    %v1258 = vpop.xlane.xlu0 %1257
    %v1259 = vsel %vm709, %v1165, 0.0
    %1260 = vadd.xlane.f32.xlu0 %v1259
    %v1261 = vpop.xlane.xlu0 %1260
    %v1262 = vadd.f32 %v1034, %v1168
    %v1263 = vadd.f32 %v1035, %v1171
    %v1264 = vadd.f32 %v1036, %v1174
    %v1265 = vadd.f32 %v1037, %v1177
    %v1266 = vadd.f32 %v1038, %v1180
    %v1267 = vadd.f32 %v1039, %v1183
    %v1268 = vadd.f32 %v1040, %v1186
    %v1269 = vadd.f32 %v1041, %v1189
    %v1270 = vadd.f32 %v1042, %v1192
    %v1271 = vadd.f32 %v1043, %v1195
    %v1272 = vadd.f32 %v1044, %v1198
    %v1273 = vadd.f32 %v1045, %v1201
    %v1274 = vadd.f32 %v1046, %v1204
    %v1275 = vadd.f32 %v1047, %v1207
    %v1276 = vadd.f32 %v1048, %v1210
    %v1277 = vadd.f32 %v1049, %v1213
    %v1278 = vadd.f32 %v1050, %v1216
    %v1279 = vadd.f32 %v1051, %v1219
    %v1280 = vadd.f32 %v1052, %v1222
    %v1281 = vadd.f32 %v1053, %v1225
    %v1282 = vadd.f32 %v1054, %v1228
    %v1283 = vadd.f32 %v1055, %v1231
    %v1284 = vadd.f32 %v1056, %v1234
    %v1285 = vadd.f32 %v1057, %v1237
    %v1286 = vadd.f32 %v1058, %v1240
    %v1287 = vadd.f32 %v1059, %v1243
    %v1288 = vadd.f32 %v1060, %v1246
    %v1289 = vadd.f32 %v1061, %v1249
    %v1290 = vadd.f32 %v1062, %v1252
    %v1291 = vadd.f32 %v1063, %v1255
    %v1292 = vadd.f32 %v1064, %v1258
    %v1293 = vadd.f32 %v1065, %v1261
    %v1294 = vlaneseq
    %v1295 = vshrl.u32 %v1294, 7
    %v1296 = vsub.s32 3, %v1295
    %v1297 = vrot.slane %v290, %v1296
    %vm1298 = vcmp.le.f32.partialorder %v1297, %v456
    %vm1299 = vcmp.le.f32.partialorder %v1297, %v461
    %vm1300 = vcmp.le.f32.partialorder %v1297, %v466
    %vm1301 = vcmp.le.f32.partialorder %v1297, %v471
    %vm1302 = vcmp.le.f32.partialorder %v1297, %v476
    %vm1303 = vcmp.le.f32.partialorder %v1297, %v481
    %vm1304 = vcmp.le.f32.partialorder %v1297, %v486
    %vm1305 = vcmp.le.f32.partialorder %v1297, %v491
    %vm1306 = vcmp.le.f32.partialorder %v1297, %v496
    %vm1307 = vcmp.le.f32.partialorder %v1297, %v501
    %vm1308 = vcmp.le.f32.partialorder %v1297, %v506
    %vm1309 = vcmp.le.f32.partialorder %v1297, %v511
    %vm1310 = vcmp.le.f32.partialorder %v1297, %v516
    %vm1311 = vcmp.le.f32.partialorder %v1297, %v521
    %vm1312 = vcmp.le.f32.partialorder %v1297, %v526
    %vm1313 = vcmp.le.f32.partialorder %v1297, %v531
    %vm1314 = vcmp.le.f32.partialorder %v1297, %v536
    %vm1315 = vcmp.le.f32.partialorder %v1297, %v541
    %vm1316 = vcmp.le.f32.partialorder %v1297, %v546
    %vm1317 = vcmp.le.f32.partialorder %v1297, %v551
    %vm1318 = vcmp.le.f32.partialorder %v1297, %v556
    %vm1319 = vcmp.le.f32.partialorder %v1297, %v561
    %vm1320 = vcmp.le.f32.partialorder %v1297, %v566
    %vm1321 = vcmp.le.f32.partialorder %v1297, %v571
    %vm1322 = vcmp.le.f32.partialorder %v1297, %v576
    %vm1323 = vcmp.le.f32.partialorder %v1297, %v581
    %vm1324 = vcmp.le.f32.partialorder %v1297, %v586
    %vm1325 = vcmp.le.f32.partialorder %v1297, %v591
    %vm1326 = vcmp.le.f32.partialorder %v1297, %v596
    %vm1327 = vcmp.le.f32.partialorder %v1297, %v601
    %vm1328 = vcmp.le.f32.partialorder %v1297, %v606
    %vm1329 = vcmp.le.f32.partialorder %v1297, %v611
    %v1330 = vsel %vm1298, 1, 0
    %v1331 = vsel %vm1299, 1, 0
    %v1332 = vsel %vm1300, 1, 0
    %v1333 = vsel %vm1301, 1, 0
    %v1334 = vsel %vm1302, 1, 0
    %v1335 = vsel %vm1303, 1, 0
    %v1336 = vsel %vm1304, 1, 0
    %v1337 = vsel %vm1305, 1, 0
    %v1338 = vsel %vm1306, 1, 0
    %v1339 = vsel %vm1307, 1, 0
    %v1340 = vsel %vm1308, 1, 0
    %v1341 = vsel %vm1309, 1, 0
    %v1342 = vsel %vm1310, 1, 0
    %v1343 = vsel %vm1311, 1, 0
    %v1344 = vsel %vm1312, 1, 0
    %v1345 = vsel %vm1313, 1, 0
    %v1346 = vsel %vm1314, 1, 0
    %v1347 = vsel %vm1315, 1, 0
    %v1348 = vsel %vm1316, 1, 0
    %v1349 = vsel %vm1317, 1, 0
    %v1350 = vsel %vm1318, 1, 0
    %v1351 = vsel %vm1319, 1, 0
    %v1352 = vsel %vm1320, 1, 0
    %v1353 = vsel %vm1321, 1, 0
    %v1354 = vsel %vm1322, 1, 0
    %v1355 = vsel %vm1323, 1, 0
    %v1356 = vsel %vm1324, 1, 0
    %v1357 = vsel %vm1325, 1, 0
    %v1358 = vsel %vm1326, 1, 0
    %v1359 = vsel %vm1327, 1, 0
    %v1360 = vsel %vm1328, 1, 0
    %v1361 = vsel %vm1329, 1, 0
    %v1362 = vcvt.s32.f32 %v1330
    %v1363 = vcvt.s32.f32 %v1331
    %v1364 = vcvt.s32.f32 %v1332
    %v1365 = vcvt.s32.f32 %v1333
    %v1366 = vcvt.s32.f32 %v1334
    %v1367 = vcvt.s32.f32 %v1335
    %v1368 = vcvt.s32.f32 %v1336
    %v1369 = vcvt.s32.f32 %v1337
    %v1370 = vcvt.s32.f32 %v1338
    %v1371 = vcvt.s32.f32 %v1339
    %v1372 = vcvt.s32.f32 %v1340
    %v1373 = vcvt.s32.f32 %v1341
    %v1374 = vcvt.s32.f32 %v1342
    %v1375 = vcvt.s32.f32 %v1343
    %v1376 = vcvt.s32.f32 %v1344
    %v1377 = vcvt.s32.f32 %v1345
    %v1378 = vcvt.s32.f32 %v1346
    %v1379 = vcvt.s32.f32 %v1347
    %v1380 = vcvt.s32.f32 %v1348
    %v1381 = vcvt.s32.f32 %v1349
    %v1382 = vcvt.s32.f32 %v1350
    %v1383 = vcvt.s32.f32 %v1351
    %v1384 = vcvt.s32.f32 %v1352
    %v1385 = vcvt.s32.f32 %v1353
    %v1386 = vcvt.s32.f32 %v1354
    %v1387 = vcvt.s32.f32 %v1355
    %v1388 = vcvt.s32.f32 %v1356
    %v1389 = vcvt.s32.f32 %v1357
    %v1390 = vcvt.s32.f32 %v1358
    %v1391 = vcvt.s32.f32 %v1359
    %v1392 = vcvt.s32.f32 %v1360
    %v1393 = vcvt.s32.f32 %v1361
    %v1394 = vsel %vm709, %v1362, 0.0
    %1395 = vadd.xlane.f32.xlu0 %v1394
    %v1396 = vpop.xlane.xlu0 %1395
    %v1397 = vsel %vm709, %v1363, 0.0
    %1398 = vadd.xlane.f32.xlu0 %v1397
    %v1399 = vpop.xlane.xlu0 %1398
    %v1400 = vsel %vm709, %v1364, 0.0
    %1401 = vadd.xlane.f32.xlu0 %v1400
    %v1402 = vpop.xlane.xlu0 %1401
    %v1403 = vsel %vm709, %v1365, 0.0
    %1404 = vadd.xlane.f32.xlu0 %v1403
    %v1405 = vpop.xlane.xlu0 %1404
    %v1406 = vsel %vm709, %v1366, 0.0
    %1407 = vadd.xlane.f32.xlu0 %v1406
    %v1408 = vpop.xlane.xlu0 %1407
    %v1409 = vsel %vm709, %v1367, 0.0
    %1410 = vadd.xlane.f32.xlu0 %v1409
    %v1411 = vpop.xlane.xlu0 %1410
    %v1412 = vsel %vm709, %v1368, 0.0
    %1413 = vadd.xlane.f32.xlu0 %v1412
    %v1414 = vpop.xlane.xlu0 %1413
    %v1415 = vsel %vm709, %v1369, 0.0
    %1416 = vadd.xlane.f32.xlu0 %v1415
    %v1417 = vpop.xlane.xlu0 %1416
    %v1418 = vsel %vm709, %v1370, 0.0
    %1419 = vadd.xlane.f32.xlu0 %v1418
    %v1420 = vpop.xlane.xlu0 %1419
    %v1421 = vsel %vm709, %v1371, 0.0
    %1422 = vadd.xlane.f32.xlu0 %v1421
    %v1423 = vpop.xlane.xlu0 %1422
    %v1424 = vsel %vm709, %v1372, 0.0
    %1425 = vadd.xlane.f32.xlu0 %v1424
    %v1426 = vpop.xlane.xlu0 %1425
    %v1427 = vsel %vm709, %v1373, 0.0
    %1428 = vadd.xlane.f32.xlu0 %v1427
    %v1429 = vpop.xlane.xlu0 %1428
    %v1430 = vsel %vm709, %v1374, 0.0
    %1431 = vadd.xlane.f32.xlu0 %v1430
    %v1432 = vpop.xlane.xlu0 %1431
    %v1433 = vsel %vm709, %v1375, 0.0
    %1434 = vadd.xlane.f32.xlu0 %v1433
    %v1435 = vpop.xlane.xlu0 %1434
    %v1436 = vsel %vm709, %v1376, 0.0
    %1437 = vadd.xlane.f32.xlu0 %v1436
    %v1438 = vpop.xlane.xlu0 %1437
    %v1439 = vsel %vm709, %v1377, 0.0
    %1440 = vadd.xlane.f32.xlu0 %v1439
    %v1441 = vpop.xlane.xlu0 %1440
    %v1442 = vsel %vm709, %v1378, 0.0
    %1443 = vadd.xlane.f32.xlu0 %v1442
    %v1444 = vpop.xlane.xlu0 %1443
    %v1445 = vsel %vm709, %v1379, 0.0
    %1446 = vadd.xlane.f32.xlu0 %v1445
    %v1447 = vpop.xlane.xlu0 %1446
    %v1448 = vsel %vm709, %v1380, 0.0
    %1449 = vadd.xlane.f32.xlu0 %v1448
    %v1450 = vpop.xlane.xlu0 %1449
    %v1451 = vsel %vm709, %v1381, 0.0
    %1452 = vadd.xlane.f32.xlu0 %v1451
    %v1453 = vpop.xlane.xlu0 %1452
    %v1454 = vsel %vm709, %v1382, 0.0
    %1455 = vadd.xlane.f32.xlu0 %v1454
    %v1456 = vpop.xlane.xlu0 %1455
    %v1457 = vsel %vm709, %v1383, 0.0
    %1458 = vadd.xlane.f32.xlu0 %v1457
    %v1459 = vpop.xlane.xlu0 %1458
    %v1460 = vsel %vm709, %v1384, 0.0
    %1461 = vadd.xlane.f32.xlu0 %v1460
    %v1462 = vpop.xlane.xlu0 %1461
    %v1463 = vsel %vm709, %v1385, 0.0
    %1464 = vadd.xlane.f32.xlu0 %v1463
    %v1465 = vpop.xlane.xlu0 %1464
    %v1466 = vsel %vm709, %v1386, 0.0
    %1467 = vadd.xlane.f32.xlu0 %v1466
    %v1468 = vpop.xlane.xlu0 %1467
    %v1469 = vsel %vm709, %v1387, 0.0
    %1470 = vadd.xlane.f32.xlu0 %v1469
    %v1471 = vpop.xlane.xlu0 %1470
    %v1472 = vsel %vm709, %v1388, 0.0
    %1473 = vadd.xlane.f32.xlu0 %v1472
    %v1474 = vpop.xlane.xlu0 %1473
    %v1475 = vsel %vm709, %v1389, 0.0
    %1476 = vadd.xlane.f32.xlu0 %v1475
    %v1477 = vpop.xlane.xlu0 %1476
    %v1478 = vsel %vm709, %v1390, 0.0
    %1479 = vadd.xlane.f32.xlu0 %v1478
    %v1480 = vpop.xlane.xlu0 %1479
    %v1481 = vsel %vm709, %v1391, 0.0
    %1482 = vadd.xlane.f32.xlu0 %v1481
    %v1483 = vpop.xlane.xlu0 %1482
    %v1484 = vsel %vm709, %v1392, 0.0
    %1485 = vadd.xlane.f32.xlu0 %v1484
    %v1486 = vpop.xlane.xlu0 %1485
    %v1487 = vsel %vm709, %v1393, 0.0
    %1488 = vadd.xlane.f32.xlu0 %v1487
    %v1489 = vpop.xlane.xlu0 %1488
    %v1490 = vadd.f32 %v1262, %v1396
    %v1491 = vadd.f32 %v1263, %v1399
    %v1492 = vadd.f32 %v1264, %v1402
    %v1493 = vadd.f32 %v1265, %v1405
    %v1494 = vadd.f32 %v1266, %v1408
    %v1495 = vadd.f32 %v1267, %v1411
    %v1496 = vadd.f32 %v1268, %v1414
    %v1497 = vadd.f32 %v1269, %v1417
    %v1498 = vadd.f32 %v1270, %v1420
    %v1499 = vadd.f32 %v1271, %v1423
    %v1500 = vadd.f32 %v1272, %v1426
    %v1501 = vadd.f32 %v1273, %v1429
    %v1502 = vadd.f32 %v1274, %v1432
    %v1503 = vadd.f32 %v1275, %v1435
    %v1504 = vadd.f32 %v1276, %v1438
    %v1505 = vadd.f32 %v1277, %v1441
    %v1506 = vadd.f32 %v1278, %v1444
    %v1507 = vadd.f32 %v1279, %v1447
    %v1508 = vadd.f32 %v1280, %v1450
    %v1509 = vadd.f32 %v1281, %v1453
    %v1510 = vadd.f32 %v1282, %v1456
    %v1511 = vadd.f32 %v1283, %v1459
    %v1512 = vadd.f32 %v1284, %v1462
    %v1513 = vadd.f32 %v1285, %v1465
    %v1514 = vadd.f32 %v1286, %v1468
    %v1515 = vadd.f32 %v1287, %v1471
    %v1516 = vadd.f32 %v1288, %v1474
    %v1517 = vadd.f32 %v1289, %v1477
    %v1518 = vadd.f32 %v1290, %v1480
    %v1519 = vadd.f32 %v1291, %v1483
    %v1520 = vadd.f32 %v1292, %v1486
    %v1521 = vadd.f32 %v1293, %v1489
    %v1522 = vlaneseq
    %v1523 = vshrl.u32 %v1522, 7
    %v1524 = vsub.s32 4, %v1523
    %v1525 = vrot.slane %v290, %v1524
    %vm1526 = vcmp.le.f32.partialorder %v1525, %v456
    %vm1527 = vcmp.le.f32.partialorder %v1525, %v461
    %vm1528 = vcmp.le.f32.partialorder %v1525, %v466
    %vm1529 = vcmp.le.f32.partialorder %v1525, %v471
    %vm1530 = vcmp.le.f32.partialorder %v1525, %v476
    %vm1531 = vcmp.le.f32.partialorder %v1525, %v481
    %vm1532 = vcmp.le.f32.partialorder %v1525, %v486
    %vm1533 = vcmp.le.f32.partialorder %v1525, %v491
    %vm1534 = vcmp.le.f32.partialorder %v1525, %v496
    %vm1535 = vcmp.le.f32.partialorder %v1525, %v501
    %vm1536 = vcmp.le.f32.partialorder %v1525, %v506
    %vm1537 = vcmp.le.f32.partialorder %v1525, %v511
    %vm1538 = vcmp.le.f32.partialorder %v1525, %v516
    %vm1539 = vcmp.le.f32.partialorder %v1525, %v521
    %vm1540 = vcmp.le.f32.partialorder %v1525, %v526
    %vm1541 = vcmp.le.f32.partialorder %v1525, %v531
    %vm1542 = vcmp.le.f32.partialorder %v1525, %v536
    %vm1543 = vcmp.le.f32.partialorder %v1525, %v541
    %vm1544 = vcmp.le.f32.partialorder %v1525, %v546
    %vm1545 = vcmp.le.f32.partialorder %v1525, %v551
    %vm1546 = vcmp.le.f32.partialorder %v1525, %v556
    %vm1547 = vcmp.le.f32.partialorder %v1525, %v561
    %vm1548 = vcmp.le.f32.partialorder %v1525, %v566
    %vm1549 = vcmp.le.f32.partialorder %v1525, %v571
    %vm1550 = vcmp.le.f32.partialorder %v1525, %v576
    %vm1551 = vcmp.le.f32.partialorder %v1525, %v581
    %vm1552 = vcmp.le.f32.partialorder %v1525, %v586
    %vm1553 = vcmp.le.f32.partialorder %v1525, %v591
    %vm1554 = vcmp.le.f32.partialorder %v1525, %v596
    %vm1555 = vcmp.le.f32.partialorder %v1525, %v601
    %vm1556 = vcmp.le.f32.partialorder %v1525, %v606
    %vm1557 = vcmp.le.f32.partialorder %v1525, %v611
    %v1558 = vsel %vm1526, 1, 0
    %v1559 = vsel %vm1527, 1, 0
    %v1560 = vsel %vm1528, 1, 0
    %v1561 = vsel %vm1529, 1, 0
    %v1562 = vsel %vm1530, 1, 0
    %v1563 = vsel %vm1531, 1, 0
    %v1564 = vsel %vm1532, 1, 0
    %v1565 = vsel %vm1533, 1, 0
    %v1566 = vsel %vm1534, 1, 0
    %v1567 = vsel %vm1535, 1, 0
    %v1568 = vsel %vm1536, 1, 0
    %v1569 = vsel %vm1537, 1, 0
    %v1570 = vsel %vm1538, 1, 0
    %v1571 = vsel %vm1539, 1, 0
    %v1572 = vsel %vm1540, 1, 0
    %v1573 = vsel %vm1541, 1, 0
    %v1574 = vsel %vm1542, 1, 0
    %v1575 = vsel %vm1543, 1, 0
    %v1576 = vsel %vm1544, 1, 0
    %v1577 = vsel %vm1545, 1, 0
    %v1578 = vsel %vm1546, 1, 0
    %v1579 = vsel %vm1547, 1, 0
    %v1580 = vsel %vm1548, 1, 0
    %v1581 = vsel %vm1549, 1, 0
    %v1582 = vsel %vm1550, 1, 0
    %v1583 = vsel %vm1551, 1, 0
    %v1584 = vsel %vm1552, 1, 0
    %v1585 = vsel %vm1553, 1, 0
    %v1586 = vsel %vm1554, 1, 0
    %v1587 = vsel %vm1555, 1, 0
    %v1588 = vsel %vm1556, 1, 0
    %v1589 = vsel %vm1557, 1, 0
    %v1590 = vcvt.s32.f32 %v1558
    %v1591 = vcvt.s32.f32 %v1559
    %v1592 = vcvt.s32.f32 %v1560
    %v1593 = vcvt.s32.f32 %v1561
    %v1594 = vcvt.s32.f32 %v1562
    %v1595 = vcvt.s32.f32 %v1563
    %v1596 = vcvt.s32.f32 %v1564
    %v1597 = vcvt.s32.f32 %v1565
    %v1598 = vcvt.s32.f32 %v1566
    %v1599 = vcvt.s32.f32 %v1567
    %v1600 = vcvt.s32.f32 %v1568
    %v1601 = vcvt.s32.f32 %v1569
    %v1602 = vcvt.s32.f32 %v1570
    %v1603 = vcvt.s32.f32 %v1571
    %v1604 = vcvt.s32.f32 %v1572
    %v1605 = vcvt.s32.f32 %v1573
    %v1606 = vcvt.s32.f32 %v1574
    %v1607 = vcvt.s32.f32 %v1575
    %v1608 = vcvt.s32.f32 %v1576
    %v1609 = vcvt.s32.f32 %v1577
    %v1610 = vcvt.s32.f32 %v1578
    %v1611 = vcvt.s32.f32 %v1579
    %v1612 = vcvt.s32.f32 %v1580
    %v1613 = vcvt.s32.f32 %v1581
    %v1614 = vcvt.s32.f32 %v1582
    %v1615 = vcvt.s32.f32 %v1583
    %v1616 = vcvt.s32.f32 %v1584
    %v1617 = vcvt.s32.f32 %v1585
    %v1618 = vcvt.s32.f32 %v1586
    %v1619 = vcvt.s32.f32 %v1587
    %v1620 = vcvt.s32.f32 %v1588
    %v1621 = vcvt.s32.f32 %v1589
    %v1622 = vsel %vm709, %v1590, 0.0
    %1623 = vadd.xlane.f32.xlu0 %v1622
    %v1624 = vpop.xlane.xlu0 %1623
    %v1625 = vsel %vm709, %v1591, 0.0
    %1626 = vadd.xlane.f32.xlu0 %v1625
    %v1627 = vpop.xlane.xlu0 %1626
    %v1628 = vsel %vm709, %v1592, 0.0
    %1629 = vadd.xlane.f32.xlu0 %v1628
    %v1630 = vpop.xlane.xlu0 %1629
    %v1631 = vsel %vm709, %v1593, 0.0
    %1632 = vadd.xlane.f32.xlu0 %v1631
    %v1633 = vpop.xlane.xlu0 %1632
    %v1634 = vsel %vm709, %v1594, 0.0
    %1635 = vadd.xlane.f32.xlu0 %v1634
    %v1636 = vpop.xlane.xlu0 %1635
    %v1637 = vsel %vm709, %v1595, 0.0
    %1638 = vadd.xlane.f32.xlu0 %v1637
    %v1639 = vpop.xlane.xlu0 %1638
    %v1640 = vsel %vm709, %v1596, 0.0
    %1641 = vadd.xlane.f32.xlu0 %v1640
    %v1642 = vpop.xlane.xlu0 %1641
    %v1643 = vsel %vm709, %v1597, 0.0
    %1644 = vadd.xlane.f32.xlu0 %v1643
    %v1645 = vpop.xlane.xlu0 %1644
    %v1646 = vsel %vm709, %v1598, 0.0
    %1647 = vadd.xlane.f32.xlu0 %v1646
    %v1648 = vpop.xlane.xlu0 %1647
    %v1649 = vsel %vm709, %v1599, 0.0
    %1650 = vadd.xlane.f32.xlu0 %v1649
    %v1651 = vpop.xlane.xlu0 %1650
    %v1652 = vsel %vm709, %v1600, 0.0
    %1653 = vadd.xlane.f32.xlu0 %v1652
    %v1654 = vpop.xlane.xlu0 %1653
    %v1655 = vsel %vm709, %v1601, 0.0
    %1656 = vadd.xlane.f32.xlu0 %v1655
    %v1657 = vpop.xlane.xlu0 %1656
    %v1658 = vsel %vm709, %v1602, 0.0
    %1659 = vadd.xlane.f32.xlu0 %v1658
    %v1660 = vpop.xlane.xlu0 %1659
    %v1661 = vsel %vm709, %v1603, 0.0
    %1662 = vadd.xlane.f32.xlu0 %v1661
    %v1663 = vpop.xlane.xlu0 %1662
    %v1664 = vsel %vm709, %v1604, 0.0
    %1665 = vadd.xlane.f32.xlu0 %v1664
    %v1666 = vpop.xlane.xlu0 %1665
    %v1667 = vsel %vm709, %v1605, 0.0
    %1668 = vadd.xlane.f32.xlu0 %v1667
    %v1669 = vpop.xlane.xlu0 %1668
    %v1670 = vsel %vm709, %v1606, 0.0
    %1671 = vadd.xlane.f32.xlu0 %v1670
    %v1672 = vpop.xlane.xlu0 %1671
    %v1673 = vsel %vm709, %v1607, 0.0
    %1674 = vadd.xlane.f32.xlu0 %v1673
    %v1675 = vpop.xlane.xlu0 %1674
    %v1676 = vsel %vm709, %v1608, 0.0
    %1677 = vadd.xlane.f32.xlu0 %v1676
    %v1678 = vpop.xlane.xlu0 %1677
    %v1679 = vsel %vm709, %v1609, 0.0
    %1680 = vadd.xlane.f32.xlu0 %v1679
    %v1681 = vpop.xlane.xlu0 %1680
    %v1682 = vsel %vm709, %v1610, 0.0
    %1683 = vadd.xlane.f32.xlu0 %v1682
    %v1684 = vpop.xlane.xlu0 %1683
    %v1685 = vsel %vm709, %v1611, 0.0
    %1686 = vadd.xlane.f32.xlu0 %v1685
    %v1687 = vpop.xlane.xlu0 %1686
    %v1688 = vsel %vm709, %v1612, 0.0
    %1689 = vadd.xlane.f32.xlu0 %v1688
    %v1690 = vpop.xlane.xlu0 %1689
    %v1691 = vsel %vm709, %v1613, 0.0
    %1692 = vadd.xlane.f32.xlu0 %v1691
    %v1693 = vpop.xlane.xlu0 %1692
    %v1694 = vsel %vm709, %v1614, 0.0
    %1695 = vadd.xlane.f32.xlu0 %v1694
    %v1696 = vpop.xlane.xlu0 %1695
    %v1697 = vsel %vm709, %v1615, 0.0
    %1698 = vadd.xlane.f32.xlu0 %v1697
    %v1699 = vpop.xlane.xlu0 %1698
    %v1700 = vsel %vm709, %v1616, 0.0
    %1701 = vadd.xlane.f32.xlu0 %v1700
    %v1702 = vpop.xlane.xlu0 %1701
    %v1703 = vsel %vm709, %v1617, 0.0
    %1704 = vadd.xlane.f32.xlu0 %v1703
    %v1705 = vpop.xlane.xlu0 %1704
    %v1706 = vsel %vm709, %v1618, 0.0
    %1707 = vadd.xlane.f32.xlu0 %v1706
    %v1708 = vpop.xlane.xlu0 %1707
    %v1709 = vsel %vm709, %v1619, 0.0
    %1710 = vadd.xlane.f32.xlu0 %v1709
    %v1711 = vpop.xlane.xlu0 %1710
    %v1712 = vsel %vm709, %v1620, 0.0
    %1713 = vadd.xlane.f32.xlu0 %v1712
    %v1714 = vpop.xlane.xlu0 %1713
    %v1715 = vsel %vm709, %v1621, 0.0
    %1716 = vadd.xlane.f32.xlu0 %v1715
    %v1717 = vpop.xlane.xlu0 %1716
    %v1718 = vadd.f32 %v1490, %v1624
    %v1719 = vadd.f32 %v1491, %v1627
    %v1720 = vadd.f32 %v1492, %v1630
    %v1721 = vadd.f32 %v1493, %v1633
    %v1722 = vadd.f32 %v1494, %v1636
    %v1723 = vadd.f32 %v1495, %v1639
    %v1724 = vadd.f32 %v1496, %v1642
    %v1725 = vadd.f32 %v1497, %v1645
    %v1726 = vadd.f32 %v1498, %v1648
    %v1727 = vadd.f32 %v1499, %v1651
    %v1728 = vadd.f32 %v1500, %v1654
    %v1729 = vadd.f32 %v1501, %v1657
    %v1730 = vadd.f32 %v1502, %v1660
    %v1731 = vadd.f32 %v1503, %v1663
    %v1732 = vadd.f32 %v1504, %v1666
    %v1733 = vadd.f32 %v1505, %v1669
    %v1734 = vadd.f32 %v1506, %v1672
    %v1735 = vadd.f32 %v1507, %v1675
    %v1736 = vadd.f32 %v1508, %v1678
    %v1737 = vadd.f32 %v1509, %v1681
    %v1738 = vadd.f32 %v1510, %v1684
    %v1739 = vadd.f32 %v1511, %v1687
    %v1740 = vadd.f32 %v1512, %v1690
    %v1741 = vadd.f32 %v1513, %v1693
    %v1742 = vadd.f32 %v1514, %v1696
    %v1743 = vadd.f32 %v1515, %v1699
    %v1744 = vadd.f32 %v1516, %v1702
    %v1745 = vadd.f32 %v1517, %v1705
    %v1746 = vadd.f32 %v1518, %v1708
    %v1747 = vadd.f32 %v1519, %v1711
    %v1748 = vadd.f32 %v1520, %v1714
    %v1749 = vadd.f32 %v1521, %v1717
    %v1750 = vlaneseq
    %v1751 = vshrl.u32 %v1750, 7
    %v1752 = vsub.s32 5, %v1751
    %v1753 = vrot.slane %v290, %v1752
    %vm1754 = vcmp.le.f32.partialorder %v1753, %v456
    %vm1755 = vcmp.le.f32.partialorder %v1753, %v461
    %vm1756 = vcmp.le.f32.partialorder %v1753, %v466
    %vm1757 = vcmp.le.f32.partialorder %v1753, %v471
    %vm1758 = vcmp.le.f32.partialorder %v1753, %v476
    %vm1759 = vcmp.le.f32.partialorder %v1753, %v481
    %vm1760 = vcmp.le.f32.partialorder %v1753, %v486
    %vm1761 = vcmp.le.f32.partialorder %v1753, %v491
    %vm1762 = vcmp.le.f32.partialorder %v1753, %v496
    %vm1763 = vcmp.le.f32.partialorder %v1753, %v501
    %vm1764 = vcmp.le.f32.partialorder %v1753, %v506
    %vm1765 = vcmp.le.f32.partialorder %v1753, %v511
    %vm1766 = vcmp.le.f32.partialorder %v1753, %v516
    %vm1767 = vcmp.le.f32.partialorder %v1753, %v521
    %vm1768 = vcmp.le.f32.partialorder %v1753, %v526
    %vm1769 = vcmp.le.f32.partialorder %v1753, %v531
    %vm1770 = vcmp.le.f32.partialorder %v1753, %v536
    %vm1771 = vcmp.le.f32.partialorder %v1753, %v541
    %vm1772 = vcmp.le.f32.partialorder %v1753, %v546
    %vm1773 = vcmp.le.f32.partialorder %v1753, %v551
    %vm1774 = vcmp.le.f32.partialorder %v1753, %v556
    %vm1775 = vcmp.le.f32.partialorder %v1753, %v561
    %vm1776 = vcmp.le.f32.partialorder %v1753, %v566
    %vm1777 = vcmp.le.f32.partialorder %v1753, %v571
    %vm1778 = vcmp.le.f32.partialorder %v1753, %v576
    %vm1779 = vcmp.le.f32.partialorder %v1753, %v581
    %vm1780 = vcmp.le.f32.partialorder %v1753, %v586
    %vm1781 = vcmp.le.f32.partialorder %v1753, %v591
    %vm1782 = vcmp.le.f32.partialorder %v1753, %v596
    %vm1783 = vcmp.le.f32.partialorder %v1753, %v601
    %vm1784 = vcmp.le.f32.partialorder %v1753, %v606
    %vm1785 = vcmp.le.f32.partialorder %v1753, %v611
    %v1786 = vsel %vm1754, 1, 0
    %v1787 = vsel %vm1755, 1, 0
    %v1788 = vsel %vm1756, 1, 0
    %v1789 = vsel %vm1757, 1, 0
    %v1790 = vsel %vm1758, 1, 0
    %v1791 = vsel %vm1759, 1, 0
    %v1792 = vsel %vm1760, 1, 0
    %v1793 = vsel %vm1761, 1, 0
    %v1794 = vsel %vm1762, 1, 0
    %v1795 = vsel %vm1763, 1, 0
    %v1796 = vsel %vm1764, 1, 0
    %v1797 = vsel %vm1765, 1, 0
    %v1798 = vsel %vm1766, 1, 0
    %v1799 = vsel %vm1767, 1, 0
    %v1800 = vsel %vm1768, 1, 0
    %v1801 = vsel %vm1769, 1, 0
    %v1802 = vsel %vm1770, 1, 0
    %v1803 = vsel %vm1771, 1, 0
    %v1804 = vsel %vm1772, 1, 0
    %v1805 = vsel %vm1773, 1, 0
    %v1806 = vsel %vm1774, 1, 0
    %v1807 = vsel %vm1775, 1, 0
    %v1808 = vsel %vm1776, 1, 0
    %v1809 = vsel %vm1777, 1, 0
    %v1810 = vsel %vm1778, 1, 0
    %v1811 = vsel %vm1779, 1, 0
    %v1812 = vsel %vm1780, 1, 0
    %v1813 = vsel %vm1781, 1, 0
    %v1814 = vsel %vm1782, 1, 0
    %v1815 = vsel %vm1783, 1, 0
    %v1816 = vsel %vm1784, 1, 0
    %v1817 = vsel %vm1785, 1, 0
    %v1818 = vcvt.s32.f32 %v1786
    %v1819 = vcvt.s32.f32 %v1787
    %v1820 = vcvt.s32.f32 %v1788
    %v1821 = vcvt.s32.f32 %v1789
    %v1822 = vcvt.s32.f32 %v1790
    %v1823 = vcvt.s32.f32 %v1791
    %v1824 = vcvt.s32.f32 %v1792
    %v1825 = vcvt.s32.f32 %v1793
    %v1826 = vcvt.s32.f32 %v1794
    %v1827 = vcvt.s32.f32 %v1795
    %v1828 = vcvt.s32.f32 %v1796
    %v1829 = vcvt.s32.f32 %v1797
    %v1830 = vcvt.s32.f32 %v1798
    %v1831 = vcvt.s32.f32 %v1799
    %v1832 = vcvt.s32.f32 %v1800
    %v1833 = vcvt.s32.f32 %v1801
    %v1834 = vcvt.s32.f32 %v1802
    %v1835 = vcvt.s32.f32 %v1803
    %v1836 = vcvt.s32.f32 %v1804
    %v1837 = vcvt.s32.f32 %v1805
    %v1838 = vcvt.s32.f32 %v1806
    %v1839 = vcvt.s32.f32 %v1807
    %v1840 = vcvt.s32.f32 %v1808
    %v1841 = vcvt.s32.f32 %v1809
    %v1842 = vcvt.s32.f32 %v1810
    %v1843 = vcvt.s32.f32 %v1811
    %v1844 = vcvt.s32.f32 %v1812
    %v1845 = vcvt.s32.f32 %v1813
    %v1846 = vcvt.s32.f32 %v1814
    %v1847 = vcvt.s32.f32 %v1815
    %v1848 = vcvt.s32.f32 %v1816
    %v1849 = vcvt.s32.f32 %v1817
    %v1850 = vsel %vm709, %v1818, 0.0
    %1851 = vadd.xlane.f32.xlu0 %v1850
    %v1852 = vpop.xlane.xlu0 %1851
    %v1853 = vsel %vm709, %v1819, 0.0
    %1854 = vadd.xlane.f32.xlu0 %v1853
    %v1855 = vpop.xlane.xlu0 %1854
    %v1856 = vsel %vm709, %v1820, 0.0
    %1857 = vadd.xlane.f32.xlu0 %v1856
    %v1858 = vpop.xlane.xlu0 %1857
    %v1859 = vsel %vm709, %v1821, 0.0
    %1860 = vadd.xlane.f32.xlu0 %v1859
    %v1861 = vpop.xlane.xlu0 %1860
    %v1862 = vsel %vm709, %v1822, 0.0
    %1863 = vadd.xlane.f32.xlu0 %v1862
    %v1864 = vpop.xlane.xlu0 %1863
    %v1865 = vsel %vm709, %v1823, 0.0
    %1866 = vadd.xlane.f32.xlu0 %v1865
    %v1867 = vpop.xlane.xlu0 %1866
    %v1868 = vsel %vm709, %v1824, 0.0
    %1869 = vadd.xlane.f32.xlu0 %v1868
    %v1870 = vpop.xlane.xlu0 %1869
    %v1871 = vsel %vm709, %v1825, 0.0
    %1872 = vadd.xlane.f32.xlu0 %v1871
    %v1873 = vpop.xlane.xlu0 %1872
    %v1874 = vsel %vm709, %v1826, 0.0
    %1875 = vadd.xlane.f32.xlu0 %v1874
    %v1876 = vpop.xlane.xlu0 %1875
    %v1877 = vsel %vm709, %v1827, 0.0
    %1878 = vadd.xlane.f32.xlu0 %v1877
    %v1879 = vpop.xlane.xlu0 %1878
    %v1880 = vsel %vm709, %v1828, 0.0
    %1881 = vadd.xlane.f32.xlu0 %v1880
    %v1882 = vpop.xlane.xlu0 %1881
    %v1883 = vsel %vm709, %v1829, 0.0
    %1884 = vadd.xlane.f32.xlu0 %v1883
    %v1885 = vpop.xlane.xlu0 %1884
    %v1886 = vsel %vm709, %v1830, 0.0
    %1887 = vadd.xlane.f32.xlu0 %v1886
    %v1888 = vpop.xlane.xlu0 %1887
    %v1889 = vsel %vm709, %v1831, 0.0
    %1890 = vadd.xlane.f32.xlu0 %v1889
    %v1891 = vpop.xlane.xlu0 %1890
    %v1892 = vsel %vm709, %v1832, 0.0
    %1893 = vadd.xlane.f32.xlu0 %v1892
    %v1894 = vpop.xlane.xlu0 %1893
    %v1895 = vsel %vm709, %v1833, 0.0
    %1896 = vadd.xlane.f32.xlu0 %v1895
    %v1897 = vpop.xlane.xlu0 %1896
    %v1898 = vsel %vm709, %v1834, 0.0
    %1899 = vadd.xlane.f32.xlu0 %v1898
    %v1900 = vpop.xlane.xlu0 %1899
    %v1901 = vsel %vm709, %v1835, 0.0
    %1902 = vadd.xlane.f32.xlu0 %v1901
    %v1903 = vpop.xlane.xlu0 %1902
    %v1904 = vsel %vm709, %v1836, 0.0
    %1905 = vadd.xlane.f32.xlu0 %v1904
    %v1906 = vpop.xlane.xlu0 %1905
    %v1907 = vsel %vm709, %v1837, 0.0
    %1908 = vadd.xlane.f32.xlu0 %v1907
    %v1909 = vpop.xlane.xlu0 %1908
    %v1910 = vsel %vm709, %v1838, 0.0
    %1911 = vadd.xlane.f32.xlu0 %v1910
    %v1912 = vpop.xlane.xlu0 %1911
    %v1913 = vsel %vm709, %v1839, 0.0
    %1914 = vadd.xlane.f32.xlu0 %v1913
    %v1915 = vpop.xlane.xlu0 %1914
    %v1916 = vsel %vm709, %v1840, 0.0
    %1917 = vadd.xlane.f32.xlu0 %v1916
    %v1918 = vpop.xlane.xlu0 %1917
    %v1919 = vsel %vm709, %v1841, 0.0
    %1920 = vadd.xlane.f32.xlu0 %v1919
    %v1921 = vpop.xlane.xlu0 %1920
    %v1922 = vsel %vm709, %v1842, 0.0
    %1923 = vadd.xlane.f32.xlu0 %v1922
    %v1924 = vpop.xlane.xlu0 %1923
    %v1925 = vsel %vm709, %v1843, 0.0
    %1926 = vadd.xlane.f32.xlu0 %v1925
    %v1927 = vpop.xlane.xlu0 %1926
    %v1928 = vsel %vm709, %v1844, 0.0
    %1929 = vadd.xlane.f32.xlu0 %v1928
    %v1930 = vpop.xlane.xlu0 %1929
    %v1931 = vsel %vm709, %v1845, 0.0
    %1932 = vadd.xlane.f32.xlu0 %v1931
    %v1933 = vpop.xlane.xlu0 %1932
    %v1934 = vsel %vm709, %v1846, 0.0
    %1935 = vadd.xlane.f32.xlu0 %v1934
    %v1936 = vpop.xlane.xlu0 %1935
    %v1937 = vsel %vm709, %v1847, 0.0
    %1938 = vadd.xlane.f32.xlu0 %v1937
    %v1939 = vpop.xlane.xlu0 %1938
    %v1940 = vsel %vm709, %v1848, 0.0
    %1941 = vadd.xlane.f32.xlu0 %v1940
    %v1942 = vpop.xlane.xlu0 %1941
    %v1943 = vsel %vm709, %v1849, 0.0
    %1944 = vadd.xlane.f32.xlu0 %v1943
    %v1945 = vpop.xlane.xlu0 %1944
    %v1946 = vadd.f32 %v1718, %v1852
    %v1947 = vadd.f32 %v1719, %v1855
    %v1948 = vadd.f32 %v1720, %v1858
    %v1949 = vadd.f32 %v1721, %v1861
    %v1950 = vadd.f32 %v1722, %v1864
    %v1951 = vadd.f32 %v1723, %v1867
    %v1952 = vadd.f32 %v1724, %v1870
    %v1953 = vadd.f32 %v1725, %v1873
    %v1954 = vadd.f32 %v1726, %v1876
    %v1955 = vadd.f32 %v1727, %v1879
    %v1956 = vadd.f32 %v1728, %v1882
    %v1957 = vadd.f32 %v1729, %v1885
    %v1958 = vadd.f32 %v1730, %v1888
    %v1959 = vadd.f32 %v1731, %v1891
    %v1960 = vadd.f32 %v1732, %v1894
    %v1961 = vadd.f32 %v1733, %v1897
    %v1962 = vadd.f32 %v1734, %v1900
    %v1963 = vadd.f32 %v1735, %v1903
    %v1964 = vadd.f32 %v1736, %v1906
    %v1965 = vadd.f32 %v1737, %v1909
    %v1966 = vadd.f32 %v1738, %v1912
    %v1967 = vadd.f32 %v1739, %v1915
    %v1968 = vadd.f32 %v1740, %v1918
    %v1969 = vadd.f32 %v1741, %v1921
    %v1970 = vadd.f32 %v1742, %v1924
    %v1971 = vadd.f32 %v1743, %v1927
    %v1972 = vadd.f32 %v1744, %v1930
    %v1973 = vadd.f32 %v1745, %v1933
    %v1974 = vadd.f32 %v1746, %v1936
    %v1975 = vadd.f32 %v1747, %v1939
    %v1976 = vadd.f32 %v1748, %v1942
    %v1977 = vadd.f32 %v1749, %v1945
    %v1978 = vlaneseq
    %v1979 = vshrl.u32 %v1978, 7
    %v1980 = vsub.s32 6, %v1979
    %v1981 = vrot.slane %v290, %v1980
    %vm1982 = vcmp.le.f32.partialorder %v1981, %v456
    %vm1983 = vcmp.le.f32.partialorder %v1981, %v461
    %vm1984 = vcmp.le.f32.partialorder %v1981, %v466
    %vm1985 = vcmp.le.f32.partialorder %v1981, %v471
    %vm1986 = vcmp.le.f32.partialorder %v1981, %v476
    %vm1987 = vcmp.le.f32.partialorder %v1981, %v481
    %vm1988 = vcmp.le.f32.partialorder %v1981, %v486
    %vm1989 = vcmp.le.f32.partialorder %v1981, %v491
    %vm1990 = vcmp.le.f32.partialorder %v1981, %v496
    %vm1991 = vcmp.le.f32.partialorder %v1981, %v501
    %vm1992 = vcmp.le.f32.partialorder %v1981, %v506
    %vm1993 = vcmp.le.f32.partialorder %v1981, %v511
    %vm1994 = vcmp.le.f32.partialorder %v1981, %v516
    %vm1995 = vcmp.le.f32.partialorder %v1981, %v521
    %vm1996 = vcmp.le.f32.partialorder %v1981, %v526
    %vm1997 = vcmp.le.f32.partialorder %v1981, %v531
    %vm1998 = vcmp.le.f32.partialorder %v1981, %v536
    %vm1999 = vcmp.le.f32.partialorder %v1981, %v541
    %vm2000 = vcmp.le.f32.partialorder %v1981, %v546
    %vm2001 = vcmp.le.f32.partialorder %v1981, %v551
    %vm2002 = vcmp.le.f32.partialorder %v1981, %v556
    %vm2003 = vcmp.le.f32.partialorder %v1981, %v561
    %vm2004 = vcmp.le.f32.partialorder %v1981, %v566
    %vm2005 = vcmp.le.f32.partialorder %v1981, %v571
    %vm2006 = vcmp.le.f32.partialorder %v1981, %v576
    %vm2007 = vcmp.le.f32.partialorder %v1981, %v581
    %vm2008 = vcmp.le.f32.partialorder %v1981, %v586
    %vm2009 = vcmp.le.f32.partialorder %v1981, %v591
    %vm2010 = vcmp.le.f32.partialorder %v1981, %v596
    %vm2011 = vcmp.le.f32.partialorder %v1981, %v601
    %vm2012 = vcmp.le.f32.partialorder %v1981, %v606
    %vm2013 = vcmp.le.f32.partialorder %v1981, %v611
    %v2014 = vsel %vm1982, 1, 0
    %v2015 = vsel %vm1983, 1, 0
    %v2016 = vsel %vm1984, 1, 0
    %v2017 = vsel %vm1985, 1, 0
    %v2018 = vsel %vm1986, 1, 0
    %v2019 = vsel %vm1987, 1, 0
    %v2020 = vsel %vm1988, 1, 0
    %v2021 = vsel %vm1989, 1, 0
    %v2022 = vsel %vm1990, 1, 0
    %v2023 = vsel %vm1991, 1, 0
    %v2024 = vsel %vm1992, 1, 0
    %v2025 = vsel %vm1993, 1, 0
    %v2026 = vsel %vm1994, 1, 0
    %v2027 = vsel %vm1995, 1, 0
    %v2028 = vsel %vm1996, 1, 0
    %v2029 = vsel %vm1997, 1, 0
    %v2030 = vsel %vm1998, 1, 0
    %v2031 = vsel %vm1999, 1, 0
    %v2032 = vsel %vm2000, 1, 0
    %v2033 = vsel %vm2001, 1, 0
    %v2034 = vsel %vm2002, 1, 0
    %v2035 = vsel %vm2003, 1, 0
    %v2036 = vsel %vm2004, 1, 0
    %v2037 = vsel %vm2005, 1, 0
    %v2038 = vsel %vm2006, 1, 0
    %v2039 = vsel %vm2007, 1, 0
    %v2040 = vsel %vm2008, 1, 0
    %v2041 = vsel %vm2009, 1, 0
    %v2042 = vsel %vm2010, 1, 0
    %v2043 = vsel %vm2011, 1, 0
    %v2044 = vsel %vm2012, 1, 0
    %v2045 = vsel %vm2013, 1, 0
    %v2046 = vcvt.s32.f32 %v2014
    %v2047 = vcvt.s32.f32 %v2015
    %v2048 = vcvt.s32.f32 %v2016
    %v2049 = vcvt.s32.f32 %v2017
    %v2050 = vcvt.s32.f32 %v2018
    %v2051 = vcvt.s32.f32 %v2019
    %v2052 = vcvt.s32.f32 %v2020
    %v2053 = vcvt.s32.f32 %v2021
    %v2054 = vcvt.s32.f32 %v2022
    %v2055 = vcvt.s32.f32 %v2023
    %v2056 = vcvt.s32.f32 %v2024
    %v2057 = vcvt.s32.f32 %v2025
    %v2058 = vcvt.s32.f32 %v2026
    %v2059 = vcvt.s32.f32 %v2027
    %v2060 = vcvt.s32.f32 %v2028
    %v2061 = vcvt.s32.f32 %v2029
    %v2062 = vcvt.s32.f32 %v2030
    %v2063 = vcvt.s32.f32 %v2031
    %v2064 = vcvt.s32.f32 %v2032
    %v2065 = vcvt.s32.f32 %v2033
    %v2066 = vcvt.s32.f32 %v2034
    %v2067 = vcvt.s32.f32 %v2035
    %v2068 = vcvt.s32.f32 %v2036
    %v2069 = vcvt.s32.f32 %v2037
    %v2070 = vcvt.s32.f32 %v2038
    %v2071 = vcvt.s32.f32 %v2039
    %v2072 = vcvt.s32.f32 %v2040
    %v2073 = vcvt.s32.f32 %v2041
    %v2074 = vcvt.s32.f32 %v2042
    %v2075 = vcvt.s32.f32 %v2043
    %v2076 = vcvt.s32.f32 %v2044
    %v2077 = vcvt.s32.f32 %v2045
    %v2078 = vsel %vm709, %v2046, 0.0
    %2079 = vadd.xlane.f32.xlu0 %v2078
    %v2080 = vpop.xlane.xlu0 %2079
    %v2081 = vsel %vm709, %v2047, 0.0
    %2082 = vadd.xlane.f32.xlu0 %v2081
    %v2083 = vpop.xlane.xlu0 %2082
    %v2084 = vsel %vm709, %v2048, 0.0
    %2085 = vadd.xlane.f32.xlu0 %v2084
    %v2086 = vpop.xlane.xlu0 %2085
    %v2087 = vsel %vm709, %v2049, 0.0
    %2088 = vadd.xlane.f32.xlu0 %v2087
    %v2089 = vpop.xlane.xlu0 %2088
    %v2090 = vsel %vm709, %v2050, 0.0
    %2091 = vadd.xlane.f32.xlu0 %v2090
    %v2092 = vpop.xlane.xlu0 %2091
    %v2093 = vsel %vm709, %v2051, 0.0
    %2094 = vadd.xlane.f32.xlu0 %v2093
    %v2095 = vpop.xlane.xlu0 %2094
    %v2096 = vsel %vm709, %v2052, 0.0
    %2097 = vadd.xlane.f32.xlu0 %v2096
    %v2098 = vpop.xlane.xlu0 %2097
    %v2099 = vsel %vm709, %v2053, 0.0
    %2100 = vadd.xlane.f32.xlu0 %v2099
    %v2101 = vpop.xlane.xlu0 %2100
    %v2102 = vsel %vm709, %v2054, 0.0
    %2103 = vadd.xlane.f32.xlu0 %v2102
    %v2104 = vpop.xlane.xlu0 %2103
    %v2105 = vsel %vm709, %v2055, 0.0
    %2106 = vadd.xlane.f32.xlu0 %v2105
    %v2107 = vpop.xlane.xlu0 %2106
    %v2108 = vsel %vm709, %v2056, 0.0
    %2109 = vadd.xlane.f32.xlu0 %v2108
    %v2110 = vpop.xlane.xlu0 %2109
    %v2111 = vsel %vm709, %v2057, 0.0
    %2112 = vadd.xlane.f32.xlu0 %v2111
    %v2113 = vpop.xlane.xlu0 %2112
    %v2114 = vsel %vm709, %v2058, 0.0
    %2115 = vadd.xlane.f32.xlu0 %v2114
    %v2116 = vpop.xlane.xlu0 %2115
    %v2117 = vsel %vm709, %v2059, 0.0
    %2118 = vadd.xlane.f32.xlu0 %v2117
    %v2119 = vpop.xlane.xlu0 %2118
    %v2120 = vsel %vm709, %v2060, 0.0
    %2121 = vadd.xlane.f32.xlu0 %v2120
    %v2122 = vpop.xlane.xlu0 %2121
    %v2123 = vsel %vm709, %v2061, 0.0
    %2124 = vadd.xlane.f32.xlu0 %v2123
    %v2125 = vpop.xlane.xlu0 %2124
    %v2126 = vsel %vm709, %v2062, 0.0
    %2127 = vadd.xlane.f32.xlu0 %v2126
    %v2128 = vpop.xlane.xlu0 %2127
    %v2129 = vsel %vm709, %v2063, 0.0
    %2130 = vadd.xlane.f32.xlu0 %v2129
    %v2131 = vpop.xlane.xlu0 %2130
    %v2132 = vsel %vm709, %v2064, 0.0
    %2133 = vadd.xlane.f32.xlu0 %v2132
    %v2134 = vpop.xlane.xlu0 %2133
    %v2135 = vsel %vm709, %v2065, 0.0
    %2136 = vadd.xlane.f32.xlu0 %v2135
    %v2137 = vpop.xlane.xlu0 %2136
    %v2138 = vsel %vm709, %v2066, 0.0
    %2139 = vadd.xlane.f32.xlu0 %v2138
    %v2140 = vpop.xlane.xlu0 %2139
    %v2141 = vsel %vm709, %v2067, 0.0
    %2142 = vadd.xlane.f32.xlu0 %v2141
    %v2143 = vpop.xlane.xlu0 %2142
    %v2144 = vsel %vm709, %v2068, 0.0
    %2145 = vadd.xlane.f32.xlu0 %v2144
    %v2146 = vpop.xlane.xlu0 %2145
    %v2147 = vsel %vm709, %v2069, 0.0
    %2148 = vadd.xlane.f32.xlu0 %v2147
    %v2149 = vpop.xlane.xlu0 %2148
    %v2150 = vsel %vm709, %v2070, 0.0
    %2151 = vadd.xlane.f32.xlu0 %v2150
    %v2152 = vpop.xlane.xlu0 %2151
    %v2153 = vsel %vm709, %v2071, 0.0
    %2154 = vadd.xlane.f32.xlu0 %v2153
    %v2155 = vpop.xlane.xlu0 %2154
    %v2156 = vsel %vm709, %v2072, 0.0
    %2157 = vadd.xlane.f32.xlu0 %v2156
    %v2158 = vpop.xlane.xlu0 %2157
    %v2159 = vsel %vm709, %v2073, 0.0
    %2160 = vadd.xlane.f32.xlu0 %v2159
    %v2161 = vpop.xlane.xlu0 %2160
    %v2162 = vsel %vm709, %v2074, 0.0
    %2163 = vadd.xlane.f32.xlu0 %v2162
    %v2164 = vpop.xlane.xlu0 %2163
    %v2165 = vsel %vm709, %v2075, 0.0
    %2166 = vadd.xlane.f32.xlu0 %v2165
    %v2167 = vpop.xlane.xlu0 %2166
    %v2168 = vsel %vm709, %v2076, 0.0
    %2169 = vadd.xlane.f32.xlu0 %v2168
    %v2170 = vpop.xlane.xlu0 %2169
    %v2171 = vsel %vm709, %v2077, 0.0
    %2172 = vadd.xlane.f32.xlu0 %v2171
    %v2173 = vpop.xlane.xlu0 %2172
    %v2174 = vadd.f32 %v1946, %v2080
    %v2175 = vadd.f32 %v1947, %v2083
    %v2176 = vadd.f32 %v1948, %v2086
    %v2177 = vadd.f32 %v1949, %v2089
    %v2178 = vadd.f32 %v1950, %v2092
    %v2179 = vadd.f32 %v1951, %v2095
    %v2180 = vadd.f32 %v1952, %v2098
    %v2181 = vadd.f32 %v1953, %v2101
    %v2182 = vadd.f32 %v1954, %v2104
    %v2183 = vadd.f32 %v1955, %v2107
    %v2184 = vadd.f32 %v1956, %v2110
    %v2185 = vadd.f32 %v1957, %v2113
    %v2186 = vadd.f32 %v1958, %v2116
    %v2187 = vadd.f32 %v1959, %v2119
    %v2188 = vadd.f32 %v1960, %v2122
    %v2189 = vadd.f32 %v1961, %v2125
    %v2190 = vadd.f32 %v1962, %v2128
    %v2191 = vadd.f32 %v1963, %v2131
    %v2192 = vadd.f32 %v1964, %v2134
    %v2193 = vadd.f32 %v1965, %v2137
    %v2194 = vadd.f32 %v1966, %v2140
    %v2195 = vadd.f32 %v1967, %v2143
    %v2196 = vadd.f32 %v1968, %v2146
    %v2197 = vadd.f32 %v1969, %v2149
    %v2198 = vadd.f32 %v1970, %v2152
    %v2199 = vadd.f32 %v1971, %v2155
    %v2200 = vadd.f32 %v1972, %v2158
    %v2201 = vadd.f32 %v1973, %v2161
    %v2202 = vadd.f32 %v1974, %v2164
    %v2203 = vadd.f32 %v1975, %v2167
    %v2204 = vadd.f32 %v1976, %v2170
    %v2205 = vadd.f32 %v1977, %v2173
    %v2206 = vlaneseq
    %v2207 = vshrl.u32 %v2206, 7
    %v2208 = vsub.s32 7, %v2207
    %v2209 = vrot.slane %v290, %v2208
    %vm2210 = vcmp.le.f32.partialorder %v2209, %v456
    %vm2211 = vcmp.le.f32.partialorder %v2209, %v461
    %vm2212 = vcmp.le.f32.partialorder %v2209, %v466
    %vm2213 = vcmp.le.f32.partialorder %v2209, %v471
    %vm2214 = vcmp.le.f32.partialorder %v2209, %v476
    %vm2215 = vcmp.le.f32.partialorder %v2209, %v481
    %vm2216 = vcmp.le.f32.partialorder %v2209, %v486
    %vm2217 = vcmp.le.f32.partialorder %v2209, %v491
    %vm2218 = vcmp.le.f32.partialorder %v2209, %v496
    %vm2219 = vcmp.le.f32.partialorder %v2209, %v501
    %vm2220 = vcmp.le.f32.partialorder %v2209, %v506
    %vm2221 = vcmp.le.f32.partialorder %v2209, %v511
    %vm2222 = vcmp.le.f32.partialorder %v2209, %v516
    %vm2223 = vcmp.le.f32.partialorder %v2209, %v521
    %vm2224 = vcmp.le.f32.partialorder %v2209, %v526
    %vm2225 = vcmp.le.f32.partialorder %v2209, %v531
    %vm2226 = vcmp.le.f32.partialorder %v2209, %v536
    %vm2227 = vcmp.le.f32.partialorder %v2209, %v541
    %vm2228 = vcmp.le.f32.partialorder %v2209, %v546
    %vm2229 = vcmp.le.f32.partialorder %v2209, %v551
    %vm2230 = vcmp.le.f32.partialorder %v2209, %v556
    %vm2231 = vcmp.le.f32.partialorder %v2209, %v561
    %vm2232 = vcmp.le.f32.partialorder %v2209, %v566
    %vm2233 = vcmp.le.f32.partialorder %v2209, %v571
    %vm2234 = vcmp.le.f32.partialorder %v2209, %v576
    %vm2235 = vcmp.le.f32.partialorder %v2209, %v581
    %vm2236 = vcmp.le.f32.partialorder %v2209, %v586
    %vm2237 = vcmp.le.f32.partialorder %v2209, %v591
    %vm2238 = vcmp.le.f32.partialorder %v2209, %v596
    %vm2239 = vcmp.le.f32.partialorder %v2209, %v601
    %vm2240 = vcmp.le.f32.partialorder %v2209, %v606
    %vm2241 = vcmp.le.f32.partialorder %v2209, %v611
    %v2242 = vsel %vm2210, 1, 0
    %v2243 = vsel %vm2211, 1, 0
    %v2244 = vsel %vm2212, 1, 0
    %v2245 = vsel %vm2213, 1, 0
    %v2246 = vsel %vm2214, 1, 0
    %v2247 = vsel %vm2215, 1, 0
    %v2248 = vsel %vm2216, 1, 0
    %v2249 = vsel %vm2217, 1, 0
    %v2250 = vsel %vm2218, 1, 0
    %v2251 = vsel %vm2219, 1, 0
    %v2252 = vsel %vm2220, 1, 0
    %v2253 = vsel %vm2221, 1, 0
    %v2254 = vsel %vm2222, 1, 0
    %v2255 = vsel %vm2223, 1, 0
    %v2256 = vsel %vm2224, 1, 0
    %v2257 = vsel %vm2225, 1, 0
    %v2258 = vsel %vm2226, 1, 0
    %v2259 = vsel %vm2227, 1, 0
    %v2260 = vsel %vm2228, 1, 0
    %v2261 = vsel %vm2229, 1, 0
    %v2262 = vsel %vm2230, 1, 0
    %v2263 = vsel %vm2231, 1, 0
    %v2264 = vsel %vm2232, 1, 0
    %v2265 = vsel %vm2233, 1, 0
    %v2266 = vsel %vm2234, 1, 0
    %v2267 = vsel %vm2235, 1, 0
    %v2268 = vsel %vm2236, 1, 0
    %v2269 = vsel %vm2237, 1, 0
    %v2270 = vsel %vm2238, 1, 0
    %v2271 = vsel %vm2239, 1, 0
    %v2272 = vsel %vm2240, 1, 0
    %v2273 = vsel %vm2241, 1, 0
    %v2274 = vcvt.s32.f32 %v2242
    %v2275 = vcvt.s32.f32 %v2243
    %v2276 = vcvt.s32.f32 %v2244
    %v2277 = vcvt.s32.f32 %v2245
    %v2278 = vcvt.s32.f32 %v2246
    %v2279 = vcvt.s32.f32 %v2247
    %v2280 = vcvt.s32.f32 %v2248
    %v2281 = vcvt.s32.f32 %v2249
    %v2282 = vcvt.s32.f32 %v2250
    %v2283 = vcvt.s32.f32 %v2251
    %v2284 = vcvt.s32.f32 %v2252
    %v2285 = vcvt.s32.f32 %v2253
    %v2286 = vcvt.s32.f32 %v2254
    %v2287 = vcvt.s32.f32 %v2255
    %v2288 = vcvt.s32.f32 %v2256
    %v2289 = vcvt.s32.f32 %v2257
    %v2290 = vcvt.s32.f32 %v2258
    %v2291 = vcvt.s32.f32 %v2259
    %v2292 = vcvt.s32.f32 %v2260
    %v2293 = vcvt.s32.f32 %v2261
    %v2294 = vcvt.s32.f32 %v2262
    %v2295 = vcvt.s32.f32 %v2263
    %v2296 = vcvt.s32.f32 %v2264
    %v2297 = vcvt.s32.f32 %v2265
    %v2298 = vcvt.s32.f32 %v2266
    %v2299 = vcvt.s32.f32 %v2267
    %v2300 = vcvt.s32.f32 %v2268
    %v2301 = vcvt.s32.f32 %v2269
    %v2302 = vcvt.s32.f32 %v2270
    %v2303 = vcvt.s32.f32 %v2271
    %v2304 = vcvt.s32.f32 %v2272
    %v2305 = vcvt.s32.f32 %v2273
    %v2306 = vsel %vm709, %v2274, 0.0
    %2307 = vadd.xlane.f32.xlu0 %v2306
    %v2308 = vpop.xlane.xlu0 %2307
    %v2309 = vsel %vm709, %v2275, 0.0
    %2310 = vadd.xlane.f32.xlu0 %v2309
    %v2311 = vpop.xlane.xlu0 %2310
    %v2312 = vsel %vm709, %v2276, 0.0
    %2313 = vadd.xlane.f32.xlu0 %v2312
    %v2314 = vpop.xlane.xlu0 %2313
    %v2315 = vsel %vm709, %v2277, 0.0
    %2316 = vadd.xlane.f32.xlu0 %v2315
    %v2317 = vpop.xlane.xlu0 %2316
    %v2318 = vsel %vm709, %v2278, 0.0
    %2319 = vadd.xlane.f32.xlu0 %v2318
    %v2320 = vpop.xlane.xlu0 %2319
    %v2321 = vsel %vm709, %v2279, 0.0
    %2322 = vadd.xlane.f32.xlu0 %v2321
    %v2323 = vpop.xlane.xlu0 %2322
    %v2324 = vsel %vm709, %v2280, 0.0
    %2325 = vadd.xlane.f32.xlu0 %v2324
    %v2326 = vpop.xlane.xlu0 %2325
    %v2327 = vsel %vm709, %v2281, 0.0
    %2328 = vadd.xlane.f32.xlu0 %v2327
    %v2329 = vpop.xlane.xlu0 %2328
    %v2330 = vsel %vm709, %v2282, 0.0
    %2331 = vadd.xlane.f32.xlu0 %v2330
    %v2332 = vpop.xlane.xlu0 %2331
    %v2333 = vsel %vm709, %v2283, 0.0
    %2334 = vadd.xlane.f32.xlu0 %v2333
    %v2335 = vpop.xlane.xlu0 %2334
    %v2336 = vsel %vm709, %v2284, 0.0
    %2337 = vadd.xlane.f32.xlu0 %v2336
    %v2338 = vpop.xlane.xlu0 %2337
    %v2339 = vsel %vm709, %v2285, 0.0
    %2340 = vadd.xlane.f32.xlu0 %v2339
    %v2341 = vpop.xlane.xlu0 %2340
    %v2342 = vsel %vm709, %v2286, 0.0
    %2343 = vadd.xlane.f32.xlu0 %v2342
    %v2344 = vpop.xlane.xlu0 %2343
    %v2345 = vsel %vm709, %v2287, 0.0
    %2346 = vadd.xlane.f32.xlu0 %v2345
    %v2347 = vpop.xlane.xlu0 %2346
    %v2348 = vsel %vm709, %v2288, 0.0
    %2349 = vadd.xlane.f32.xlu0 %v2348
    %v2350 = vpop.xlane.xlu0 %2349
    %v2351 = vsel %vm709, %v2289, 0.0
    %2352 = vadd.xlane.f32.xlu0 %v2351
    %v2353 = vpop.xlane.xlu0 %2352
    %v2354 = vsel %vm709, %v2290, 0.0
    %2355 = vadd.xlane.f32.xlu0 %v2354
    %v2356 = vpop.xlane.xlu0 %2355
    %v2357 = vsel %vm709, %v2291, 0.0
    %2358 = vadd.xlane.f32.xlu0 %v2357
    %v2359 = vpop.xlane.xlu0 %2358
    %v2360 = vsel %vm709, %v2292, 0.0
    %2361 = vadd.xlane.f32.xlu0 %v2360
    %v2362 = vpop.xlane.xlu0 %2361
    %v2363 = vsel %vm709, %v2293, 0.0
    %2364 = vadd.xlane.f32.xlu0 %v2363
    %v2365 = vpop.xlane.xlu0 %2364
    %v2366 = vsel %vm709, %v2294, 0.0
    %2367 = vadd.xlane.f32.xlu0 %v2366
    %v2368 = vpop.xlane.xlu0 %2367
    %v2369 = vsel %vm709, %v2295, 0.0
    %2370 = vadd.xlane.f32.xlu0 %v2369
    %v2371 = vpop.xlane.xlu0 %2370
    %v2372 = vsel %vm709, %v2296, 0.0
    %2373 = vadd.xlane.f32.xlu0 %v2372
    %v2374 = vpop.xlane.xlu0 %2373
    %v2375 = vsel %vm709, %v2297, 0.0
    %2376 = vadd.xlane.f32.xlu0 %v2375
    %v2377 = vpop.xlane.xlu0 %2376
    %v2378 = vsel %vm709, %v2298, 0.0
    %2379 = vadd.xlane.f32.xlu0 %v2378
    %v2380 = vpop.xlane.xlu0 %2379
    %v2381 = vsel %vm709, %v2299, 0.0
    %2382 = vadd.xlane.f32.xlu0 %v2381
    %v2383 = vpop.xlane.xlu0 %2382
    %v2384 = vsel %vm709, %v2300, 0.0
    %2385 = vadd.xlane.f32.xlu0 %v2384
    %v2386 = vpop.xlane.xlu0 %2385
    %v2387 = vsel %vm709, %v2301, 0.0
    %2388 = vadd.xlane.f32.xlu0 %v2387
    %v2389 = vpop.xlane.xlu0 %2388
    %v2390 = vsel %vm709, %v2302, 0.0
    %2391 = vadd.xlane.f32.xlu0 %v2390
    %v2392 = vpop.xlane.xlu0 %2391
    %v2393 = vsel %vm709, %v2303, 0.0
    %2394 = vadd.xlane.f32.xlu0 %v2393
    %v2395 = vpop.xlane.xlu0 %2394
    %v2396 = vsel %vm709, %v2304, 0.0
    %2397 = vadd.xlane.f32.xlu0 %v2396
    %v2398 = vpop.xlane.xlu0 %2397
    %v2399 = vsel %vm709, %v2305, 0.0
    %2400 = vadd.xlane.f32.xlu0 %v2399
    %v2401 = vpop.xlane.xlu0 %2400
    %v2402 = vadd.f32 %v2174, %v2308
    %v2403 = vadd.f32 %v2175, %v2311
    %v2404 = vadd.f32 %v2176, %v2314
    %v2405 = vadd.f32 %v2177, %v2317
    %v2406 = vadd.f32 %v2178, %v2320
    %v2407 = vadd.f32 %v2179, %v2323
    %v2408 = vadd.f32 %v2180, %v2326
    %v2409 = vadd.f32 %v2181, %v2329
    %v2410 = vadd.f32 %v2182, %v2332
    %v2411 = vadd.f32 %v2183, %v2335
    %v2412 = vadd.f32 %v2184, %v2338
    %v2413 = vadd.f32 %v2185, %v2341
    %v2414 = vadd.f32 %v2186, %v2344
    %v2415 = vadd.f32 %v2187, %v2347
    %v2416 = vadd.f32 %v2188, %v2350
    %v2417 = vadd.f32 %v2189, %v2353
    %v2418 = vadd.f32 %v2190, %v2356
    %v2419 = vadd.f32 %v2191, %v2359
    %v2420 = vadd.f32 %v2192, %v2362
    %v2421 = vadd.f32 %v2193, %v2365
    %v2422 = vadd.f32 %v2194, %v2368
    %v2423 = vadd.f32 %v2195, %v2371
    %v2424 = vadd.f32 %v2196, %v2374
    %v2425 = vadd.f32 %v2197, %v2377
    %v2426 = vadd.f32 %v2198, %v2380
    %v2427 = vadd.f32 %v2199, %v2383
    %v2428 = vadd.f32 %v2200, %v2386
    %v2429 = vadd.f32 %v2201, %v2389
    %v2430 = vadd.f32 %v2202, %v2392
    %v2431 = vadd.f32 %v2203, %v2395
    %v2432 = vadd.f32 %v2204, %v2398
    %v2433 = vadd.f32 %v2205, %v2401
    %v2434 = vlaneseq
    %v2435 = vshrl.u32 %v2434, 7
    %v2436 = vsub.s32 0, %v2435
    %v2437 = vrot.slane %v291, %v2436
    %vm2438 = vcmp.le.f32.partialorder %v2437, %v456
    %vm2439 = vcmp.le.f32.partialorder %v2437, %v461
    %vm2440 = vcmp.le.f32.partialorder %v2437, %v466
    %vm2441 = vcmp.le.f32.partialorder %v2437, %v471
    %vm2442 = vcmp.le.f32.partialorder %v2437, %v476
    %vm2443 = vcmp.le.f32.partialorder %v2437, %v481
    %vm2444 = vcmp.le.f32.partialorder %v2437, %v486
    %vm2445 = vcmp.le.f32.partialorder %v2437, %v491
    %vm2446 = vcmp.le.f32.partialorder %v2437, %v496
    %vm2447 = vcmp.le.f32.partialorder %v2437, %v501
    %vm2448 = vcmp.le.f32.partialorder %v2437, %v506
    %vm2449 = vcmp.le.f32.partialorder %v2437, %v511
    %vm2450 = vcmp.le.f32.partialorder %v2437, %v516
    %vm2451 = vcmp.le.f32.partialorder %v2437, %v521
    %vm2452 = vcmp.le.f32.partialorder %v2437, %v526
    %vm2453 = vcmp.le.f32.partialorder %v2437, %v531
    %vm2454 = vcmp.le.f32.partialorder %v2437, %v536
    %vm2455 = vcmp.le.f32.partialorder %v2437, %v541
    %vm2456 = vcmp.le.f32.partialorder %v2437, %v546
    %vm2457 = vcmp.le.f32.partialorder %v2437, %v551
    %vm2458 = vcmp.le.f32.partialorder %v2437, %v556
    %vm2459 = vcmp.le.f32.partialorder %v2437, %v561
    %vm2460 = vcmp.le.f32.partialorder %v2437, %v566
    %vm2461 = vcmp.le.f32.partialorder %v2437, %v571
    %vm2462 = vcmp.le.f32.partialorder %v2437, %v576
    %vm2463 = vcmp.le.f32.partialorder %v2437, %v581
    %vm2464 = vcmp.le.f32.partialorder %v2437, %v586
    %vm2465 = vcmp.le.f32.partialorder %v2437, %v591
    %vm2466 = vcmp.le.f32.partialorder %v2437, %v596
    %vm2467 = vcmp.le.f32.partialorder %v2437, %v601
    %vm2468 = vcmp.le.f32.partialorder %v2437, %v606
    %vm2469 = vcmp.le.f32.partialorder %v2437, %v611
    %v2470 = vsel %vm2438, 1, 0
    %v2471 = vsel %vm2439, 1, 0
    %v2472 = vsel %vm2440, 1, 0
    %v2473 = vsel %vm2441, 1, 0
    %v2474 = vsel %vm2442, 1, 0
    %v2475 = vsel %vm2443, 1, 0
    %v2476 = vsel %vm2444, 1, 0
    %v2477 = vsel %vm2445, 1, 0
    %v2478 = vsel %vm2446, 1, 0
    %v2479 = vsel %vm2447, 1, 0
    %v2480 = vsel %vm2448, 1, 0
    %v2481 = vsel %vm2449, 1, 0
    %v2482 = vsel %vm2450, 1, 0
    %v2483 = vsel %vm2451, 1, 0
    %v2484 = vsel %vm2452, 1, 0
    %v2485 = vsel %vm2453, 1, 0
    %v2486 = vsel %vm2454, 1, 0
    %v2487 = vsel %vm2455, 1, 0
    %v2488 = vsel %vm2456, 1, 0
    %v2489 = vsel %vm2457, 1, 0
    %v2490 = vsel %vm2458, 1, 0
    %v2491 = vsel %vm2459, 1, 0
    %v2492 = vsel %vm2460, 1, 0
    %v2493 = vsel %vm2461, 1, 0
    %v2494 = vsel %vm2462, 1, 0
    %v2495 = vsel %vm2463, 1, 0
    %v2496 = vsel %vm2464, 1, 0
    %v2497 = vsel %vm2465, 1, 0
    %v2498 = vsel %vm2466, 1, 0
    %v2499 = vsel %vm2467, 1, 0
    %v2500 = vsel %vm2468, 1, 0
    %v2501 = vsel %vm2469, 1, 0
    %v2502 = vcvt.s32.f32 %v2470
    %v2503 = vcvt.s32.f32 %v2471
    %v2504 = vcvt.s32.f32 %v2472
    %v2505 = vcvt.s32.f32 %v2473
    %v2506 = vcvt.s32.f32 %v2474
    %v2507 = vcvt.s32.f32 %v2475
    %v2508 = vcvt.s32.f32 %v2476
    %v2509 = vcvt.s32.f32 %v2477
    %v2510 = vcvt.s32.f32 %v2478
    %v2511 = vcvt.s32.f32 %v2479
    %v2512 = vcvt.s32.f32 %v2480
    %v2513 = vcvt.s32.f32 %v2481
    %v2514 = vcvt.s32.f32 %v2482
    %v2515 = vcvt.s32.f32 %v2483
    %v2516 = vcvt.s32.f32 %v2484
    %v2517 = vcvt.s32.f32 %v2485
    %v2518 = vcvt.s32.f32 %v2486
    %v2519 = vcvt.s32.f32 %v2487
    %v2520 = vcvt.s32.f32 %v2488
    %v2521 = vcvt.s32.f32 %v2489
    %v2522 = vcvt.s32.f32 %v2490
    %v2523 = vcvt.s32.f32 %v2491
    %v2524 = vcvt.s32.f32 %v2492
    %v2525 = vcvt.s32.f32 %v2493
    %v2526 = vcvt.s32.f32 %v2494
    %v2527 = vcvt.s32.f32 %v2495
    %v2528 = vcvt.s32.f32 %v2496
    %v2529 = vcvt.s32.f32 %v2497
    %v2530 = vcvt.s32.f32 %v2498
    %v2531 = vcvt.s32.f32 %v2499
    %v2532 = vcvt.s32.f32 %v2500
    %v2533 = vcvt.s32.f32 %v2501
    %v2534 = vsel %vm709, %v2502, 0.0
    %2535 = vadd.xlane.f32.xlu0 %v2534
    %v2536 = vpop.xlane.xlu0 %2535
    %v2537 = vsel %vm709, %v2503, 0.0
    %2538 = vadd.xlane.f32.xlu0 %v2537
    %v2539 = vpop.xlane.xlu0 %2538
    %v2540 = vsel %vm709, %v2504, 0.0
    %2541 = vadd.xlane.f32.xlu0 %v2540
    %v2542 = vpop.xlane.xlu0 %2541
    %v2543 = vsel %vm709, %v2505, 0.0
    %2544 = vadd.xlane.f32.xlu0 %v2543
    %v2545 = vpop.xlane.xlu0 %2544
    %v2546 = vsel %vm709, %v2506, 0.0
    %2547 = vadd.xlane.f32.xlu0 %v2546
    %v2548 = vpop.xlane.xlu0 %2547
    %v2549 = vsel %vm709, %v2507, 0.0
    %2550 = vadd.xlane.f32.xlu0 %v2549
    %v2551 = vpop.xlane.xlu0 %2550
    %v2552 = vsel %vm709, %v2508, 0.0
    %2553 = vadd.xlane.f32.xlu0 %v2552
    %v2554 = vpop.xlane.xlu0 %2553
    %v2555 = vsel %vm709, %v2509, 0.0
    %2556 = vadd.xlane.f32.xlu0 %v2555
    %v2557 = vpop.xlane.xlu0 %2556
    %v2558 = vsel %vm709, %v2510, 0.0
    %2559 = vadd.xlane.f32.xlu0 %v2558
    %v2560 = vpop.xlane.xlu0 %2559
    %v2561 = vsel %vm709, %v2511, 0.0
    %2562 = vadd.xlane.f32.xlu0 %v2561
    %v2563 = vpop.xlane.xlu0 %2562
    %v2564 = vsel %vm709, %v2512, 0.0
    %2565 = vadd.xlane.f32.xlu0 %v2564
    %v2566 = vpop.xlane.xlu0 %2565
    %v2567 = vsel %vm709, %v2513, 0.0
    %2568 = vadd.xlane.f32.xlu0 %v2567
    %v2569 = vpop.xlane.xlu0 %2568
    %v2570 = vsel %vm709, %v2514, 0.0
    %2571 = vadd.xlane.f32.xlu0 %v2570
    %v2572 = vpop.xlane.xlu0 %2571
    %v2573 = vsel %vm709, %v2515, 0.0
    %2574 = vadd.xlane.f32.xlu0 %v2573
    %v2575 = vpop.xlane.xlu0 %2574
    %v2576 = vsel %vm709, %v2516, 0.0
    %2577 = vadd.xlane.f32.xlu0 %v2576
    %v2578 = vpop.xlane.xlu0 %2577
    %v2579 = vsel %vm709, %v2517, 0.0
    %2580 = vadd.xlane.f32.xlu0 %v2579
    %v2581 = vpop.xlane.xlu0 %2580
    %v2582 = vsel %vm709, %v2518, 0.0
    %2583 = vadd.xlane.f32.xlu0 %v2582
    %v2584 = vpop.xlane.xlu0 %2583
    %v2585 = vsel %vm709, %v2519, 0.0
    %2586 = vadd.xlane.f32.xlu0 %v2585
    %v2587 = vpop.xlane.xlu0 %2586
    %v2588 = vsel %vm709, %v2520, 0.0
    %2589 = vadd.xlane.f32.xlu0 %v2588
    %v2590 = vpop.xlane.xlu0 %2589
    %v2591 = vsel %vm709, %v2521, 0.0
    %2592 = vadd.xlane.f32.xlu0 %v2591
    %v2593 = vpop.xlane.xlu0 %2592
    %v2594 = vsel %vm709, %v2522, 0.0
    %2595 = vadd.xlane.f32.xlu0 %v2594
    %v2596 = vpop.xlane.xlu0 %2595
    %v2597 = vsel %vm709, %v2523, 0.0
    %2598 = vadd.xlane.f32.xlu0 %v2597
    %v2599 = vpop.xlane.xlu0 %2598
    %v2600 = vsel %vm709, %v2524, 0.0
    %2601 = vadd.xlane.f32.xlu0 %v2600
    %v2602 = vpop.xlane.xlu0 %2601
    %v2603 = vsel %vm709, %v2525, 0.0
    %2604 = vadd.xlane.f32.xlu0 %v2603
    %v2605 = vpop.xlane.xlu0 %2604
    %v2606 = vsel %vm709, %v2526, 0.0
    %2607 = vadd.xlane.f32.xlu0 %v2606
    %v2608 = vpop.xlane.xlu0 %2607
    %v2609 = vsel %vm709, %v2527, 0.0
    %2610 = vadd.xlane.f32.xlu0 %v2609
    %v2611 = vpop.xlane.xlu0 %2610
    %v2612 = vsel %vm709, %v2528, 0.0
    %2613 = vadd.xlane.f32.xlu0 %v2612
    %v2614 = vpop.xlane.xlu0 %2613
    %v2615 = vsel %vm709, %v2529, 0.0
    %2616 = vadd.xlane.f32.xlu0 %v2615
    %v2617 = vpop.xlane.xlu0 %2616
    %v2618 = vsel %vm709, %v2530, 0.0
    %2619 = vadd.xlane.f32.xlu0 %v2618
    %v2620 = vpop.xlane.xlu0 %2619
    %v2621 = vsel %vm709, %v2531, 0.0
    %2622 = vadd.xlane.f32.xlu0 %v2621
    %v2623 = vpop.xlane.xlu0 %2622
    %v2624 = vsel %vm709, %v2532, 0.0
    %2625 = vadd.xlane.f32.xlu0 %v2624
    %v2626 = vpop.xlane.xlu0 %2625
    %v2627 = vsel %vm709, %v2533, 0.0
    %2628 = vadd.xlane.f32.xlu0 %v2627
    %v2629 = vpop.xlane.xlu0 %2628
    %v2630 = vadd.f32 %v2402, %v2536
    %v2631 = vadd.f32 %v2403, %v2539
    %v2632 = vadd.f32 %v2404, %v2542
    %v2633 = vadd.f32 %v2405, %v2545
    %v2634 = vadd.f32 %v2406, %v2548
    %v2635 = vadd.f32 %v2407, %v2551
    %v2636 = vadd.f32 %v2408, %v2554
    %v2637 = vadd.f32 %v2409, %v2557
    %v2638 = vadd.f32 %v2410, %v2560
    %v2639 = vadd.f32 %v2411, %v2563
    %v2640 = vadd.f32 %v2412, %v2566
    %v2641 = vadd.f32 %v2413, %v2569
    %v2642 = vadd.f32 %v2414, %v2572
    %v2643 = vadd.f32 %v2415, %v2575
    %v2644 = vadd.f32 %v2416, %v2578
    %v2645 = vadd.f32 %v2417, %v2581
    %v2646 = vadd.f32 %v2418, %v2584
    %v2647 = vadd.f32 %v2419, %v2587
    %v2648 = vadd.f32 %v2420, %v2590
    %v2649 = vadd.f32 %v2421, %v2593
    %v2650 = vadd.f32 %v2422, %v2596
    %v2651 = vadd.f32 %v2423, %v2599
    %v2652 = vadd.f32 %v2424, %v2602
    %v2653 = vadd.f32 %v2425, %v2605
    %v2654 = vadd.f32 %v2426, %v2608
    %v2655 = vadd.f32 %v2427, %v2611
    %v2656 = vadd.f32 %v2428, %v2614
    %v2657 = vadd.f32 %v2429, %v2617
    %v2658 = vadd.f32 %v2430, %v2620
    %v2659 = vadd.f32 %v2431, %v2623
    %v2660 = vadd.f32 %v2432, %v2626
    %v2661 = vadd.f32 %v2433, %v2629
    %v2662 = vlaneseq
    %v2663 = vshrl.u32 %v2662, 7
    %v2664 = vsub.s32 1, %v2663
    %v2665 = vrot.slane %v291, %v2664
    %vm2666 = vcmp.le.f32.partialorder %v2665, %v456
    %vm2667 = vcmp.le.f32.partialorder %v2665, %v461
    %vm2668 = vcmp.le.f32.partialorder %v2665, %v466
    %vm2669 = vcmp.le.f32.partialorder %v2665, %v471
    %vm2670 = vcmp.le.f32.partialorder %v2665, %v476
    %vm2671 = vcmp.le.f32.partialorder %v2665, %v481
    %vm2672 = vcmp.le.f32.partialorder %v2665, %v486
    %vm2673 = vcmp.le.f32.partialorder %v2665, %v491
    %vm2674 = vcmp.le.f32.partialorder %v2665, %v496
    %vm2675 = vcmp.le.f32.partialorder %v2665, %v501
    %vm2676 = vcmp.le.f32.partialorder %v2665, %v506
    %vm2677 = vcmp.le.f32.partialorder %v2665, %v511
    %vm2678 = vcmp.le.f32.partialorder %v2665, %v516
    %vm2679 = vcmp.le.f32.partialorder %v2665, %v521
    %vm2680 = vcmp.le.f32.partialorder %v2665, %v526
    %vm2681 = vcmp.le.f32.partialorder %v2665, %v531
    %vm2682 = vcmp.le.f32.partialorder %v2665, %v536
    %vm2683 = vcmp.le.f32.partialorder %v2665, %v541
    %vm2684 = vcmp.le.f32.partialorder %v2665, %v546
    %vm2685 = vcmp.le.f32.partialorder %v2665, %v551
    %vm2686 = vcmp.le.f32.partialorder %v2665, %v556
    %vm2687 = vcmp.le.f32.partialorder %v2665, %v561
    %vm2688 = vcmp.le.f32.partialorder %v2665, %v566
    %vm2689 = vcmp.le.f32.partialorder %v2665, %v571
    %vm2690 = vcmp.le.f32.partialorder %v2665, %v576
    %vm2691 = vcmp.le.f32.partialorder %v2665, %v581
    %vm2692 = vcmp.le.f32.partialorder %v2665, %v586
    %vm2693 = vcmp.le.f32.partialorder %v2665, %v591
    %vm2694 = vcmp.le.f32.partialorder %v2665, %v596
    %vm2695 = vcmp.le.f32.partialorder %v2665, %v601
    %vm2696 = vcmp.le.f32.partialorder %v2665, %v606
    %vm2697 = vcmp.le.f32.partialorder %v2665, %v611
    %v2698 = vsel %vm2666, 1, 0
    %v2699 = vsel %vm2667, 1, 0
    %v2700 = vsel %vm2668, 1, 0
    %v2701 = vsel %vm2669, 1, 0
    %v2702 = vsel %vm2670, 1, 0
    %v2703 = vsel %vm2671, 1, 0
    %v2704 = vsel %vm2672, 1, 0
    %v2705 = vsel %vm2673, 1, 0
    %v2706 = vsel %vm2674, 1, 0
    %v2707 = vsel %vm2675, 1, 0
    %v2708 = vsel %vm2676, 1, 0
    %v2709 = vsel %vm2677, 1, 0
    %v2710 = vsel %vm2678, 1, 0
    %v2711 = vsel %vm2679, 1, 0
    %v2712 = vsel %vm2680, 1, 0
    %v2713 = vsel %vm2681, 1, 0
    %v2714 = vsel %vm2682, 1, 0
    %v2715 = vsel %vm2683, 1, 0
    %v2716 = vsel %vm2684, 1, 0
    %v2717 = vsel %vm2685, 1, 0
    %v2718 = vsel %vm2686, 1, 0
    %v2719 = vsel %vm2687, 1, 0
    %v2720 = vsel %vm2688, 1, 0
    %v2721 = vsel %vm2689, 1, 0
    %v2722 = vsel %vm2690, 1, 0
    %v2723 = vsel %vm2691, 1, 0
    %v2724 = vsel %vm2692, 1, 0
    %v2725 = vsel %vm2693, 1, 0
    %v2726 = vsel %vm2694, 1, 0
    %v2727 = vsel %vm2695, 1, 0
    %v2728 = vsel %vm2696, 1, 0
    %v2729 = vsel %vm2697, 1, 0
    %v2730 = vcvt.s32.f32 %v2698
    %v2731 = vcvt.s32.f32 %v2699
    %v2732 = vcvt.s32.f32 %v2700
    %v2733 = vcvt.s32.f32 %v2701
    %v2734 = vcvt.s32.f32 %v2702
    %v2735 = vcvt.s32.f32 %v2703
    %v2736 = vcvt.s32.f32 %v2704
    %v2737 = vcvt.s32.f32 %v2705
    %v2738 = vcvt.s32.f32 %v2706
    %v2739 = vcvt.s32.f32 %v2707
    %v2740 = vcvt.s32.f32 %v2708
    %v2741 = vcvt.s32.f32 %v2709
    %v2742 = vcvt.s32.f32 %v2710
    %v2743 = vcvt.s32.f32 %v2711
    %v2744 = vcvt.s32.f32 %v2712
    %v2745 = vcvt.s32.f32 %v2713
    %v2746 = vcvt.s32.f32 %v2714
    %v2747 = vcvt.s32.f32 %v2715
    %v2748 = vcvt.s32.f32 %v2716
    %v2749 = vcvt.s32.f32 %v2717
    %v2750 = vcvt.s32.f32 %v2718
    %v2751 = vcvt.s32.f32 %v2719
    %v2752 = vcvt.s32.f32 %v2720
    %v2753 = vcvt.s32.f32 %v2721
    %v2754 = vcvt.s32.f32 %v2722
    %v2755 = vcvt.s32.f32 %v2723
    %v2756 = vcvt.s32.f32 %v2724
    %v2757 = vcvt.s32.f32 %v2725
    %v2758 = vcvt.s32.f32 %v2726
    %v2759 = vcvt.s32.f32 %v2727
    %v2760 = vcvt.s32.f32 %v2728
    %v2761 = vcvt.s32.f32 %v2729
    %v2762 = vsel %vm709, %v2730, 0.0
    %2763 = vadd.xlane.f32.xlu0 %v2762
    %v2764 = vpop.xlane.xlu0 %2763
    %v2765 = vsel %vm709, %v2731, 0.0
    %2766 = vadd.xlane.f32.xlu0 %v2765
    %v2767 = vpop.xlane.xlu0 %2766
    %v2768 = vsel %vm709, %v2732, 0.0
    %2769 = vadd.xlane.f32.xlu0 %v2768
    %v2770 = vpop.xlane.xlu0 %2769
    %v2771 = vsel %vm709, %v2733, 0.0
    %2772 = vadd.xlane.f32.xlu0 %v2771
    %v2773 = vpop.xlane.xlu0 %2772
    %v2774 = vsel %vm709, %v2734, 0.0
    %2775 = vadd.xlane.f32.xlu0 %v2774
    %v2776 = vpop.xlane.xlu0 %2775
    %v2777 = vsel %vm709, %v2735, 0.0
    %2778 = vadd.xlane.f32.xlu0 %v2777
    %v2779 = vpop.xlane.xlu0 %2778
    %v2780 = vsel %vm709, %v2736, 0.0
    %2781 = vadd.xlane.f32.xlu0 %v2780
    %v2782 = vpop.xlane.xlu0 %2781
    %v2783 = vsel %vm709, %v2737, 0.0
    %2784 = vadd.xlane.f32.xlu0 %v2783
    %v2785 = vpop.xlane.xlu0 %2784
    %v2786 = vsel %vm709, %v2738, 0.0
    %2787 = vadd.xlane.f32.xlu0 %v2786
    %v2788 = vpop.xlane.xlu0 %2787
    %v2789 = vsel %vm709, %v2739, 0.0
    %2790 = vadd.xlane.f32.xlu0 %v2789
    %v2791 = vpop.xlane.xlu0 %2790
    %v2792 = vsel %vm709, %v2740, 0.0
    %2793 = vadd.xlane.f32.xlu0 %v2792
    %v2794 = vpop.xlane.xlu0 %2793
    %v2795 = vsel %vm709, %v2741, 0.0
    %2796 = vadd.xlane.f32.xlu0 %v2795
    %v2797 = vpop.xlane.xlu0 %2796
    %v2798 = vsel %vm709, %v2742, 0.0
    %2799 = vadd.xlane.f32.xlu0 %v2798
    %v2800 = vpop.xlane.xlu0 %2799
    %v2801 = vsel %vm709, %v2743, 0.0
    %2802 = vadd.xlane.f32.xlu0 %v2801
    %v2803 = vpop.xlane.xlu0 %2802
    %v2804 = vsel %vm709, %v2744, 0.0
    %2805 = vadd.xlane.f32.xlu0 %v2804
    %v2806 = vpop.xlane.xlu0 %2805
    %v2807 = vsel %vm709, %v2745, 0.0
    %2808 = vadd.xlane.f32.xlu0 %v2807
    %v2809 = vpop.xlane.xlu0 %2808
    %v2810 = vsel %vm709, %v2746, 0.0
    %2811 = vadd.xlane.f32.xlu0 %v2810
    %v2812 = vpop.xlane.xlu0 %2811
    %v2813 = vsel %vm709, %v2747, 0.0
    %2814 = vadd.xlane.f32.xlu0 %v2813
    %v2815 = vpop.xlane.xlu0 %2814
    %v2816 = vsel %vm709, %v2748, 0.0
    %2817 = vadd.xlane.f32.xlu0 %v2816
    %v2818 = vpop.xlane.xlu0 %2817
    %v2819 = vsel %vm709, %v2749, 0.0
    %2820 = vadd.xlane.f32.xlu0 %v2819
    %v2821 = vpop.xlane.xlu0 %2820
    %v2822 = vsel %vm709, %v2750, 0.0
    %2823 = vadd.xlane.f32.xlu0 %v2822
    %v2824 = vpop.xlane.xlu0 %2823
    %v2825 = vsel %vm709, %v2751, 0.0
    %2826 = vadd.xlane.f32.xlu0 %v2825
    %v2827 = vpop.xlane.xlu0 %2826
    %v2828 = vsel %vm709, %v2752, 0.0
    %2829 = vadd.xlane.f32.xlu0 %v2828
    %v2830 = vpop.xlane.xlu0 %2829
    %v2831 = vsel %vm709, %v2753, 0.0
    %2832 = vadd.xlane.f32.xlu0 %v2831
    %v2833 = vpop.xlane.xlu0 %2832
    %v2834 = vsel %vm709, %v2754, 0.0
    %2835 = vadd.xlane.f32.xlu0 %v2834
    %v2836 = vpop.xlane.xlu0 %2835
    %v2837 = vsel %vm709, %v2755, 0.0
    %2838 = vadd.xlane.f32.xlu0 %v2837
    %v2839 = vpop.xlane.xlu0 %2838
    %v2840 = vsel %vm709, %v2756, 0.0
    %2841 = vadd.xlane.f32.xlu0 %v2840
    %v2842 = vpop.xlane.xlu0 %2841
    %v2843 = vsel %vm709, %v2757, 0.0
    %2844 = vadd.xlane.f32.xlu0 %v2843
    %v2845 = vpop.xlane.xlu0 %2844
    %v2846 = vsel %vm709, %v2758, 0.0
    %2847 = vadd.xlane.f32.xlu0 %v2846
    %v2848 = vpop.xlane.xlu0 %2847
    %v2849 = vsel %vm709, %v2759, 0.0
    %2850 = vadd.xlane.f32.xlu0 %v2849
    %v2851 = vpop.xlane.xlu0 %2850
    %v2852 = vsel %vm709, %v2760, 0.0
    %2853 = vadd.xlane.f32.xlu0 %v2852
    %v2854 = vpop.xlane.xlu0 %2853
    %v2855 = vsel %vm709, %v2761, 0.0
    %2856 = vadd.xlane.f32.xlu0 %v2855
    %v2857 = vpop.xlane.xlu0 %2856
    %v2858 = vadd.f32 %v2630, %v2764
    %v2859 = vadd.f32 %v2631, %v2767
    %v2860 = vadd.f32 %v2632, %v2770
    %v2861 = vadd.f32 %v2633, %v2773
    %v2862 = vadd.f32 %v2634, %v2776
    %v2863 = vadd.f32 %v2635, %v2779
    %v2864 = vadd.f32 %v2636, %v2782
    %v2865 = vadd.f32 %v2637, %v2785
    %v2866 = vadd.f32 %v2638, %v2788
    %v2867 = vadd.f32 %v2639, %v2791
    %v2868 = vadd.f32 %v2640, %v2794
    %v2869 = vadd.f32 %v2641, %v2797
    %v2870 = vadd.f32 %v2642, %v2800
    %v2871 = vadd.f32 %v2643, %v2803
    %v2872 = vadd.f32 %v2644, %v2806
    %v2873 = vadd.f32 %v2645, %v2809
    %v2874 = vadd.f32 %v2646, %v2812
    %v2875 = vadd.f32 %v2647, %v2815
    %v2876 = vadd.f32 %v2648, %v2818
    %v2877 = vadd.f32 %v2649, %v2821
    %v2878 = vadd.f32 %v2650, %v2824
    %v2879 = vadd.f32 %v2651, %v2827
    %v2880 = vadd.f32 %v2652, %v2830
    %v2881 = vadd.f32 %v2653, %v2833
    %v2882 = vadd.f32 %v2654, %v2836
    %v2883 = vadd.f32 %v2655, %v2839
    %v2884 = vadd.f32 %v2656, %v2842
    %v2885 = vadd.f32 %v2657, %v2845
    %v2886 = vadd.f32 %v2658, %v2848
    %v2887 = vadd.f32 %v2659, %v2851
    %v2888 = vadd.f32 %v2660, %v2854
    %v2889 = vadd.f32 %v2661, %v2857
    %v2890 = vlaneseq
    %v2891 = vshrl.u32 %v2890, 7
    %v2892 = vsub.s32 2, %v2891
    %v2893 = vrot.slane %v291, %v2892
    %vm2894 = vcmp.le.f32.partialorder %v2893, %v456
    %vm2895 = vcmp.le.f32.partialorder %v2893, %v461
    %vm2896 = vcmp.le.f32.partialorder %v2893, %v466
    %vm2897 = vcmp.le.f32.partialorder %v2893, %v471
    %vm2898 = vcmp.le.f32.partialorder %v2893, %v476
    %vm2899 = vcmp.le.f32.partialorder %v2893, %v481
    %vm2900 = vcmp.le.f32.partialorder %v2893, %v486
    %vm2901 = vcmp.le.f32.partialorder %v2893, %v491
    %vm2902 = vcmp.le.f32.partialorder %v2893, %v496
    %vm2903 = vcmp.le.f32.partialorder %v2893, %v501
    %vm2904 = vcmp.le.f32.partialorder %v2893, %v506
    %vm2905 = vcmp.le.f32.partialorder %v2893, %v511
    %vm2906 = vcmp.le.f32.partialorder %v2893, %v516
    %vm2907 = vcmp.le.f32.partialorder %v2893, %v521
    %vm2908 = vcmp.le.f32.partialorder %v2893, %v526
    %vm2909 = vcmp.le.f32.partialorder %v2893, %v531
    %vm2910 = vcmp.le.f32.partialorder %v2893, %v536
    %vm2911 = vcmp.le.f32.partialorder %v2893, %v541
    %vm2912 = vcmp.le.f32.partialorder %v2893, %v546
    %vm2913 = vcmp.le.f32.partialorder %v2893, %v551
    %vm2914 = vcmp.le.f32.partialorder %v2893, %v556
    %vm2915 = vcmp.le.f32.partialorder %v2893, %v561
    %vm2916 = vcmp.le.f32.partialorder %v2893, %v566
    %vm2917 = vcmp.le.f32.partialorder %v2893, %v571
    %vm2918 = vcmp.le.f32.partialorder %v2893, %v576
    %vm2919 = vcmp.le.f32.partialorder %v2893, %v581
    %vm2920 = vcmp.le.f32.partialorder %v2893, %v586
    %vm2921 = vcmp.le.f32.partialorder %v2893, %v591
    %vm2922 = vcmp.le.f32.partialorder %v2893, %v596
    %vm2923 = vcmp.le.f32.partialorder %v2893, %v601
    %vm2924 = vcmp.le.f32.partialorder %v2893, %v606
    %vm2925 = vcmp.le.f32.partialorder %v2893, %v611
    %v2926 = vsel %vm2894, 1, 0
    %v2927 = vsel %vm2895, 1, 0
    %v2928 = vsel %vm2896, 1, 0
    %v2929 = vsel %vm2897, 1, 0
    %v2930 = vsel %vm2898, 1, 0
    %v2931 = vsel %vm2899, 1, 0
    %v2932 = vsel %vm2900, 1, 0
    %v2933 = vsel %vm2901, 1, 0
    %v2934 = vsel %vm2902, 1, 0
    %v2935 = vsel %vm2903, 1, 0
    %v2936 = vsel %vm2904, 1, 0
    %v2937 = vsel %vm2905, 1, 0
    %v2938 = vsel %vm2906, 1, 0
    %v2939 = vsel %vm2907, 1, 0
    %v2940 = vsel %vm2908, 1, 0
    %v2941 = vsel %vm2909, 1, 0
    %v2942 = vsel %vm2910, 1, 0
    %v2943 = vsel %vm2911, 1, 0
    %v2944 = vsel %vm2912, 1, 0
    %v2945 = vsel %vm2913, 1, 0
    %v2946 = vsel %vm2914, 1, 0
    %v2947 = vsel %vm2915, 1, 0
    %v2948 = vsel %vm2916, 1, 0
    %v2949 = vsel %vm2917, 1, 0
    %v2950 = vsel %vm2918, 1, 0
    %v2951 = vsel %vm2919, 1, 0
    %v2952 = vsel %vm2920, 1, 0
    %v2953 = vsel %vm2921, 1, 0
    %v2954 = vsel %vm2922, 1, 0
    %v2955 = vsel %vm2923, 1, 0
    %v2956 = vsel %vm2924, 1, 0
    %v2957 = vsel %vm2925, 1, 0
    %v2958 = vcvt.s32.f32 %v2926
    %v2959 = vcvt.s32.f32 %v2927
    %v2960 = vcvt.s32.f32 %v2928
    %v2961 = vcvt.s32.f32 %v2929
    %v2962 = vcvt.s32.f32 %v2930
    %v2963 = vcvt.s32.f32 %v2931
    %v2964 = vcvt.s32.f32 %v2932
    %v2965 = vcvt.s32.f32 %v2933
    %v2966 = vcvt.s32.f32 %v2934
    %v2967 = vcvt.s32.f32 %v2935
    %v2968 = vcvt.s32.f32 %v2936
    %v2969 = vcvt.s32.f32 %v2937
    %v2970 = vcvt.s32.f32 %v2938
    %v2971 = vcvt.s32.f32 %v2939
    %v2972 = vcvt.s32.f32 %v2940
    %v2973 = vcvt.s32.f32 %v2941
    %v2974 = vcvt.s32.f32 %v2942
    %v2975 = vcvt.s32.f32 %v2943
    %v2976 = vcvt.s32.f32 %v2944
    %v2977 = vcvt.s32.f32 %v2945
    %v2978 = vcvt.s32.f32 %v2946
    %v2979 = vcvt.s32.f32 %v2947
    %v2980 = vcvt.s32.f32 %v2948
    %v2981 = vcvt.s32.f32 %v2949
    %v2982 = vcvt.s32.f32 %v2950
    %v2983 = vcvt.s32.f32 %v2951
    %v2984 = vcvt.s32.f32 %v2952
    %v2985 = vcvt.s32.f32 %v2953
    %v2986 = vcvt.s32.f32 %v2954
    %v2987 = vcvt.s32.f32 %v2955
    %v2988 = vcvt.s32.f32 %v2956
    %v2989 = vcvt.s32.f32 %v2957
    %v2990 = vsel %vm709, %v2958, 0.0
    %2991 = vadd.xlane.f32.xlu0 %v2990
    %v2992 = vpop.xlane.xlu0 %2991
    %v2993 = vsel %vm709, %v2959, 0.0
    %2994 = vadd.xlane.f32.xlu0 %v2993
    %v2995 = vpop.xlane.xlu0 %2994
    %v2996 = vsel %vm709, %v2960, 0.0
    %2997 = vadd.xlane.f32.xlu0 %v2996
    %v2998 = vpop.xlane.xlu0 %2997
    %v2999 = vsel %vm709, %v2961, 0.0
    %3000 = vadd.xlane.f32.xlu0 %v2999
    %v3001 = vpop.xlane.xlu0 %3000
    %v3002 = vsel %vm709, %v2962, 0.0
    %3003 = vadd.xlane.f32.xlu0 %v3002
    %v3004 = vpop.xlane.xlu0 %3003
    %v3005 = vsel %vm709, %v2963, 0.0
    %3006 = vadd.xlane.f32.xlu0 %v3005
    %v3007 = vpop.xlane.xlu0 %3006
    %v3008 = vsel %vm709, %v2964, 0.0
    %3009 = vadd.xlane.f32.xlu0 %v3008
    %v3010 = vpop.xlane.xlu0 %3009
    %v3011 = vsel %vm709, %v2965, 0.0
    %3012 = vadd.xlane.f32.xlu0 %v3011
    %v3013 = vpop.xlane.xlu0 %3012
    %v3014 = vsel %vm709, %v2966, 0.0
    %3015 = vadd.xlane.f32.xlu0 %v3014
    %v3016 = vpop.xlane.xlu0 %3015
    %v3017 = vsel %vm709, %v2967, 0.0
    %3018 = vadd.xlane.f32.xlu0 %v3017
    %v3019 = vpop.xlane.xlu0 %3018
    %v3020 = vsel %vm709, %v2968, 0.0
    %3021 = vadd.xlane.f32.xlu0 %v3020
    %v3022 = vpop.xlane.xlu0 %3021
    %v3023 = vsel %vm709, %v2969, 0.0
    %3024 = vadd.xlane.f32.xlu0 %v3023
    %v3025 = vpop.xlane.xlu0 %3024
    %v3026 = vsel %vm709, %v2970, 0.0
    %3027 = vadd.xlane.f32.xlu0 %v3026
    %v3028 = vpop.xlane.xlu0 %3027
    %v3029 = vsel %vm709, %v2971, 0.0
    %3030 = vadd.xlane.f32.xlu0 %v3029
    %v3031 = vpop.xlane.xlu0 %3030
    %v3032 = vsel %vm709, %v2972, 0.0
    %3033 = vadd.xlane.f32.xlu0 %v3032
    %v3034 = vpop.xlane.xlu0 %3033
    %v3035 = vsel %vm709, %v2973, 0.0
    %3036 = vadd.xlane.f32.xlu0 %v3035
    %v3037 = vpop.xlane.xlu0 %3036
    %v3038 = vsel %vm709, %v2974, 0.0
    %3039 = vadd.xlane.f32.xlu0 %v3038
    %v3040 = vpop.xlane.xlu0 %3039
    %v3041 = vsel %vm709, %v2975, 0.0
    %3042 = vadd.xlane.f32.xlu0 %v3041
    %v3043 = vpop.xlane.xlu0 %3042
    %v3044 = vsel %vm709, %v2976, 0.0
    %3045 = vadd.xlane.f32.xlu0 %v3044
    %v3046 = vpop.xlane.xlu0 %3045
    %v3047 = vsel %vm709, %v2977, 0.0
    %3048 = vadd.xlane.f32.xlu0 %v3047
    %v3049 = vpop.xlane.xlu0 %3048
    %v3050 = vsel %vm709, %v2978, 0.0
    %3051 = vadd.xlane.f32.xlu0 %v3050
    %v3052 = vpop.xlane.xlu0 %3051
    %v3053 = vsel %vm709, %v2979, 0.0
    %3054 = vadd.xlane.f32.xlu0 %v3053
    %v3055 = vpop.xlane.xlu0 %3054
    %v3056 = vsel %vm709, %v2980, 0.0
    %3057 = vadd.xlane.f32.xlu0 %v3056
    %v3058 = vpop.xlane.xlu0 %3057
    %v3059 = vsel %vm709, %v2981, 0.0
    %3060 = vadd.xlane.f32.xlu0 %v3059
    %v3061 = vpop.xlane.xlu0 %3060
    %v3062 = vsel %vm709, %v2982, 0.0
    %3063 = vadd.xlane.f32.xlu0 %v3062
    %v3064 = vpop.xlane.xlu0 %3063
    %v3065 = vsel %vm709, %v2983, 0.0
    %3066 = vadd.xlane.f32.xlu0 %v3065
    %v3067 = vpop.xlane.xlu0 %3066
    %v3068 = vsel %vm709, %v2984, 0.0
    %3069 = vadd.xlane.f32.xlu0 %v3068
    %v3070 = vpop.xlane.xlu0 %3069
    %v3071 = vsel %vm709, %v2985, 0.0
    %3072 = vadd.xlane.f32.xlu0 %v3071
    %v3073 = vpop.xlane.xlu0 %3072
    %v3074 = vsel %vm709, %v2986, 0.0
    %3075 = vadd.xlane.f32.xlu0 %v3074
    %v3076 = vpop.xlane.xlu0 %3075
    %v3077 = vsel %vm709, %v2987, 0.0
    %3078 = vadd.xlane.f32.xlu0 %v3077
    %v3079 = vpop.xlane.xlu0 %3078
    %v3080 = vsel %vm709, %v2988, 0.0
    %3081 = vadd.xlane.f32.xlu0 %v3080
    %v3082 = vpop.xlane.xlu0 %3081
    %v3083 = vsel %vm709, %v2989, 0.0
    %3084 = vadd.xlane.f32.xlu0 %v3083
    %v3085 = vpop.xlane.xlu0 %3084
    %v3086 = vadd.f32 %v2858, %v2992
    %v3087 = vadd.f32 %v2859, %v2995
    %v3088 = vadd.f32 %v2860, %v2998
    %v3089 = vadd.f32 %v2861, %v3001
    %v3090 = vadd.f32 %v2862, %v3004
    %v3091 = vadd.f32 %v2863, %v3007
    %v3092 = vadd.f32 %v2864, %v3010
    %v3093 = vadd.f32 %v2865, %v3013
    %v3094 = vadd.f32 %v2866, %v3016
    %v3095 = vadd.f32 %v2867, %v3019
    %v3096 = vadd.f32 %v2868, %v3022
    %v3097 = vadd.f32 %v2869, %v3025
    %v3098 = vadd.f32 %v2870, %v3028
    %v3099 = vadd.f32 %v2871, %v3031
    %v3100 = vadd.f32 %v2872, %v3034
    %v3101 = vadd.f32 %v2873, %v3037
    %v3102 = vadd.f32 %v2874, %v3040
    %v3103 = vadd.f32 %v2875, %v3043
    %v3104 = vadd.f32 %v2876, %v3046
    %v3105 = vadd.f32 %v2877, %v3049
    %v3106 = vadd.f32 %v2878, %v3052
    %v3107 = vadd.f32 %v2879, %v3055
    %v3108 = vadd.f32 %v2880, %v3058
    %v3109 = vadd.f32 %v2881, %v3061
    %v3110 = vadd.f32 %v2882, %v3064
    %v3111 = vadd.f32 %v2883, %v3067
    %v3112 = vadd.f32 %v2884, %v3070
    %v3113 = vadd.f32 %v2885, %v3073
    %v3114 = vadd.f32 %v2886, %v3076
    %v3115 = vadd.f32 %v2887, %v3079
    %v3116 = vadd.f32 %v2888, %v3082
    %v3117 = vadd.f32 %v2889, %v3085
    %v3118 = vlaneseq
    %v3119 = vshrl.u32 %v3118, 7
    %v3120 = vsub.s32 3, %v3119
    %v3121 = vrot.slane %v291, %v3120
    %vm3122 = vcmp.le.f32.partialorder %v3121, %v456
    %vm3123 = vcmp.le.f32.partialorder %v3121, %v461
    %vm3124 = vcmp.le.f32.partialorder %v3121, %v466
    %vm3125 = vcmp.le.f32.partialorder %v3121, %v471
    %vm3126 = vcmp.le.f32.partialorder %v3121, %v476
    %vm3127 = vcmp.le.f32.partialorder %v3121, %v481
    %vm3128 = vcmp.le.f32.partialorder %v3121, %v486
    %vm3129 = vcmp.le.f32.partialorder %v3121, %v491
    %vm3130 = vcmp.le.f32.partialorder %v3121, %v496
    %vm3131 = vcmp.le.f32.partialorder %v3121, %v501
    %vm3132 = vcmp.le.f32.partialorder %v3121, %v506
    %vm3133 = vcmp.le.f32.partialorder %v3121, %v511
    %vm3134 = vcmp.le.f32.partialorder %v3121, %v516
    %vm3135 = vcmp.le.f32.partialorder %v3121, %v521
    %vm3136 = vcmp.le.f32.partialorder %v3121, %v526
    %vm3137 = vcmp.le.f32.partialorder %v3121, %v531
    %vm3138 = vcmp.le.f32.partialorder %v3121, %v536
    %vm3139 = vcmp.le.f32.partialorder %v3121, %v541
    %vm3140 = vcmp.le.f32.partialorder %v3121, %v546
    %vm3141 = vcmp.le.f32.partialorder %v3121, %v551
    %vm3142 = vcmp.le.f32.partialorder %v3121, %v556
    %vm3143 = vcmp.le.f32.partialorder %v3121, %v561
    %vm3144 = vcmp.le.f32.partialorder %v3121, %v566
    %vm3145 = vcmp.le.f32.partialorder %v3121, %v571
    %vm3146 = vcmp.le.f32.partialorder %v3121, %v576
    %vm3147 = vcmp.le.f32.partialorder %v3121, %v581
    %vm3148 = vcmp.le.f32.partialorder %v3121, %v586
    %vm3149 = vcmp.le.f32.partialorder %v3121, %v591
    %vm3150 = vcmp.le.f32.partialorder %v3121, %v596
    %vm3151 = vcmp.le.f32.partialorder %v3121, %v601
    %vm3152 = vcmp.le.f32.partialorder %v3121, %v606
    %vm3153 = vcmp.le.f32.partialorder %v3121, %v611
    %v3154 = vsel %vm3122, 1, 0
    %v3155 = vsel %vm3123, 1, 0
    %v3156 = vsel %vm3124, 1, 0
    %v3157 = vsel %vm3125, 1, 0
    %v3158 = vsel %vm3126, 1, 0
    %v3159 = vsel %vm3127, 1, 0
    %v3160 = vsel %vm3128, 1, 0
    %v3161 = vsel %vm3129, 1, 0
    %v3162 = vsel %vm3130, 1, 0
    %v3163 = vsel %vm3131, 1, 0
    %v3164 = vsel %vm3132, 1, 0
    %v3165 = vsel %vm3133, 1, 0
    %v3166 = vsel %vm3134, 1, 0
    %v3167 = vsel %vm3135, 1, 0
    %v3168 = vsel %vm3136, 1, 0
    %v3169 = vsel %vm3137, 1, 0
    %v3170 = vsel %vm3138, 1, 0
    %v3171 = vsel %vm3139, 1, 0
    %v3172 = vsel %vm3140, 1, 0
    %v3173 = vsel %vm3141, 1, 0
    %v3174 = vsel %vm3142, 1, 0
    %v3175 = vsel %vm3143, 1, 0
    %v3176 = vsel %vm3144, 1, 0
    %v3177 = vsel %vm3145, 1, 0
    %v3178 = vsel %vm3146, 1, 0
    %v3179 = vsel %vm3147, 1, 0
    %v3180 = vsel %vm3148, 1, 0
    %v3181 = vsel %vm3149, 1, 0
    %v3182 = vsel %vm3150, 1, 0
    %v3183 = vsel %vm3151, 1, 0
    %v3184 = vsel %vm3152, 1, 0
    %v3185 = vsel %vm3153, 1, 0
    %v3186 = vcvt.s32.f32 %v3154
    %v3187 = vcvt.s32.f32 %v3155
    %v3188 = vcvt.s32.f32 %v3156
    %v3189 = vcvt.s32.f32 %v3157
    %v3190 = vcvt.s32.f32 %v3158
    %v3191 = vcvt.s32.f32 %v3159
    %v3192 = vcvt.s32.f32 %v3160
    %v3193 = vcvt.s32.f32 %v3161
    %v3194 = vcvt.s32.f32 %v3162
    %v3195 = vcvt.s32.f32 %v3163
    %v3196 = vcvt.s32.f32 %v3164
    %v3197 = vcvt.s32.f32 %v3165
    %v3198 = vcvt.s32.f32 %v3166
    %v3199 = vcvt.s32.f32 %v3167
    %v3200 = vcvt.s32.f32 %v3168
    %v3201 = vcvt.s32.f32 %v3169
    %v3202 = vcvt.s32.f32 %v3170
    %v3203 = vcvt.s32.f32 %v3171
    %v3204 = vcvt.s32.f32 %v3172
    %v3205 = vcvt.s32.f32 %v3173
    %v3206 = vcvt.s32.f32 %v3174
    %v3207 = vcvt.s32.f32 %v3175
    %v3208 = vcvt.s32.f32 %v3176
    %v3209 = vcvt.s32.f32 %v3177
    %v3210 = vcvt.s32.f32 %v3178
    %v3211 = vcvt.s32.f32 %v3179
    %v3212 = vcvt.s32.f32 %v3180
    %v3213 = vcvt.s32.f32 %v3181
    %v3214 = vcvt.s32.f32 %v3182
    %v3215 = vcvt.s32.f32 %v3183
    %v3216 = vcvt.s32.f32 %v3184
    %v3217 = vcvt.s32.f32 %v3185
    %v3218 = vsel %vm709, %v3186, 0.0
    %3219 = vadd.xlane.f32.xlu0 %v3218
    %v3220 = vpop.xlane.xlu0 %3219
    %v3221 = vsel %vm709, %v3187, 0.0
    %3222 = vadd.xlane.f32.xlu0 %v3221
    %v3223 = vpop.xlane.xlu0 %3222
    %v3224 = vsel %vm709, %v3188, 0.0
    %3225 = vadd.xlane.f32.xlu0 %v3224
    %v3226 = vpop.xlane.xlu0 %3225
    %v3227 = vsel %vm709, %v3189, 0.0
    %3228 = vadd.xlane.f32.xlu0 %v3227
    %v3229 = vpop.xlane.xlu0 %3228
    %v3230 = vsel %vm709, %v3190, 0.0
    %3231 = vadd.xlane.f32.xlu0 %v3230
    %v3232 = vpop.xlane.xlu0 %3231
    %v3233 = vsel %vm709, %v3191, 0.0
    %3234 = vadd.xlane.f32.xlu0 %v3233
    %v3235 = vpop.xlane.xlu0 %3234
    %v3236 = vsel %vm709, %v3192, 0.0
    %3237 = vadd.xlane.f32.xlu0 %v3236
    %v3238 = vpop.xlane.xlu0 %3237
    %v3239 = vsel %vm709, %v3193, 0.0
    %3240 = vadd.xlane.f32.xlu0 %v3239
    %v3241 = vpop.xlane.xlu0 %3240
    %v3242 = vsel %vm709, %v3194, 0.0
    %3243 = vadd.xlane.f32.xlu0 %v3242
    %v3244 = vpop.xlane.xlu0 %3243
    %v3245 = vsel %vm709, %v3195, 0.0
    %3246 = vadd.xlane.f32.xlu0 %v3245
    %v3247 = vpop.xlane.xlu0 %3246
    %v3248 = vsel %vm709, %v3196, 0.0
    %3249 = vadd.xlane.f32.xlu0 %v3248
    %v3250 = vpop.xlane.xlu0 %3249
    %v3251 = vsel %vm709, %v3197, 0.0
    %3252 = vadd.xlane.f32.xlu0 %v3251
    %v3253 = vpop.xlane.xlu0 %3252
    %v3254 = vsel %vm709, %v3198, 0.0
    %3255 = vadd.xlane.f32.xlu0 %v3254
    %v3256 = vpop.xlane.xlu0 %3255
    %v3257 = vsel %vm709, %v3199, 0.0
    %3258 = vadd.xlane.f32.xlu0 %v3257
    %v3259 = vpop.xlane.xlu0 %3258
    %v3260 = vsel %vm709, %v3200, 0.0
    %3261 = vadd.xlane.f32.xlu0 %v3260
    %v3262 = vpop.xlane.xlu0 %3261
    %v3263 = vsel %vm709, %v3201, 0.0
    %3264 = vadd.xlane.f32.xlu0 %v3263
    %v3265 = vpop.xlane.xlu0 %3264
    %v3266 = vsel %vm709, %v3202, 0.0
    %3267 = vadd.xlane.f32.xlu0 %v3266
    %v3268 = vpop.xlane.xlu0 %3267
    %v3269 = vsel %vm709, %v3203, 0.0
    %3270 = vadd.xlane.f32.xlu0 %v3269
    %v3271 = vpop.xlane.xlu0 %3270
    %v3272 = vsel %vm709, %v3204, 0.0
    %3273 = vadd.xlane.f32.xlu0 %v3272
    %v3274 = vpop.xlane.xlu0 %3273
    %v3275 = vsel %vm709, %v3205, 0.0
    %3276 = vadd.xlane.f32.xlu0 %v3275
    %v3277 = vpop.xlane.xlu0 %3276
    %v3278 = vsel %vm709, %v3206, 0.0
    %3279 = vadd.xlane.f32.xlu0 %v3278
    %v3280 = vpop.xlane.xlu0 %3279
    %v3281 = vsel %vm709, %v3207, 0.0
    %3282 = vadd.xlane.f32.xlu0 %v3281
    %v3283 = vpop.xlane.xlu0 %3282
    %v3284 = vsel %vm709, %v3208, 0.0
    %3285 = vadd.xlane.f32.xlu0 %v3284
    %v3286 = vpop.xlane.xlu0 %3285
    %v3287 = vsel %vm709, %v3209, 0.0
    %3288 = vadd.xlane.f32.xlu0 %v3287
    %v3289 = vpop.xlane.xlu0 %3288
    %v3290 = vsel %vm709, %v3210, 0.0
    %3291 = vadd.xlane.f32.xlu0 %v3290
    %v3292 = vpop.xlane.xlu0 %3291
    %v3293 = vsel %vm709, %v3211, 0.0
    %3294 = vadd.xlane.f32.xlu0 %v3293
    %v3295 = vpop.xlane.xlu0 %3294
    %v3296 = vsel %vm709, %v3212, 0.0
    %3297 = vadd.xlane.f32.xlu0 %v3296
    %v3298 = vpop.xlane.xlu0 %3297
    %v3299 = vsel %vm709, %v3213, 0.0
    %3300 = vadd.xlane.f32.xlu0 %v3299
    %v3301 = vpop.xlane.xlu0 %3300
    %v3302 = vsel %vm709, %v3214, 0.0
    %3303 = vadd.xlane.f32.xlu0 %v3302
    %v3304 = vpop.xlane.xlu0 %3303
    %v3305 = vsel %vm709, %v3215, 0.0
    %3306 = vadd.xlane.f32.xlu0 %v3305
    %v3307 = vpop.xlane.xlu0 %3306
    %v3308 = vsel %vm709, %v3216, 0.0
    %3309 = vadd.xlane.f32.xlu0 %v3308
    %v3310 = vpop.xlane.xlu0 %3309
    %v3311 = vsel %vm709, %v3217, 0.0
    %3312 = vadd.xlane.f32.xlu0 %v3311
    %v3313 = vpop.xlane.xlu0 %3312
    %v3314 = vadd.f32 %v3086, %v3220
    %v3315 = vadd.f32 %v3087, %v3223
    %v3316 = vadd.f32 %v3088, %v3226
    %v3317 = vadd.f32 %v3089, %v3229
    %v3318 = vadd.f32 %v3090, %v3232
    %v3319 = vadd.f32 %v3091, %v3235
    %v3320 = vadd.f32 %v3092, %v3238
    %v3321 = vadd.f32 %v3093, %v3241
    %v3322 = vadd.f32 %v3094, %v3244
    %v3323 = vadd.f32 %v3095, %v3247
    %v3324 = vadd.f32 %v3096, %v3250
    %v3325 = vadd.f32 %v3097, %v3253
    %v3326 = vadd.f32 %v3098, %v3256
    %v3327 = vadd.f32 %v3099, %v3259
    %v3328 = vadd.f32 %v3100, %v3262
    %v3329 = vadd.f32 %v3101, %v3265
    %v3330 = vadd.f32 %v3102, %v3268
    %v3331 = vadd.f32 %v3103, %v3271
    %v3332 = vadd.f32 %v3104, %v3274
    %v3333 = vadd.f32 %v3105, %v3277
    %v3334 = vadd.f32 %v3106, %v3280
    %v3335 = vadd.f32 %v3107, %v3283
    %v3336 = vadd.f32 %v3108, %v3286
    %v3337 = vadd.f32 %v3109, %v3289
    %v3338 = vadd.f32 %v3110, %v3292
    %v3339 = vadd.f32 %v3111, %v3295
    %v3340 = vadd.f32 %v3112, %v3298
    %v3341 = vadd.f32 %v3113, %v3301
    %v3342 = vadd.f32 %v3114, %v3304
    %v3343 = vadd.f32 %v3115, %v3307
    %v3344 = vadd.f32 %v3116, %v3310
    %v3345 = vadd.f32 %v3117, %v3313
    %v3346 = vlaneseq
    %v3347 = vshrl.u32 %v3346, 7
    %v3348 = vsub.s32 4, %v3347
    %v3349 = vrot.slane %v291, %v3348
    %vm3350 = vcmp.le.f32.partialorder %v3349, %v456
    %vm3351 = vcmp.le.f32.partialorder %v3349, %v461
    %vm3352 = vcmp.le.f32.partialorder %v3349, %v466
    %vm3353 = vcmp.le.f32.partialorder %v3349, %v471
    %vm3354 = vcmp.le.f32.partialorder %v3349, %v476
    %vm3355 = vcmp.le.f32.partialorder %v3349, %v481
    %vm3356 = vcmp.le.f32.partialorder %v3349, %v486
    %vm3357 = vcmp.le.f32.partialorder %v3349, %v491
    %vm3358 = vcmp.le.f32.partialorder %v3349, %v496
    %vm3359 = vcmp.le.f32.partialorder %v3349, %v501
    %vm3360 = vcmp.le.f32.partialorder %v3349, %v506
    %vm3361 = vcmp.le.f32.partialorder %v3349, %v511
    %vm3362 = vcmp.le.f32.partialorder %v3349, %v516
    %vm3363 = vcmp.le.f32.partialorder %v3349, %v521
    %vm3364 = vcmp.le.f32.partialorder %v3349, %v526
    %vm3365 = vcmp.le.f32.partialorder %v3349, %v531
    %vm3366 = vcmp.le.f32.partialorder %v3349, %v536
    %vm3367 = vcmp.le.f32.partialorder %v3349, %v541
    %vm3368 = vcmp.le.f32.partialorder %v3349, %v546
    %vm3369 = vcmp.le.f32.partialorder %v3349, %v551
    %vm3370 = vcmp.le.f32.partialorder %v3349, %v556
    %vm3371 = vcmp.le.f32.partialorder %v3349, %v561
    %vm3372 = vcmp.le.f32.partialorder %v3349, %v566
    %vm3373 = vcmp.le.f32.partialorder %v3349, %v571
    %vm3374 = vcmp.le.f32.partialorder %v3349, %v576
    %vm3375 = vcmp.le.f32.partialorder %v3349, %v581
    %vm3376 = vcmp.le.f32.partialorder %v3349, %v586
    %vm3377 = vcmp.le.f32.partialorder %v3349, %v591
    %vm3378 = vcmp.le.f32.partialorder %v3349, %v596
    %vm3379 = vcmp.le.f32.partialorder %v3349, %v601
    %vm3380 = vcmp.le.f32.partialorder %v3349, %v606
    %vm3381 = vcmp.le.f32.partialorder %v3349, %v611
    %v3382 = vsel %vm3350, 1, 0
    %v3383 = vsel %vm3351, 1, 0
    %v3384 = vsel %vm3352, 1, 0
    %v3385 = vsel %vm3353, 1, 0
    %v3386 = vsel %vm3354, 1, 0
    %v3387 = vsel %vm3355, 1, 0
    %v3388 = vsel %vm3356, 1, 0
    %v3389 = vsel %vm3357, 1, 0
    %v3390 = vsel %vm3358, 1, 0
    %v3391 = vsel %vm3359, 1, 0
    %v3392 = vsel %vm3360, 1, 0
    %v3393 = vsel %vm3361, 1, 0
    %v3394 = vsel %vm3362, 1, 0
    %v3395 = vsel %vm3363, 1, 0
    %v3396 = vsel %vm3364, 1, 0
    %v3397 = vsel %vm3365, 1, 0
    %v3398 = vsel %vm3366, 1, 0
    %v3399 = vsel %vm3367, 1, 0
    %v3400 = vsel %vm3368, 1, 0
    %v3401 = vsel %vm3369, 1, 0
    %v3402 = vsel %vm3370, 1, 0
    %v3403 = vsel %vm3371, 1, 0
    %v3404 = vsel %vm3372, 1, 0
    %v3405 = vsel %vm3373, 1, 0
    %v3406 = vsel %vm3374, 1, 0
    %v3407 = vsel %vm3375, 1, 0
    %v3408 = vsel %vm3376, 1, 0
    %v3409 = vsel %vm3377, 1, 0
    %v3410 = vsel %vm3378, 1, 0
    %v3411 = vsel %vm3379, 1, 0
    %v3412 = vsel %vm3380, 1, 0
    %v3413 = vsel %vm3381, 1, 0
    %v3414 = vcvt.s32.f32 %v3382
    %v3415 = vcvt.s32.f32 %v3383
    %v3416 = vcvt.s32.f32 %v3384
    %v3417 = vcvt.s32.f32 %v3385
    %v3418 = vcvt.s32.f32 %v3386
    %v3419 = vcvt.s32.f32 %v3387
    %v3420 = vcvt.s32.f32 %v3388
    %v3421 = vcvt.s32.f32 %v3389
    %v3422 = vcvt.s32.f32 %v3390
    %v3423 = vcvt.s32.f32 %v3391
    %v3424 = vcvt.s32.f32 %v3392
    %v3425 = vcvt.s32.f32 %v3393
    %v3426 = vcvt.s32.f32 %v3394
    %v3427 = vcvt.s32.f32 %v3395
    %v3428 = vcvt.s32.f32 %v3396
    %v3429 = vcvt.s32.f32 %v3397
    %v3430 = vcvt.s32.f32 %v3398
    %v3431 = vcvt.s32.f32 %v3399
    %v3432 = vcvt.s32.f32 %v3400
    %v3433 = vcvt.s32.f32 %v3401
    %v3434 = vcvt.s32.f32 %v3402
    %v3435 = vcvt.s32.f32 %v3403
    %v3436 = vcvt.s32.f32 %v3404
    %v3437 = vcvt.s32.f32 %v3405
    %v3438 = vcvt.s32.f32 %v3406
    %v3439 = vcvt.s32.f32 %v3407
    %v3440 = vcvt.s32.f32 %v3408
    %v3441 = vcvt.s32.f32 %v3409
    %v3442 = vcvt.s32.f32 %v3410
    %v3443 = vcvt.s32.f32 %v3411
    %v3444 = vcvt.s32.f32 %v3412
    %v3445 = vcvt.s32.f32 %v3413
    %v3446 = vsel %vm709, %v3414, 0.0
    %3447 = vadd.xlane.f32.xlu0 %v3446
    %v3448 = vpop.xlane.xlu0 %3447
    %v3449 = vsel %vm709, %v3415, 0.0
    %3450 = vadd.xlane.f32.xlu0 %v3449
    %v3451 = vpop.xlane.xlu0 %3450
    %v3452 = vsel %vm709, %v3416, 0.0
    %3453 = vadd.xlane.f32.xlu0 %v3452
    %v3454 = vpop.xlane.xlu0 %3453
    %v3455 = vsel %vm709, %v3417, 0.0
    %3456 = vadd.xlane.f32.xlu0 %v3455
    %v3457 = vpop.xlane.xlu0 %3456
    %v3458 = vsel %vm709, %v3418, 0.0
    %3459 = vadd.xlane.f32.xlu0 %v3458
    %v3460 = vpop.xlane.xlu0 %3459
    %v3461 = vsel %vm709, %v3419, 0.0
    %3462 = vadd.xlane.f32.xlu0 %v3461
    %v3463 = vpop.xlane.xlu0 %3462
    %v3464 = vsel %vm709, %v3420, 0.0
    %3465 = vadd.xlane.f32.xlu0 %v3464
    %v3466 = vpop.xlane.xlu0 %3465
    %v3467 = vsel %vm709, %v3421, 0.0
    %3468 = vadd.xlane.f32.xlu0 %v3467
    %v3469 = vpop.xlane.xlu0 %3468
    %v3470 = vsel %vm709, %v3422, 0.0
    %3471 = vadd.xlane.f32.xlu0 %v3470
    %v3472 = vpop.xlane.xlu0 %3471
    %v3473 = vsel %vm709, %v3423, 0.0
    %3474 = vadd.xlane.f32.xlu0 %v3473
    %v3475 = vpop.xlane.xlu0 %3474
    %v3476 = vsel %vm709, %v3424, 0.0
    %3477 = vadd.xlane.f32.xlu0 %v3476
    %v3478 = vpop.xlane.xlu0 %3477
    %v3479 = vsel %vm709, %v3425, 0.0
    %3480 = vadd.xlane.f32.xlu0 %v3479
    %v3481 = vpop.xlane.xlu0 %3480
    %v3482 = vsel %vm709, %v3426, 0.0
    %3483 = vadd.xlane.f32.xlu0 %v3482
    %v3484 = vpop.xlane.xlu0 %3483
    %v3485 = vsel %vm709, %v3427, 0.0
    %3486 = vadd.xlane.f32.xlu0 %v3485
    %v3487 = vpop.xlane.xlu0 %3486
    %v3488 = vsel %vm709, %v3428, 0.0
    %3489 = vadd.xlane.f32.xlu0 %v3488
    %v3490 = vpop.xlane.xlu0 %3489
    %v3491 = vsel %vm709, %v3429, 0.0
    %3492 = vadd.xlane.f32.xlu0 %v3491
    %v3493 = vpop.xlane.xlu0 %3492
    %v3494 = vsel %vm709, %v3430, 0.0
    %3495 = vadd.xlane.f32.xlu0 %v3494
    %v3496 = vpop.xlane.xlu0 %3495
    %v3497 = vsel %vm709, %v3431, 0.0
    %3498 = vadd.xlane.f32.xlu0 %v3497
    %v3499 = vpop.xlane.xlu0 %3498
    %v3500 = vsel %vm709, %v3432, 0.0
    %3501 = vadd.xlane.f32.xlu0 %v3500
    %v3502 = vpop.xlane.xlu0 %3501
    %v3503 = vsel %vm709, %v3433, 0.0
    %3504 = vadd.xlane.f32.xlu0 %v3503
    %v3505 = vpop.xlane.xlu0 %3504
    %v3506 = vsel %vm709, %v3434, 0.0
    %3507 = vadd.xlane.f32.xlu0 %v3506
    %v3508 = vpop.xlane.xlu0 %3507
    %v3509 = vsel %vm709, %v3435, 0.0
    %3510 = vadd.xlane.f32.xlu0 %v3509
    %v3511 = vpop.xlane.xlu0 %3510
    %v3512 = vsel %vm709, %v3436, 0.0
    %3513 = vadd.xlane.f32.xlu0 %v3512
    %v3514 = vpop.xlane.xlu0 %3513
    %v3515 = vsel %vm709, %v3437, 0.0
    %3516 = vadd.xlane.f32.xlu0 %v3515
    %v3517 = vpop.xlane.xlu0 %3516
    %v3518 = vsel %vm709, %v3438, 0.0
    %3519 = vadd.xlane.f32.xlu0 %v3518
    %v3520 = vpop.xlane.xlu0 %3519
    %v3521 = vsel %vm709, %v3439, 0.0
    %3522 = vadd.xlane.f32.xlu0 %v3521
    %v3523 = vpop.xlane.xlu0 %3522
    %v3524 = vsel %vm709, %v3440, 0.0
    %3525 = vadd.xlane.f32.xlu0 %v3524
    %v3526 = vpop.xlane.xlu0 %3525
    %v3527 = vsel %vm709, %v3441, 0.0
    %3528 = vadd.xlane.f32.xlu0 %v3527
    %v3529 = vpop.xlane.xlu0 %3528
    %v3530 = vsel %vm709, %v3442, 0.0
    %3531 = vadd.xlane.f32.xlu0 %v3530
    %v3532 = vpop.xlane.xlu0 %3531
    %v3533 = vsel %vm709, %v3443, 0.0
    %3534 = vadd.xlane.f32.xlu0 %v3533
    %v3535 = vpop.xlane.xlu0 %3534
    %v3536 = vsel %vm709, %v3444, 0.0
    %3537 = vadd.xlane.f32.xlu0 %v3536
    %v3538 = vpop.xlane.xlu0 %3537
    %v3539 = vsel %vm709, %v3445, 0.0
    %3540 = vadd.xlane.f32.xlu0 %v3539
    %v3541 = vpop.xlane.xlu0 %3540
    %v3542 = vadd.f32 %v3314, %v3448
    %v3543 = vadd.f32 %v3315, %v3451
    %v3544 = vadd.f32 %v3316, %v3454
    %v3545 = vadd.f32 %v3317, %v3457
    %v3546 = vadd.f32 %v3318, %v3460
    %v3547 = vadd.f32 %v3319, %v3463
    %v3548 = vadd.f32 %v3320, %v3466
    %v3549 = vadd.f32 %v3321, %v3469
    %v3550 = vadd.f32 %v3322, %v3472
    %v3551 = vadd.f32 %v3323, %v3475
    %v3552 = vadd.f32 %v3324, %v3478
    %v3553 = vadd.f32 %v3325, %v3481
    %v3554 = vadd.f32 %v3326, %v3484
    %v3555 = vadd.f32 %v3327, %v3487
    %v3556 = vadd.f32 %v3328, %v3490
    %v3557 = vadd.f32 %v3329, %v3493
    %v3558 = vadd.f32 %v3330, %v3496
    %v3559 = vadd.f32 %v3331, %v3499
    %v3560 = vadd.f32 %v3332, %v3502
    %v3561 = vadd.f32 %v3333, %v3505
    %v3562 = vadd.f32 %v3334, %v3508
    %v3563 = vadd.f32 %v3335, %v3511
    %v3564 = vadd.f32 %v3336, %v3514
    %v3565 = vadd.f32 %v3337, %v3517
    %v3566 = vadd.f32 %v3338, %v3520
    %v3567 = vadd.f32 %v3339, %v3523
    %v3568 = vadd.f32 %v3340, %v3526
    %v3569 = vadd.f32 %v3341, %v3529
    %v3570 = vadd.f32 %v3342, %v3532
    %v3571 = vadd.f32 %v3343, %v3535
    %v3572 = vadd.f32 %v3344, %v3538
    %v3573 = vadd.f32 %v3345, %v3541
    %v3574 = vlaneseq
    %v3575 = vshrl.u32 %v3574, 7
    %v3576 = vsub.s32 5, %v3575
    %v3577 = vrot.slane %v291, %v3576
    %vm3578 = vcmp.le.f32.partialorder %v3577, %v456
    %vm3579 = vcmp.le.f32.partialorder %v3577, %v461
    %vm3580 = vcmp.le.f32.partialorder %v3577, %v466
    %vm3581 = vcmp.le.f32.partialorder %v3577, %v471
    %vm3582 = vcmp.le.f32.partialorder %v3577, %v476
    %vm3583 = vcmp.le.f32.partialorder %v3577, %v481
    %vm3584 = vcmp.le.f32.partialorder %v3577, %v486
    %vm3585 = vcmp.le.f32.partialorder %v3577, %v491
    %vm3586 = vcmp.le.f32.partialorder %v3577, %v496
    %vm3587 = vcmp.le.f32.partialorder %v3577, %v501
    %vm3588 = vcmp.le.f32.partialorder %v3577, %v506
    %vm3589 = vcmp.le.f32.partialorder %v3577, %v511
    %vm3590 = vcmp.le.f32.partialorder %v3577, %v516
    %vm3591 = vcmp.le.f32.partialorder %v3577, %v521
    %vm3592 = vcmp.le.f32.partialorder %v3577, %v526
    %vm3593 = vcmp.le.f32.partialorder %v3577, %v531
    %vm3594 = vcmp.le.f32.partialorder %v3577, %v536
    %vm3595 = vcmp.le.f32.partialorder %v3577, %v541
    %vm3596 = vcmp.le.f32.partialorder %v3577, %v546
    %vm3597 = vcmp.le.f32.partialorder %v3577, %v551
    %vm3598 = vcmp.le.f32.partialorder %v3577, %v556
    %vm3599 = vcmp.le.f32.partialorder %v3577, %v561
    %vm3600 = vcmp.le.f32.partialorder %v3577, %v566
    %vm3601 = vcmp.le.f32.partialorder %v3577, %v571
    %vm3602 = vcmp.le.f32.partialorder %v3577, %v576
    %vm3603 = vcmp.le.f32.partialorder %v3577, %v581
    %vm3604 = vcmp.le.f32.partialorder %v3577, %v586
    %vm3605 = vcmp.le.f32.partialorder %v3577, %v591
    %vm3606 = vcmp.le.f32.partialorder %v3577, %v596
    %vm3607 = vcmp.le.f32.partialorder %v3577, %v601
    %vm3608 = vcmp.le.f32.partialorder %v3577, %v606
    %vm3609 = vcmp.le.f32.partialorder %v3577, %v611
    %v3610 = vsel %vm3578, 1, 0
    %v3611 = vsel %vm3579, 1, 0
    %v3612 = vsel %vm3580, 1, 0
    %v3613 = vsel %vm3581, 1, 0
    %v3614 = vsel %vm3582, 1, 0
    %v3615 = vsel %vm3583, 1, 0
    %v3616 = vsel %vm3584, 1, 0
    %v3617 = vsel %vm3585, 1, 0
    %v3618 = vsel %vm3586, 1, 0
    %v3619 = vsel %vm3587, 1, 0
    %v3620 = vsel %vm3588, 1, 0
    %v3621 = vsel %vm3589, 1, 0
    %v3622 = vsel %vm3590, 1, 0
    %v3623 = vsel %vm3591, 1, 0
    %v3624 = vsel %vm3592, 1, 0
    %v3625 = vsel %vm3593, 1, 0
    %v3626 = vsel %vm3594, 1, 0
    %v3627 = vsel %vm3595, 1, 0
    %v3628 = vsel %vm3596, 1, 0
    %v3629 = vsel %vm3597, 1, 0
    %v3630 = vsel %vm3598, 1, 0
    %v3631 = vsel %vm3599, 1, 0
    %v3632 = vsel %vm3600, 1, 0
    %v3633 = vsel %vm3601, 1, 0
    %v3634 = vsel %vm3602, 1, 0
    %v3635 = vsel %vm3603, 1, 0
    %v3636 = vsel %vm3604, 1, 0
    %v3637 = vsel %vm3605, 1, 0
    %v3638 = vsel %vm3606, 1, 0
    %v3639 = vsel %vm3607, 1, 0
    %v3640 = vsel %vm3608, 1, 0
    %v3641 = vsel %vm3609, 1, 0
    %v3642 = vcvt.s32.f32 %v3610
    %v3643 = vcvt.s32.f32 %v3611
    %v3644 = vcvt.s32.f32 %v3612
    %v3645 = vcvt.s32.f32 %v3613
    %v3646 = vcvt.s32.f32 %v3614
    %v3647 = vcvt.s32.f32 %v3615
    %v3648 = vcvt.s32.f32 %v3616
    %v3649 = vcvt.s32.f32 %v3617
    %v3650 = vcvt.s32.f32 %v3618
    %v3651 = vcvt.s32.f32 %v3619
    %v3652 = vcvt.s32.f32 %v3620
    %v3653 = vcvt.s32.f32 %v3621
    %v3654 = vcvt.s32.f32 %v3622
    %v3655 = vcvt.s32.f32 %v3623
    %v3656 = vcvt.s32.f32 %v3624
    %v3657 = vcvt.s32.f32 %v3625
    %v3658 = vcvt.s32.f32 %v3626
    %v3659 = vcvt.s32.f32 %v3627
    %v3660 = vcvt.s32.f32 %v3628
    %v3661 = vcvt.s32.f32 %v3629
    %v3662 = vcvt.s32.f32 %v3630
    %v3663 = vcvt.s32.f32 %v3631
    %v3664 = vcvt.s32.f32 %v3632
    %v3665 = vcvt.s32.f32 %v3633
    %v3666 = vcvt.s32.f32 %v3634
    %v3667 = vcvt.s32.f32 %v3635
    %v3668 = vcvt.s32.f32 %v3636
    %v3669 = vcvt.s32.f32 %v3637
    %v3670 = vcvt.s32.f32 %v3638
    %v3671 = vcvt.s32.f32 %v3639
    %v3672 = vcvt.s32.f32 %v3640
    %v3673 = vcvt.s32.f32 %v3641
    %v3674 = vsel %vm709, %v3642, 0.0
    %3675 = vadd.xlane.f32.xlu0 %v3674
    %v3676 = vpop.xlane.xlu0 %3675
    %v3677 = vsel %vm709, %v3643, 0.0
    %3678 = vadd.xlane.f32.xlu0 %v3677
    %v3679 = vpop.xlane.xlu0 %3678
    %v3680 = vsel %vm709, %v3644, 0.0
    %3681 = vadd.xlane.f32.xlu0 %v3680
    %v3682 = vpop.xlane.xlu0 %3681
    %v3683 = vsel %vm709, %v3645, 0.0
    %3684 = vadd.xlane.f32.xlu0 %v3683
    %v3685 = vpop.xlane.xlu0 %3684
    %v3686 = vsel %vm709, %v3646, 0.0
    %3687 = vadd.xlane.f32.xlu0 %v3686
    %v3688 = vpop.xlane.xlu0 %3687
    %v3689 = vsel %vm709, %v3647, 0.0
    %3690 = vadd.xlane.f32.xlu0 %v3689
    %v3691 = vpop.xlane.xlu0 %3690
    %v3692 = vsel %vm709, %v3648, 0.0
    %3693 = vadd.xlane.f32.xlu0 %v3692
    %v3694 = vpop.xlane.xlu0 %3693
    %v3695 = vsel %vm709, %v3649, 0.0
    %3696 = vadd.xlane.f32.xlu0 %v3695
    %v3697 = vpop.xlane.xlu0 %3696
    %v3698 = vsel %vm709, %v3650, 0.0
    %3699 = vadd.xlane.f32.xlu0 %v3698
    %v3700 = vpop.xlane.xlu0 %3699
    %v3701 = vsel %vm709, %v3651, 0.0
    %3702 = vadd.xlane.f32.xlu0 %v3701
    %v3703 = vpop.xlane.xlu0 %3702
    %v3704 = vsel %vm709, %v3652, 0.0
    %3705 = vadd.xlane.f32.xlu0 %v3704
    %v3706 = vpop.xlane.xlu0 %3705
    %v3707 = vsel %vm709, %v3653, 0.0
    %3708 = vadd.xlane.f32.xlu0 %v3707
    %v3709 = vpop.xlane.xlu0 %3708
    %v3710 = vsel %vm709, %v3654, 0.0
    %3711 = vadd.xlane.f32.xlu0 %v3710
    %v3712 = vpop.xlane.xlu0 %3711
    %v3713 = vsel %vm709, %v3655, 0.0
    %3714 = vadd.xlane.f32.xlu0 %v3713
    %v3715 = vpop.xlane.xlu0 %3714
    %v3716 = vsel %vm709, %v3656, 0.0
    %3717 = vadd.xlane.f32.xlu0 %v3716
    %v3718 = vpop.xlane.xlu0 %3717
    %v3719 = vsel %vm709, %v3657, 0.0
    %3720 = vadd.xlane.f32.xlu0 %v3719
    %v3721 = vpop.xlane.xlu0 %3720
    %v3722 = vsel %vm709, %v3658, 0.0
    %3723 = vadd.xlane.f32.xlu0 %v3722
    %v3724 = vpop.xlane.xlu0 %3723
    %v3725 = vsel %vm709, %v3659, 0.0
    %3726 = vadd.xlane.f32.xlu0 %v3725
    %v3727 = vpop.xlane.xlu0 %3726
    %v3728 = vsel %vm709, %v3660, 0.0
    %3729 = vadd.xlane.f32.xlu0 %v3728
    %v3730 = vpop.xlane.xlu0 %3729
    %v3731 = vsel %vm709, %v3661, 0.0
    %3732 = vadd.xlane.f32.xlu0 %v3731
    %v3733 = vpop.xlane.xlu0 %3732
    %v3734 = vsel %vm709, %v3662, 0.0
    %3735 = vadd.xlane.f32.xlu0 %v3734
    %v3736 = vpop.xlane.xlu0 %3735
    %v3737 = vsel %vm709, %v3663, 0.0
    %3738 = vadd.xlane.f32.xlu0 %v3737
    %v3739 = vpop.xlane.xlu0 %3738
    %v3740 = vsel %vm709, %v3664, 0.0
    %3741 = vadd.xlane.f32.xlu0 %v3740
    %v3742 = vpop.xlane.xlu0 %3741
    %v3743 = vsel %vm709, %v3665, 0.0
    %3744 = vadd.xlane.f32.xlu0 %v3743
    %v3745 = vpop.xlane.xlu0 %3744
    %v3746 = vsel %vm709, %v3666, 0.0
    %3747 = vadd.xlane.f32.xlu0 %v3746
    %v3748 = vpop.xlane.xlu0 %3747
    %v3749 = vsel %vm709, %v3667, 0.0
    %3750 = vadd.xlane.f32.xlu0 %v3749
    %v3751 = vpop.xlane.xlu0 %3750
    %v3752 = vsel %vm709, %v3668, 0.0
    %3753 = vadd.xlane.f32.xlu0 %v3752
    %v3754 = vpop.xlane.xlu0 %3753
    %v3755 = vsel %vm709, %v3669, 0.0
    %3756 = vadd.xlane.f32.xlu0 %v3755
    %v3757 = vpop.xlane.xlu0 %3756
    %v3758 = vsel %vm709, %v3670, 0.0
    %3759 = vadd.xlane.f32.xlu0 %v3758
    %v3760 = vpop.xlane.xlu0 %3759
    %v3761 = vsel %vm709, %v3671, 0.0
    %3762 = vadd.xlane.f32.xlu0 %v3761
    %v3763 = vpop.xlane.xlu0 %3762
    %v3764 = vsel %vm709, %v3672, 0.0
    %3765 = vadd.xlane.f32.xlu0 %v3764
    %v3766 = vpop.xlane.xlu0 %3765
    %v3767 = vsel %vm709, %v3673, 0.0
    %3768 = vadd.xlane.f32.xlu0 %v3767
    %v3769 = vpop.xlane.xlu0 %3768
    %v3770 = vadd.f32 %v3542, %v3676
    %v3771 = vadd.f32 %v3543, %v3679
    %v3772 = vadd.f32 %v3544, %v3682
    %v3773 = vadd.f32 %v3545, %v3685
    %v3774 = vadd.f32 %v3546, %v3688
    %v3775 = vadd.f32 %v3547, %v3691
    %v3776 = vadd.f32 %v3548, %v3694
    %v3777 = vadd.f32 %v3549, %v3697
    %v3778 = vadd.f32 %v3550, %v3700
    %v3779 = vadd.f32 %v3551, %v3703
    %v3780 = vadd.f32 %v3552, %v3706
    %v3781 = vadd.f32 %v3553, %v3709
    %v3782 = vadd.f32 %v3554, %v3712
    %v3783 = vadd.f32 %v3555, %v3715
    %v3784 = vadd.f32 %v3556, %v3718
    %v3785 = vadd.f32 %v3557, %v3721
    %v3786 = vadd.f32 %v3558, %v3724
    %v3787 = vadd.f32 %v3559, %v3727
    %v3788 = vadd.f32 %v3560, %v3730
    %v3789 = vadd.f32 %v3561, %v3733
    %v3790 = vadd.f32 %v3562, %v3736
    %v3791 = vadd.f32 %v3563, %v3739
    %v3792 = vadd.f32 %v3564, %v3742
    %v3793 = vadd.f32 %v3565, %v3745
    %v3794 = vadd.f32 %v3566, %v3748
    %v3795 = vadd.f32 %v3567, %v3751
    %v3796 = vadd.f32 %v3568, %v3754
    %v3797 = vadd.f32 %v3569, %v3757
    %v3798 = vadd.f32 %v3570, %v3760
    %v3799 = vadd.f32 %v3571, %v3763
    %v3800 = vadd.f32 %v3572, %v3766
    %v3801 = vadd.f32 %v3573, %v3769
    %v3802 = vlaneseq
    %v3803 = vshrl.u32 %v3802, 7
    %v3804 = vsub.s32 6, %v3803
    %v3805 = vrot.slane %v291, %v3804
    %vm3806 = vcmp.le.f32.partialorder %v3805, %v456
    %vm3807 = vcmp.le.f32.partialorder %v3805, %v461
    %vm3808 = vcmp.le.f32.partialorder %v3805, %v466
    %vm3809 = vcmp.le.f32.partialorder %v3805, %v471
    %vm3810 = vcmp.le.f32.partialorder %v3805, %v476
    %vm3811 = vcmp.le.f32.partialorder %v3805, %v481
    %vm3812 = vcmp.le.f32.partialorder %v3805, %v486
    %vm3813 = vcmp.le.f32.partialorder %v3805, %v491
    %vm3814 = vcmp.le.f32.partialorder %v3805, %v496
    %vm3815 = vcmp.le.f32.partialorder %v3805, %v501
    %vm3816 = vcmp.le.f32.partialorder %v3805, %v506
    %vm3817 = vcmp.le.f32.partialorder %v3805, %v511
    %vm3818 = vcmp.le.f32.partialorder %v3805, %v516
    %vm3819 = vcmp.le.f32.partialorder %v3805, %v521
    %vm3820 = vcmp.le.f32.partialorder %v3805, %v526
    %vm3821 = vcmp.le.f32.partialorder %v3805, %v531
    %vm3822 = vcmp.le.f32.partialorder %v3805, %v536
    %vm3823 = vcmp.le.f32.partialorder %v3805, %v541
    %vm3824 = vcmp.le.f32.partialorder %v3805, %v546
    %vm3825 = vcmp.le.f32.partialorder %v3805, %v551
    %vm3826 = vcmp.le.f32.partialorder %v3805, %v556
    %vm3827 = vcmp.le.f32.partialorder %v3805, %v561
    %vm3828 = vcmp.le.f32.partialorder %v3805, %v566
    %vm3829 = vcmp.le.f32.partialorder %v3805, %v571
    %vm3830 = vcmp.le.f32.partialorder %v3805, %v576
    %vm3831 = vcmp.le.f32.partialorder %v3805, %v581
    %vm3832 = vcmp.le.f32.partialorder %v3805, %v586
    %vm3833 = vcmp.le.f32.partialorder %v3805, %v591
    %vm3834 = vcmp.le.f32.partialorder %v3805, %v596
    %vm3835 = vcmp.le.f32.partialorder %v3805, %v601
    %vm3836 = vcmp.le.f32.partialorder %v3805, %v606
    %vm3837 = vcmp.le.f32.partialorder %v3805, %v611
    %v3838 = vsel %vm3806, 1, 0
    %v3839 = vsel %vm3807, 1, 0
    %v3840 = vsel %vm3808, 1, 0
    %v3841 = vsel %vm3809, 1, 0
    %v3842 = vsel %vm3810, 1, 0
    %v3843 = vsel %vm3811, 1, 0
    %v3844 = vsel %vm3812, 1, 0
    %v3845 = vsel %vm3813, 1, 0
    %v3846 = vsel %vm3814, 1, 0
    %v3847 = vsel %vm3815, 1, 0
    %v3848 = vsel %vm3816, 1, 0
    %v3849 = vsel %vm3817, 1, 0
    %v3850 = vsel %vm3818, 1, 0
    %v3851 = vsel %vm3819, 1, 0
    %v3852 = vsel %vm3820, 1, 0
    %v3853 = vsel %vm3821, 1, 0
    %v3854 = vsel %vm3822, 1, 0
    %v3855 = vsel %vm3823, 1, 0
    %v3856 = vsel %vm3824, 1, 0
    %v3857 = vsel %vm3825, 1, 0
    %v3858 = vsel %vm3826, 1, 0
    %v3859 = vsel %vm3827, 1, 0
    %v3860 = vsel %vm3828, 1, 0
    %v3861 = vsel %vm3829, 1, 0
    %v3862 = vsel %vm3830, 1, 0
    %v3863 = vsel %vm3831, 1, 0
    %v3864 = vsel %vm3832, 1, 0
    %v3865 = vsel %vm3833, 1, 0
    %v3866 = vsel %vm3834, 1, 0
    %v3867 = vsel %vm3835, 1, 0
    %v3868 = vsel %vm3836, 1, 0
    %v3869 = vsel %vm3837, 1, 0
    %v3870 = vcvt.s32.f32 %v3838
    %v3871 = vcvt.s32.f32 %v3839
    %v3872 = vcvt.s32.f32 %v3840
    %v3873 = vcvt.s32.f32 %v3841
    %v3874 = vcvt.s32.f32 %v3842
    %v3875 = vcvt.s32.f32 %v3843
    %v3876 = vcvt.s32.f32 %v3844
    %v3877 = vcvt.s32.f32 %v3845
    %v3878 = vcvt.s32.f32 %v3846
    %v3879 = vcvt.s32.f32 %v3847
    %v3880 = vcvt.s32.f32 %v3848
    %v3881 = vcvt.s32.f32 %v3849
    %v3882 = vcvt.s32.f32 %v3850
    %v3883 = vcvt.s32.f32 %v3851
    %v3884 = vcvt.s32.f32 %v3852
    %v3885 = vcvt.s32.f32 %v3853
    %v3886 = vcvt.s32.f32 %v3854
    %v3887 = vcvt.s32.f32 %v3855
    %v3888 = vcvt.s32.f32 %v3856
    %v3889 = vcvt.s32.f32 %v3857
    %v3890 = vcvt.s32.f32 %v3858
    %v3891 = vcvt.s32.f32 %v3859
    %v3892 = vcvt.s32.f32 %v3860
    %v3893 = vcvt.s32.f32 %v3861
    %v3894 = vcvt.s32.f32 %v3862
    %v3895 = vcvt.s32.f32 %v3863
    %v3896 = vcvt.s32.f32 %v3864
    %v3897 = vcvt.s32.f32 %v3865
    %v3898 = vcvt.s32.f32 %v3866
    %v3899 = vcvt.s32.f32 %v3867
    %v3900 = vcvt.s32.f32 %v3868
    %v3901 = vcvt.s32.f32 %v3869
    %v3902 = vsel %vm709, %v3870, 0.0
    %3903 = vadd.xlane.f32.xlu0 %v3902
    %v3904 = vpop.xlane.xlu0 %3903
    %v3905 = vsel %vm709, %v3871, 0.0
    %3906 = vadd.xlane.f32.xlu0 %v3905
    %v3907 = vpop.xlane.xlu0 %3906
    %v3908 = vsel %vm709, %v3872, 0.0
    %3909 = vadd.xlane.f32.xlu0 %v3908
    %v3910 = vpop.xlane.xlu0 %3909
    %v3911 = vsel %vm709, %v3873, 0.0
    %3912 = vadd.xlane.f32.xlu0 %v3911
    %v3913 = vpop.xlane.xlu0 %3912
    %v3914 = vsel %vm709, %v3874, 0.0
    %3915 = vadd.xlane.f32.xlu0 %v3914
    %v3916 = vpop.xlane.xlu0 %3915
    %v3917 = vsel %vm709, %v3875, 0.0
    %3918 = vadd.xlane.f32.xlu0 %v3917
    %v3919 = vpop.xlane.xlu0 %3918
    %v3920 = vsel %vm709, %v3876, 0.0
    %3921 = vadd.xlane.f32.xlu0 %v3920
    %v3922 = vpop.xlane.xlu0 %3921
    %v3923 = vsel %vm709, %v3877, 0.0
    %3924 = vadd.xlane.f32.xlu0 %v3923
    %v3925 = vpop.xlane.xlu0 %3924
    %v3926 = vsel %vm709, %v3878, 0.0
    %3927 = vadd.xlane.f32.xlu0 %v3926
    %v3928 = vpop.xlane.xlu0 %3927
    %v3929 = vsel %vm709, %v3879, 0.0
    %3930 = vadd.xlane.f32.xlu0 %v3929
    %v3931 = vpop.xlane.xlu0 %3930
    %v3932 = vsel %vm709, %v3880, 0.0
    %3933 = vadd.xlane.f32.xlu0 %v3932
    %v3934 = vpop.xlane.xlu0 %3933
    %v3935 = vsel %vm709, %v3881, 0.0
    %3936 = vadd.xlane.f32.xlu0 %v3935
    %v3937 = vpop.xlane.xlu0 %3936
    %v3938 = vsel %vm709, %v3882, 0.0
    %3939 = vadd.xlane.f32.xlu0 %v3938
    %v3940 = vpop.xlane.xlu0 %3939
    %v3941 = vsel %vm709, %v3883, 0.0
    %3942 = vadd.xlane.f32.xlu0 %v3941
    %v3943 = vpop.xlane.xlu0 %3942
    %v3944 = vsel %vm709, %v3884, 0.0
    %3945 = vadd.xlane.f32.xlu0 %v3944
    %v3946 = vpop.xlane.xlu0 %3945
    %v3947 = vsel %vm709, %v3885, 0.0
    %3948 = vadd.xlane.f32.xlu0 %v3947
    %v3949 = vpop.xlane.xlu0 %3948
    %v3950 = vsel %vm709, %v3886, 0.0
    %3951 = vadd.xlane.f32.xlu0 %v3950
    %v3952 = vpop.xlane.xlu0 %3951
    %v3953 = vsel %vm709, %v3887, 0.0
    %3954 = vadd.xlane.f32.xlu0 %v3953
    %v3955 = vpop.xlane.xlu0 %3954
    %v3956 = vsel %vm709, %v3888, 0.0
    %3957 = vadd.xlane.f32.xlu0 %v3956
    %v3958 = vpop.xlane.xlu0 %3957
    %v3959 = vsel %vm709, %v3889, 0.0
    %3960 = vadd.xlane.f32.xlu0 %v3959
    %v3961 = vpop.xlane.xlu0 %3960
    %v3962 = vsel %vm709, %v3890, 0.0
    %3963 = vadd.xlane.f32.xlu0 %v3962
    %v3964 = vpop.xlane.xlu0 %3963
    %v3965 = vsel %vm709, %v3891, 0.0
    %3966 = vadd.xlane.f32.xlu0 %v3965
    %v3967 = vpop.xlane.xlu0 %3966
    %v3968 = vsel %vm709, %v3892, 0.0
    %3969 = vadd.xlane.f32.xlu0 %v3968
    %v3970 = vpop.xlane.xlu0 %3969
    %v3971 = vsel %vm709, %v3893, 0.0
    %3972 = vadd.xlane.f32.xlu0 %v3971
    %v3973 = vpop.xlane.xlu0 %3972
    %v3974 = vsel %vm709, %v3894, 0.0
    %3975 = vadd.xlane.f32.xlu0 %v3974
    %v3976 = vpop.xlane.xlu0 %3975
    %v3977 = vsel %vm709, %v3895, 0.0
    %3978 = vadd.xlane.f32.xlu0 %v3977
    %v3979 = vpop.xlane.xlu0 %3978
    %v3980 = vsel %vm709, %v3896, 0.0
    %3981 = vadd.xlane.f32.xlu0 %v3980
    %v3982 = vpop.xlane.xlu0 %3981
    %v3983 = vsel %vm709, %v3897, 0.0
    %3984 = vadd.xlane.f32.xlu0 %v3983
    %v3985 = vpop.xlane.xlu0 %3984
    %v3986 = vsel %vm709, %v3898, 0.0
    %3987 = vadd.xlane.f32.xlu0 %v3986
    %v3988 = vpop.xlane.xlu0 %3987
    %v3989 = vsel %vm709, %v3899, 0.0
    %3990 = vadd.xlane.f32.xlu0 %v3989
    %v3991 = vpop.xlane.xlu0 %3990
    %v3992 = vsel %vm709, %v3900, 0.0
    %3993 = vadd.xlane.f32.xlu0 %v3992
    %v3994 = vpop.xlane.xlu0 %3993
    %v3995 = vsel %vm709, %v3901, 0.0
    %3996 = vadd.xlane.f32.xlu0 %v3995
    %v3997 = vpop.xlane.xlu0 %3996
    %v3998 = vadd.f32 %v3770, %v3904
    %v3999 = vadd.f32 %v3771, %v3907
    %v4000 = vadd.f32 %v3772, %v3910
    %v4001 = vadd.f32 %v3773, %v3913
    %v4002 = vadd.f32 %v3774, %v3916
    %v4003 = vadd.f32 %v3775, %v3919
    %v4004 = vadd.f32 %v3776, %v3922
    %v4005 = vadd.f32 %v3777, %v3925
    %v4006 = vadd.f32 %v3778, %v3928
    %v4007 = vadd.f32 %v3779, %v3931
    %v4008 = vadd.f32 %v3780, %v3934
    %v4009 = vadd.f32 %v3781, %v3937
    %v4010 = vadd.f32 %v3782, %v3940
    %v4011 = vadd.f32 %v3783, %v3943
    %v4012 = vadd.f32 %v3784, %v3946
    %v4013 = vadd.f32 %v3785, %v3949
    %v4014 = vadd.f32 %v3786, %v3952
    %v4015 = vadd.f32 %v3787, %v3955
    %v4016 = vadd.f32 %v3788, %v3958
    %v4017 = vadd.f32 %v3789, %v3961
    %v4018 = vadd.f32 %v3790, %v3964
    %v4019 = vadd.f32 %v3791, %v3967
    %v4020 = vadd.f32 %v3792, %v3970
    %v4021 = vadd.f32 %v3793, %v3973
    %v4022 = vadd.f32 %v3794, %v3976
    %v4023 = vadd.f32 %v3795, %v3979
    %v4024 = vadd.f32 %v3796, %v3982
    %v4025 = vadd.f32 %v3797, %v3985
    %v4026 = vadd.f32 %v3798, %v3988
    %v4027 = vadd.f32 %v3799, %v3991
    %v4028 = vadd.f32 %v3800, %v3994
    %v4029 = vadd.f32 %v3801, %v3997
    %v4030 = vlaneseq
    %v4031 = vshrl.u32 %v4030, 7
    %v4032 = vsub.s32 7, %v4031
    %v4033 = vrot.slane %v291, %v4032
    %vm4034 = vcmp.le.f32.partialorder %v4033, %v456
    %vm4035 = vcmp.le.f32.partialorder %v4033, %v461
    %vm4036 = vcmp.le.f32.partialorder %v4033, %v466
    %vm4037 = vcmp.le.f32.partialorder %v4033, %v471
    %vm4038 = vcmp.le.f32.partialorder %v4033, %v476
    %vm4039 = vcmp.le.f32.partialorder %v4033, %v481
    %vm4040 = vcmp.le.f32.partialorder %v4033, %v486
    %vm4041 = vcmp.le.f32.partialorder %v4033, %v491
    %vm4042 = vcmp.le.f32.partialorder %v4033, %v496
    %vm4043 = vcmp.le.f32.partialorder %v4033, %v501
    %vm4044 = vcmp.le.f32.partialorder %v4033, %v506
    %vm4045 = vcmp.le.f32.partialorder %v4033, %v511
    %vm4046 = vcmp.le.f32.partialorder %v4033, %v516
    %vm4047 = vcmp.le.f32.partialorder %v4033, %v521
    %vm4048 = vcmp.le.f32.partialorder %v4033, %v526
    %vm4049 = vcmp.le.f32.partialorder %v4033, %v531
    %vm4050 = vcmp.le.f32.partialorder %v4033, %v536
    %vm4051 = vcmp.le.f32.partialorder %v4033, %v541
    %vm4052 = vcmp.le.f32.partialorder %v4033, %v546
    %vm4053 = vcmp.le.f32.partialorder %v4033, %v551
    %vm4054 = vcmp.le.f32.partialorder %v4033, %v556
    %vm4055 = vcmp.le.f32.partialorder %v4033, %v561
    %vm4056 = vcmp.le.f32.partialorder %v4033, %v566
    %vm4057 = vcmp.le.f32.partialorder %v4033, %v571
    %vm4058 = vcmp.le.f32.partialorder %v4033, %v576
    %vm4059 = vcmp.le.f32.partialorder %v4033, %v581
    %vm4060 = vcmp.le.f32.partialorder %v4033, %v586
    %vm4061 = vcmp.le.f32.partialorder %v4033, %v591
    %vm4062 = vcmp.le.f32.partialorder %v4033, %v596
    %vm4063 = vcmp.le.f32.partialorder %v4033, %v601
    %vm4064 = vcmp.le.f32.partialorder %v4033, %v606
    %vm4065 = vcmp.le.f32.partialorder %v4033, %v611
    %v4066 = vsel %vm4034, 1, 0
    %v4067 = vsel %vm4035, 1, 0
    %v4068 = vsel %vm4036, 1, 0
    %v4069 = vsel %vm4037, 1, 0
    %v4070 = vsel %vm4038, 1, 0
    %v4071 = vsel %vm4039, 1, 0
    %v4072 = vsel %vm4040, 1, 0
    %v4073 = vsel %vm4041, 1, 0
    %v4074 = vsel %vm4042, 1, 0
    %v4075 = vsel %vm4043, 1, 0
    %v4076 = vsel %vm4044, 1, 0
    %v4077 = vsel %vm4045, 1, 0
    %v4078 = vsel %vm4046, 1, 0
    %v4079 = vsel %vm4047, 1, 0
    %v4080 = vsel %vm4048, 1, 0
    %v4081 = vsel %vm4049, 1, 0
    %v4082 = vsel %vm4050, 1, 0
    %v4083 = vsel %vm4051, 1, 0
    %v4084 = vsel %vm4052, 1, 0
    %v4085 = vsel %vm4053, 1, 0
    %v4086 = vsel %vm4054, 1, 0
    %v4087 = vsel %vm4055, 1, 0
    %v4088 = vsel %vm4056, 1, 0
    %v4089 = vsel %vm4057, 1, 0
    %v4090 = vsel %vm4058, 1, 0
    %v4091 = vsel %vm4059, 1, 0
    %v4092 = vsel %vm4060, 1, 0
    %v4093 = vsel %vm4061, 1, 0
    %v4094 = vsel %vm4062, 1, 0
    %v4095 = vsel %vm4063, 1, 0
    %v4096 = vsel %vm4064, 1, 0
    %v4097 = vsel %vm4065, 1, 0
    %v4098 = vcvt.s32.f32 %v4066
    %v4099 = vcvt.s32.f32 %v4067
    %v4100 = vcvt.s32.f32 %v4068
    %v4101 = vcvt.s32.f32 %v4069
    %v4102 = vcvt.s32.f32 %v4070
    %v4103 = vcvt.s32.f32 %v4071
    %v4104 = vcvt.s32.f32 %v4072
    %v4105 = vcvt.s32.f32 %v4073
    %v4106 = vcvt.s32.f32 %v4074
    %v4107 = vcvt.s32.f32 %v4075
    %v4108 = vcvt.s32.f32 %v4076
    %v4109 = vcvt.s32.f32 %v4077
    %v4110 = vcvt.s32.f32 %v4078
    %v4111 = vcvt.s32.f32 %v4079
    %v4112 = vcvt.s32.f32 %v4080
    %v4113 = vcvt.s32.f32 %v4081
    %v4114 = vcvt.s32.f32 %v4082
    %v4115 = vcvt.s32.f32 %v4083
    %v4116 = vcvt.s32.f32 %v4084
    %v4117 = vcvt.s32.f32 %v4085
    %v4118 = vcvt.s32.f32 %v4086
    %v4119 = vcvt.s32.f32 %v4087
    %v4120 = vcvt.s32.f32 %v4088
    %v4121 = vcvt.s32.f32 %v4089
    %v4122 = vcvt.s32.f32 %v4090
    %v4123 = vcvt.s32.f32 %v4091
    %v4124 = vcvt.s32.f32 %v4092
    %v4125 = vcvt.s32.f32 %v4093
    %v4126 = vcvt.s32.f32 %v4094
    %v4127 = vcvt.s32.f32 %v4095
    %v4128 = vcvt.s32.f32 %v4096
    %v4129 = vcvt.s32.f32 %v4097
    %v4130 = vsel %vm709, %v4098, 0.0
    %4131 = vadd.xlane.f32.xlu0 %v4130
    %v4132 = vpop.xlane.xlu0 %4131
    %v4133 = vsel %vm709, %v4099, 0.0
    %4134 = vadd.xlane.f32.xlu0 %v4133
    %v4135 = vpop.xlane.xlu0 %4134
    %v4136 = vsel %vm709, %v4100, 0.0
    %4137 = vadd.xlane.f32.xlu0 %v4136
    %v4138 = vpop.xlane.xlu0 %4137
    %v4139 = vsel %vm709, %v4101, 0.0
    %4140 = vadd.xlane.f32.xlu0 %v4139
    %v4141 = vpop.xlane.xlu0 %4140
    %v4142 = vsel %vm709, %v4102, 0.0
    %4143 = vadd.xlane.f32.xlu0 %v4142
    %v4144 = vpop.xlane.xlu0 %4143
    %v4145 = vsel %vm709, %v4103, 0.0
    %4146 = vadd.xlane.f32.xlu0 %v4145
    %v4147 = vpop.xlane.xlu0 %4146
    %v4148 = vsel %vm709, %v4104, 0.0
    %4149 = vadd.xlane.f32.xlu0 %v4148
    %v4150 = vpop.xlane.xlu0 %4149
    %v4151 = vsel %vm709, %v4105, 0.0
    %4152 = vadd.xlane.f32.xlu0 %v4151
    %v4153 = vpop.xlane.xlu0 %4152
    %v4154 = vsel %vm709, %v4106, 0.0
    %4155 = vadd.xlane.f32.xlu0 %v4154
    %v4156 = vpop.xlane.xlu0 %4155
    %v4157 = vsel %vm709, %v4107, 0.0
    %4158 = vadd.xlane.f32.xlu0 %v4157
    %v4159 = vpop.xlane.xlu0 %4158
    %v4160 = vsel %vm709, %v4108, 0.0
    %4161 = vadd.xlane.f32.xlu0 %v4160
    %v4162 = vpop.xlane.xlu0 %4161
    %v4163 = vsel %vm709, %v4109, 0.0
    %4164 = vadd.xlane.f32.xlu0 %v4163
    %v4165 = vpop.xlane.xlu0 %4164
    %v4166 = vsel %vm709, %v4110, 0.0
    %4167 = vadd.xlane.f32.xlu0 %v4166
    %v4168 = vpop.xlane.xlu0 %4167
    %v4169 = vsel %vm709, %v4111, 0.0
    %4170 = vadd.xlane.f32.xlu0 %v4169
    %v4171 = vpop.xlane.xlu0 %4170
    %v4172 = vsel %vm709, %v4112, 0.0
    %4173 = vadd.xlane.f32.xlu0 %v4172
    %v4174 = vpop.xlane.xlu0 %4173
    %v4175 = vsel %vm709, %v4113, 0.0
    %4176 = vadd.xlane.f32.xlu0 %v4175
    %v4177 = vpop.xlane.xlu0 %4176
    %v4178 = vsel %vm709, %v4114, 0.0
    %4179 = vadd.xlane.f32.xlu0 %v4178
    %v4180 = vpop.xlane.xlu0 %4179
    %v4181 = vsel %vm709, %v4115, 0.0
    %4182 = vadd.xlane.f32.xlu0 %v4181
    %v4183 = vpop.xlane.xlu0 %4182
    %v4184 = vsel %vm709, %v4116, 0.0
    %4185 = vadd.xlane.f32.xlu0 %v4184
    %v4186 = vpop.xlane.xlu0 %4185
    %v4187 = vsel %vm709, %v4117, 0.0
    %4188 = vadd.xlane.f32.xlu0 %v4187
    %v4189 = vpop.xlane.xlu0 %4188
    %v4190 = vsel %vm709, %v4118, 0.0
    %4191 = vadd.xlane.f32.xlu0 %v4190
    %v4192 = vpop.xlane.xlu0 %4191
    %v4193 = vsel %vm709, %v4119, 0.0
    %4194 = vadd.xlane.f32.xlu0 %v4193
    %v4195 = vpop.xlane.xlu0 %4194
    %v4196 = vsel %vm709, %v4120, 0.0
    %4197 = vadd.xlane.f32.xlu0 %v4196
    %v4198 = vpop.xlane.xlu0 %4197
    %v4199 = vsel %vm709, %v4121, 0.0
    %4200 = vadd.xlane.f32.xlu0 %v4199
    %v4201 = vpop.xlane.xlu0 %4200
    %v4202 = vsel %vm709, %v4122, 0.0
    %4203 = vadd.xlane.f32.xlu0 %v4202
    %v4204 = vpop.xlane.xlu0 %4203
    %v4205 = vsel %vm709, %v4123, 0.0
    %4206 = vadd.xlane.f32.xlu0 %v4205
    %v4207 = vpop.xlane.xlu0 %4206
    %v4208 = vsel %vm709, %v4124, 0.0
    %4209 = vadd.xlane.f32.xlu0 %v4208
    %v4210 = vpop.xlane.xlu0 %4209
    %v4211 = vsel %vm709, %v4125, 0.0
    %4212 = vadd.xlane.f32.xlu0 %v4211
    %v4213 = vpop.xlane.xlu0 %4212
    %v4214 = vsel %vm709, %v4126, 0.0
    %4215 = vadd.xlane.f32.xlu0 %v4214
    %v4216 = vpop.xlane.xlu0 %4215
    %v4217 = vsel %vm709, %v4127, 0.0
    %4218 = vadd.xlane.f32.xlu0 %v4217
    %v4219 = vpop.xlane.xlu0 %4218
    %v4220 = vsel %vm709, %v4128, 0.0
    %4221 = vadd.xlane.f32.xlu0 %v4220
    %v4222 = vpop.xlane.xlu0 %4221
    %v4223 = vsel %vm709, %v4129, 0.0
    %4224 = vadd.xlane.f32.xlu0 %v4223
    %v4225 = vpop.xlane.xlu0 %4224
    %v4226 = vadd.f32 %v3998, %v4132
    %v4227 = vadd.f32 %v3999, %v4135
    %v4228 = vadd.f32 %v4000, %v4138
    %v4229 = vadd.f32 %v4001, %v4141
    %v4230 = vadd.f32 %v4002, %v4144
    %v4231 = vadd.f32 %v4003, %v4147
    %v4232 = vadd.f32 %v4004, %v4150
    %v4233 = vadd.f32 %v4005, %v4153
    %v4234 = vadd.f32 %v4006, %v4156
    %v4235 = vadd.f32 %v4007, %v4159
    %v4236 = vadd.f32 %v4008, %v4162
    %v4237 = vadd.f32 %v4009, %v4165
    %v4238 = vadd.f32 %v4010, %v4168
    %v4239 = vadd.f32 %v4011, %v4171
    %v4240 = vadd.f32 %v4012, %v4174
    %v4241 = vadd.f32 %v4013, %v4177
    %v4242 = vadd.f32 %v4014, %v4180
    %v4243 = vadd.f32 %v4015, %v4183
    %v4244 = vadd.f32 %v4016, %v4186
    %v4245 = vadd.f32 %v4017, %v4189
    %v4246 = vadd.f32 %v4018, %v4192
    %v4247 = vadd.f32 %v4019, %v4195
    %v4248 = vadd.f32 %v4020, %v4198
    %v4249 = vadd.f32 %v4021, %v4201
    %v4250 = vadd.f32 %v4022, %v4204
    %v4251 = vadd.f32 %v4023, %v4207
    %v4252 = vadd.f32 %v4024, %v4210
    %v4253 = vadd.f32 %v4025, %v4213
    %v4254 = vadd.f32 %v4026, %v4216
    %v4255 = vadd.f32 %v4027, %v4219
    %v4256 = vadd.f32 %v4028, %v4222
    %v4257 = vadd.f32 %v4029, %v4225
    %vm4258 = vcmp.ge.f32.partialorder %v4226, 179.0
    %vm4259 = vcmp.ge.f32.partialorder %v4227, 179.0
    %vm4260 = vcmp.ge.f32.partialorder %v4228, 179.0
    %vm4261 = vcmp.ge.f32.partialorder %v4229, 179.0
    %vm4262 = vcmp.ge.f32.partialorder %v4230, 179.0
    %vm4263 = vcmp.ge.f32.partialorder %v4231, 179.0
    %vm4264 = vcmp.ge.f32.partialorder %v4232, 179.0
    %vm4265 = vcmp.ge.f32.partialorder %v4233, 179.0
    %vm4266 = vcmp.ge.f32.partialorder %v4234, 179.0
    %vm4267 = vcmp.ge.f32.partialorder %v4235, 179.0
    %vm4268 = vcmp.ge.f32.partialorder %v4236, 179.0
    %vm4269 = vcmp.ge.f32.partialorder %v4237, 179.0
    %vm4270 = vcmp.ge.f32.partialorder %v4238, 179.0
    %vm4271 = vcmp.ge.f32.partialorder %v4239, 179.0
    %vm4272 = vcmp.ge.f32.partialorder %v4240, 179.0
    %vm4273 = vcmp.ge.f32.partialorder %v4241, 179.0
    %vm4274 = vcmp.ge.f32.partialorder %v4242, 179.0
    %vm4275 = vcmp.ge.f32.partialorder %v4243, 179.0
    %vm4276 = vcmp.ge.f32.partialorder %v4244, 179.0
    %vm4277 = vcmp.ge.f32.partialorder %v4245, 179.0
    %vm4278 = vcmp.ge.f32.partialorder %v4246, 179.0
    %vm4279 = vcmp.ge.f32.partialorder %v4247, 179.0
    %vm4280 = vcmp.ge.f32.partialorder %v4248, 179.0
    %vm4281 = vcmp.ge.f32.partialorder %v4249, 179.0
    %vm4282 = vcmp.ge.f32.partialorder %v4250, 179.0
    %vm4283 = vcmp.ge.f32.partialorder %v4251, 179.0
    %vm4284 = vcmp.ge.f32.partialorder %v4252, 179.0
    %vm4285 = vcmp.ge.f32.partialorder %v4253, 179.0
    %vm4286 = vcmp.ge.f32.partialorder %v4254, 179.0
    %vm4287 = vcmp.ge.f32.partialorder %v4255, 179.0
    %vm4288 = vcmp.ge.f32.partialorder %v4256, 179.0
    %vm4289 = vcmp.ge.f32.partialorder %v4257, 179.0
    %v4290 = vsel %vm4258, %v417, 3.0
    %v4291 = vsel %vm4259, %v418, 3.0
    %v4292 = vsel %vm4260, %v419, 3.0
    %v4293 = vsel %vm4261, %v420, 3.0
    %v4294 = vsel %vm4262, %v421, 3.0
    %v4295 = vsel %vm4263, %v422, 3.0
    %v4296 = vsel %vm4264, %v423, 3.0
    %v4297 = vsel %vm4265, %v424, 3.0
    %v4298 = vsel %vm4266, %v425, 3.0
    %v4299 = vsel %vm4267, %v426, 3.0
    %v4300 = vsel %vm4268, %v427, 3.0
    %v4301 = vsel %vm4269, %v428, 3.0
    %v4302 = vsel %vm4270, %v429, 3.0
    %v4303 = vsel %vm4271, %v430, 3.0
    %v4304 = vsel %vm4272, %v431, 3.0
    %v4305 = vsel %vm4273, %v432, 3.0
    %v4306 = vsel %vm4274, %v433, 3.0
    %v4307 = vsel %vm4275, %v434, 3.0
    %v4308 = vsel %vm4276, %v435, 3.0
    %v4309 = vsel %vm4277, %v436, 3.0
    %v4310 = vsel %vm4278, %v437, 3.0
    %v4311 = vsel %vm4279, %v438, 3.0
    %v4312 = vsel %vm4280, %v439, 3.0
    %v4313 = vsel %vm4281, %v440, 3.0
    %v4314 = vsel %vm4282, %v441, 3.0
    %v4315 = vsel %vm4283, %v442, 3.0
    %v4316 = vsel %vm4284, %v443, 3.0
    %v4317 = vsel %vm4285, %v444, 3.0
    %v4318 = vsel %vm4286, %v445, 3.0
    %v4319 = vsel %vm4287, %v446, 3.0
    %v4320 = vsel %vm4288, %v447, 3.0
    %v4321 = vsel %vm4289, %v448, 3.0
    %v4322 = vsel %vm292, %v4290, inf
    %v4323 = vsel %vm292, %v4291, inf
    %v4324 = vsel %vm292, %v4292, inf
    %v4325 = vsel %vm292, %v4293, inf
    %v4326 = vsel %vm292, %v4294, inf
    %v4327 = vmin.f32 %v4322, %v4326
    %v4328 = vsel %vm292, %v4295, inf
    %v4329 = vmin.f32 %v4323, %v4328
    %v4330 = vsel %vm292, %v4296, inf
    %v4331 = vmin.f32 %v4324, %v4330
    %v4332 = vsel %vm292, %v4297, inf
    %v4333 = vmin.f32 %v4325, %v4332
    %v4334 = vsel %vm292, %v4298, inf
    %v4335 = vmin.f32 %v4327, %v4334
    %v4336 = vsel %vm292, %v4299, inf
    %v4337 = vmin.f32 %v4329, %v4336
    %v4338 = vsel %vm292, %v4300, inf
    %v4339 = vmin.f32 %v4331, %v4338
    %v4340 = vsel %vm292, %v4301, inf
    %v4341 = vmin.f32 %v4333, %v4340
    %v4342 = vsel %vm292, %v4302, inf
    %v4343 = vmin.f32 %v4335, %v4342
    %v4344 = vsel %vm292, %v4303, inf
    %v4345 = vmin.f32 %v4337, %v4344
    %v4346 = vsel %vm292, %v4304, inf
    %v4347 = vmin.f32 %v4339, %v4346
    %v4348 = vsel %vm292, %v4305, inf
    %v4349 = vmin.f32 %v4341, %v4348
    %v4350 = vsel %vm292, %v4306, inf
    %v4351 = vmin.f32 %v4343, %v4350
    %v4352 = vsel %vm292, %v4307, inf
    %v4353 = vmin.f32 %v4345, %v4352
    %v4354 = vsel %vm292, %v4308, inf
    %v4355 = vmin.f32 %v4347, %v4354
    %v4356 = vsel %vm292, %v4309, inf
    %v4357 = vmin.f32 %v4349, %v4356
    %v4358 = vsel %vm292, %v4310, inf
    %v4359 = vmin.f32 %v4351, %v4358
    %v4360 = vsel %vm292, %v4311, inf
    %v4361 = vmin.f32 %v4353, %v4360
    %v4362 = vsel %vm292, %v4312, inf
    %v4363 = vmin.f32 %v4355, %v4362
    %v4364 = vsel %vm292, %v4313, inf
    %v4365 = vmin.f32 %v4357, %v4364
    %v4366 = vsel %vm292, %v4314, inf
    %v4367 = vmin.f32 %v4359, %v4366
    %v4368 = vsel %vm292, %v4315, inf
    %v4369 = vmin.f32 %v4361, %v4368
    %v4370 = vsel %vm292, %v4316, inf
    %v4371 = vmin.f32 %v4363, %v4370
    %v4372 = vsel %vm292, %v4317, inf
    %v4373 = vmin.f32 %v4365, %v4372
    %v4374 = vsel %vm292, %v4318, inf
    %v4375 = vmin.f32 %v4367, %v4374
    %v4376 = vsel %vm292, %v4319, inf
    %v4377 = vmin.f32 %v4369, %v4376
    %v4378 = vsel %vm292, %v4320, inf
    %v4379 = vmin.f32 %v4371, %v4378
    %v4380 = vsel %vm292, %v4321, inf
    %v4381 = vmin.f32 %v4373, %v4380
    %v4382 = vmin.f32 %v4375, %v4377
    %v4383 = vmin.f32 %v4379, %v4381
    %v4384 = vmin.f32 %v4382, %v4383
    %v4385 = vrot.slane %v4384, 4
    %v4386 = vmin.f32 %v4384, %v4385
    %v4387 = vrot.slane %v4386, 2
    %v4388 = vmin.f32 %v4386, %v4387
    %v4389 = vrot.slane %v4388, 1
    %v4390 = vmin.f32 %v4388, %v4389
    %vm4391 = vcmp.ge.f32.partialorder %v4226, 180.0
    %vm4392 = vcmp.ge.f32.partialorder %v4227, 180.0
    %vm4393 = vcmp.ge.f32.partialorder %v4228, 180.0
    %vm4394 = vcmp.ge.f32.partialorder %v4229, 180.0
    %vm4395 = vcmp.ge.f32.partialorder %v4230, 180.0
    %vm4396 = vcmp.ge.f32.partialorder %v4231, 180.0
    %vm4397 = vcmp.ge.f32.partialorder %v4232, 180.0
    %vm4398 = vcmp.ge.f32.partialorder %v4233, 180.0
    %vm4399 = vcmp.ge.f32.partialorder %v4234, 180.0
    %vm4400 = vcmp.ge.f32.partialorder %v4235, 180.0
    %vm4401 = vcmp.ge.f32.partialorder %v4236, 180.0
    %vm4402 = vcmp.ge.f32.partialorder %v4237, 180.0
    %vm4403 = vcmp.ge.f32.partialorder %v4238, 180.0
    %vm4404 = vcmp.ge.f32.partialorder %v4239, 180.0
    %vm4405 = vcmp.ge.f32.partialorder %v4240, 180.0
    %vm4406 = vcmp.ge.f32.partialorder %v4241, 180.0
    %vm4407 = vcmp.ge.f32.partialorder %v4242, 180.0
    %vm4408 = vcmp.ge.f32.partialorder %v4243, 180.0
    %vm4409 = vcmp.ge.f32.partialorder %v4244, 180.0
    %vm4410 = vcmp.ge.f32.partialorder %v4245, 180.0
    %vm4411 = vcmp.ge.f32.partialorder %v4246, 180.0
    %vm4412 = vcmp.ge.f32.partialorder %v4247, 180.0
    %vm4413 = vcmp.ge.f32.partialorder %v4248, 180.0
    %vm4414 = vcmp.ge.f32.partialorder %v4249, 180.0
    %vm4415 = vcmp.ge.f32.partialorder %v4250, 180.0
    %vm4416 = vcmp.ge.f32.partialorder %v4251, 180.0
    %vm4417 = vcmp.ge.f32.partialorder %v4252, 180.0
    %vm4418 = vcmp.ge.f32.partialorder %v4253, 180.0
    %vm4419 = vcmp.ge.f32.partialorder %v4254, 180.0
    %vm4420 = vcmp.ge.f32.partialorder %v4255, 180.0
    %vm4421 = vcmp.ge.f32.partialorder %v4256, 180.0
    %vm4422 = vcmp.ge.f32.partialorder %v4257, 180.0
    %v4423 = vsel %vm4391, %v417, 3.0
    %v4424 = vsel %vm4392, %v418, 3.0
    %v4425 = vsel %vm4393, %v419, 3.0
    %v4426 = vsel %vm4394, %v420, 3.0
    %v4427 = vsel %vm4395, %v421, 3.0
    %v4428 = vsel %vm4396, %v422, 3.0
    %v4429 = vsel %vm4397, %v423, 3.0
    %v4430 = vsel %vm4398, %v424, 3.0
    %v4431 = vsel %vm4399, %v425, 3.0
    %v4432 = vsel %vm4400, %v426, 3.0
    %v4433 = vsel %vm4401, %v427, 3.0
    %v4434 = vsel %vm4402, %v428, 3.0
    %v4435 = vsel %vm4403, %v429, 3.0
    %v4436 = vsel %vm4404, %v430, 3.0
    %v4437 = vsel %vm4405, %v431, 3.0
    %v4438 = vsel %vm4406, %v432, 3.0
    %v4439 = vsel %vm4407, %v433, 3.0
    %v4440 = vsel %vm4408, %v434, 3.0
    %v4441 = vsel %vm4409, %v435, 3.0
    %v4442 = vsel %vm4410, %v436, 3.0
    %v4443 = vsel %vm4411, %v437, 3.0
    %v4444 = vsel %vm4412, %v438, 3.0
    %v4445 = vsel %vm4413, %v439, 3.0
    %v4446 = vsel %vm4414, %v440, 3.0
    %v4447 = vsel %vm4415, %v441, 3.0
    %v4448 = vsel %vm4416, %v442, 3.0
    %v4449 = vsel %vm4417, %v443, 3.0
    %v4450 = vsel %vm4418, %v444, 3.0
    %v4451 = vsel %vm4419, %v445, 3.0
    %v4452 = vsel %vm4420, %v446, 3.0
    %v4453 = vsel %vm4421, %v447, 3.0
    %v4454 = vsel %vm4422, %v448, 3.0
    %v4455 = vsel %vm292, %v4423, inf
    %v4456 = vsel %vm292, %v4424, inf
    %v4457 = vsel %vm292, %v4425, inf
    %v4458 = vsel %vm292, %v4426, inf
    %v4459 = vsel %vm292, %v4427, inf
    %v4460 = vmin.f32 %v4455, %v4459
    %v4461 = vsel %vm292, %v4428, inf
    %v4462 = vmin.f32 %v4456, %v4461
    %v4463 = vsel %vm292, %v4429, inf
    %v4464 = vmin.f32 %v4457, %v4463
    %v4465 = vsel %vm292, %v4430, inf
    %v4466 = vmin.f32 %v4458, %v4465
    %v4467 = vsel %vm292, %v4431, inf
    %v4468 = vmin.f32 %v4460, %v4467
    %v4469 = vsel %vm292, %v4432, inf
    %v4470 = vmin.f32 %v4462, %v4469
    %v4471 = vsel %vm292, %v4433, inf
    %v4472 = vmin.f32 %v4464, %v4471
    %v4473 = vsel %vm292, %v4434, inf
    %v4474 = vmin.f32 %v4466, %v4473
    %v4475 = vsel %vm292, %v4435, inf
    %v4476 = vmin.f32 %v4468, %v4475
    %v4477 = vsel %vm292, %v4436, inf
    %v4478 = vmin.f32 %v4470, %v4477
    %v4479 = vsel %vm292, %v4437, inf
    %v4480 = vmin.f32 %v4472, %v4479
    %v4481 = vsel %vm292, %v4438, inf
    %v4482 = vmin.f32 %v4474, %v4481
    %v4483 = vsel %vm292, %v4439, inf
    %v4484 = vmin.f32 %v4476, %v4483
    %v4485 = vsel %vm292, %v4440, inf
    %v4486 = vmin.f32 %v4478, %v4485
    %v4487 = vsel %vm292, %v4441, inf
    %v4488 = vmin.f32 %v4480, %v4487
    %v4489 = vsel %vm292, %v4442, inf
    %v4490 = vmin.f32 %v4482, %v4489
    %v4491 = vsel %vm292, %v4443, inf
    %v4492 = vmin.f32 %v4484, %v4491
    %v4493 = vsel %vm292, %v4444, inf
    %v4494 = vmin.f32 %v4486, %v4493
    %v4495 = vsel %vm292, %v4445, inf
    %v4496 = vmin.f32 %v4488, %v4495
    %v4497 = vsel %vm292, %v4446, inf
    %v4498 = vmin.f32 %v4490, %v4497
    %v4499 = vsel %vm292, %v4447, inf
    %v4500 = vmin.f32 %v4492, %v4499
    %v4501 = vsel %vm292, %v4448, inf
    %v4502 = vmin.f32 %v4494, %v4501
    %v4503 = vsel %vm292, %v4449, inf
    %v4504 = vmin.f32 %v4496, %v4503
    %v4505 = vsel %vm292, %v4450, inf
    %v4506 = vmin.f32 %v4498, %v4505
    %v4507 = vsel %vm292, %v4451, inf
    %v4508 = vmin.f32 %v4500, %v4507
    %v4509 = vsel %vm292, %v4452, inf
    %v4510 = vmin.f32 %v4502, %v4509
    %v4511 = vsel %vm292, %v4453, inf
    %v4512 = vmin.f32 %v4504, %v4511
    %v4513 = vsel %vm292, %v4454, inf
    %v4514 = vmin.f32 %v4506, %v4513
    %v4515 = vmin.f32 %v4508, %v4510
    %v4516 = vmin.f32 %v4512, %v4514
    %v4517 = vmin.f32 %v4515, %v4516
    %v4518 = vrot.slane %v4517, 4
    %v4519 = vmin.f32 %v4517, %v4518
    %v4520 = vrot.slane %v4519, 2
    %v4521 = vmin.f32 %v4519, %v4520
    %v4522 = vrot.slane %v4521, 1
    %v4523 = vmin.f32 %v4521, %v4522
    %v4524 = vsub.f32 %v4523, %v4390
    %v4525 = vmul.f32 %v4524, 0.5
    %v4526 = vadd.f32 %v4390, %v4525
    %4528 = vset.pattern.permute.xlu0 0
    %4529 = vperm.xlu0 %4528, %v4526
    %v4530 = vpop.permute.xlu0 %4529
    %vm4532 = vcmp.ge.f32.partialorder %v290, %v4530
    %vm4533 = vcmp.ge.f32.partialorder %v291, %v4530
    %v4534 = vsel %vm4532, 1, 0
    %v4535 = vsel %vm4533, 1, 0
    %v4536 = vcvt.s32.f32 %v4534
    %v4537 = vcvt.s32.f32 %v4535
    %v4538 = vadd.f32 %v4536, 1.0
    %v4539 = vadd.f32 %v4537, 1.0
    %v4540 = vmul.f32 %v290, %v290
    %v4541 = vmul.f32 %v291, %v291
    %v4542 = vmul.f32 %v4540, %v4538
    %v4543 = vmul.f32 %v4541, %v4539
    %v4544 = vsel %vm709, %v4542, 0.0
    %4545 = vadd.xlane.f32.xlu0 %v4544
    %v4546 = vpop.xlane.xlu0 %4545
    %v4547 = vsel %vm709, %v4543, 0.0
    %4548 = vadd.xlane.f32.xlu0 %v4547
    %v4549 = vpop.xlane.xlu0 %4548
    %v4550 = vadd.f32 %v4546, %v4549
    %v4551 = vrot.slane %v4550, 4
    %v4552 = vadd.f32 %v4550, %v4551
    %v4553 = vrot.slane %v4552, 2
    %v4554 = vadd.f32 %v4552, %v4553
    %v4555 = vrot.slane %v4554, 1
    %v4556 = vadd.f32 %v4554, %v4555
    %v4557 = vmul.f32 %v4556, 0.00390625
    %v4558 = vld [vmem:[#allocation8] sm:$0xff]
    %v4559 = vld [vmem:[#allocation8 + $0x8] sm:$0xff]
    %v4560 = vld [vmem:[#allocation8 + $0x10] sm:$0xf]
    %v4561 = vld [vmem:[#allocation8 + $0x14] sm:$0x1]
    %v4562 = vld [vmem:[#allocation8 + $0x18] sm:$0xff]
    %v4563 = vld [vmem:[#allocation8 + $0x20] sm:$0xff]
    %v4564 = vld [vmem:[#allocation8 + $0x28] sm:$0xff]
    %v4565 = vld [vmem:[#allocation8 + $0x30] sm:$0xff]
    %v4566 = vld [vmem:[#allocation8 + $0x38] sm:$0xff]
    %v4567 = vld [vmem:[#allocation8 + $0x40] sm:$0xff]
    %v4568 = vld [vmem:[#allocation8 + $0x48] sm:$0xff]
    %v4569 = vld [vmem:[#allocation8 + $0x50] sm:$0xff]
    %v4570 = vld [vmem:[#allocation8 + $0x58] sm:$0x1]
    %v4571 = vsel %vm176, %v58, 0.0
    %v4572 = vsel %vm176, %v59, 0.0
    %v4573 = vadd.f32 %v4571, %v4572
    %v4574 = vrot.slane %v4573, 4
    %v4575 = vadd.f32 %v4573, %v4574
    %v4576 = vrot.slane %v4575, 2
    %v4577 = vadd.f32 %v4575, %v4576
    %v4578 = vrot.slane %v4577, 1
    %v4579 = vadd.f32 %v4577, %v4578
    %v4580 = vrcp.pop 16.0
    %v4581 = vmul.f32 %v4579, %v4580
    %v4583 = vsel %vm176, %v4581, 0
    %vm4585 = vcmask 1043456
    %v4587 = vsel %vm4585, %v4560, 0
    %4589 = vmatprep.subr.mxu0 0.0
    %4590 = vmatpush1.msra.mxu0 %v4558
    %4591 = vmatprep.subr.mxu0 0.0
    %4592 = vmatpush1.msra.mxu0 %v4559
    %4593 = vmatprep.subr.mxu0 0.0
    %4594 = vmatpush1.msra.mxu0 %v4587
    %4595 = vmatprep.subr.mxu0 0.0
    %4596 = vmatpush1.msra.mxu0 0.0
    %4597 = vmatprep.subr.mxu0 0.0
    %4598 = vmatpush1.msra.mxu0 0.0
    %4599 = vmatprep.subr.mxu0 0.0
    %4600 = vmatpush1.msra.mxu0 0.0
    %4601 = vmatprep.subr.mxu0 0.0
    %4602 = vmatpush1.msra.mxu0 0.0
    %4603 = vmatprep.subr.mxu0 0.0
    %4604 = vmatpush1.msra.mxu0 0.0
    %4605 = vmatprep.subr.mxu0 0.0
    %4606 = vmatpush1.msra.mxu0 0.0
    %4607 = vmatprep.subr.mxu0 0.0
    %4608 = vmatpush1.msra.mxu0 0.0
    %4609 = vmatprep.subr.mxu0 0.0
    %4610 = vmatpush1.msra.mxu0 0.0
    %4611 = vmatprep.subr.mxu0 0.0
    %4612 = vmatpush1.msra.mxu0 0.0
    %4613 = vmatprep.subr.mxu0 0.0
    %4614 = vmatpush1.msra.mxu0 0.0
    %4615 = vmatprep.subr.mxu0 0.0
    %4616 = vmatpush1.msra.mxu0 0.0
    %4617 = vmatprep.subr.mxu0 0.0
    %4618 = vmatpush1.msra.mxu0 0.0
    %4619 = vmatprep.subr.mxu0 0.0
    %4620 = vmatpush1.msra.mxu0 0.0
    %4621 = vmatprep.subr.mxu0 0.0
    %4622 = vmatpush1.msra.mxu0 0.0
    %4623 = vmatprep.subr.mxu0 0.0
    %4624 = vmatpush1.msra.mxu0 0.0
    %4625 = vmatprep.subr.mxu0 0.0
    %4626 = vmatpush1.msra.mxu0 0.0
    %4627 = vmatprep.subr.mxu0 0.0
    %4628 = vmatpush1.msra.mxu0 0.0
    %4629 = vmatprep.subr.mxu0 0.0
    %4630 = vmatpush1.msra.mxu0 0.0
    %4631 = vmatprep.subr.mxu0 0.0
    %4632 = vmatpush1.msra.mxu0 0.0
    %4633 = vmatprep.subr.mxu0 0.0
    %4634 = vmatpush1.msra.mxu0 0.0
    %4635 = vmatprep.subr.mxu0 0.0
    %4636 = vmatpush1.msra.mxu0 0.0
    %4637 = vmatprep.subr.mxu0 0.0
    %4638 = vmatpush1.msra.mxu0 0.0
    %4639 = vmatprep.subr.mxu0 0.0
    %4640 = vmatpush1.msra.mxu0 0.0
    %4641 = vmatprep.subr.mxu0 0.0
    %4642 = vmatpush1.msra.mxu0 0.0
    %4643 = vmatprep.subr.mxu0 0.0
    %4644 = vmatpush1.msra.mxu0 0.0
    %4645 = vmatprep.subr.mxu0 0.0
    %4646 = vmatpush1.msra.mxu0 0.0
    %4647 = vmatprep.subr.mxu0 0.0
    %4648 = vmatpush1.msra.mxu0 0.0
    %4649 = vmatprep.subr.mxu0 0.0
    %4650 = vmatpush1.msra.mxu0 0.0
    %4651 = vmatprep.subr.mxu0 0.0
    %4652 = vmatpush1.msra.mxu0 0.0
    %4653 = vmatprep.mubr.f32.mxu0 0.0
    %4654 = vmatmul.mubr.f32.gmra.mrb[0].mxu0 %v4583
    %v4655 = vpop.f32.mrb[0].mxu0
    %v4656 = vadd.f32 %v4561, %v4655
    %v4657 = vpop.f32.mrb[0].mxu0
    %4658 = vdwg.mxu0
    %v4659 = vmax.f32 %v4656, 0.0
    %vm4660 = vcmask 523264
    %v4662 = vsel %vm4660, %v4659, 0
    %4664 = vmatprep.subr.mxu0 0.0
    %4665 = vmatpush1.msra.mxu0 %v4562
    %4666 = vmatprep.subr.mxu0 0.0
    %4667 = vmatpush1.msra.mxu0 %v4563
    %4668 = vmatprep.subr.mxu0 0.0
    %4669 = vmatpush1.msra.mxu0 %v4564
    %4670 = vmatprep.subr.mxu0 0.0
    %4671 = vmatpush1.msra.mxu0 %v4565
    %4672 = vmatprep.subr.mxu0 0.0
    %4673 = vmatpush1.msra.mxu0 %v4566
    %4674 = vmatprep.subr.mxu0 0.0
    %4675 = vmatpush1.msra.mxu0 %v4567
    %4676 = vmatprep.subr.mxu0 0.0
    %4677 = vmatpush1.msra.mxu0 %v4568
    %4678 = vmatprep.subr.mxu0 0.0
    %4679 = vmatpush1.msra.mxu0 %v4569
    %4680 = vmatprep.subr.mxu0 0.0
    %4681 = vmatpush1.msra.mxu0 0.0
    %4682 = vmatprep.subr.mxu0 0.0
    %4683 = vmatpush1.msra.mxu0 0.0
    %4684 = vmatprep.subr.mxu0 0.0
    %4685 = vmatpush1.msra.mxu0 0.0
    %4686 = vmatprep.subr.mxu0 0.0
    %4687 = vmatpush1.msra.mxu0 0.0
    %4688 = vmatprep.subr.mxu0 0.0
    %4689 = vmatpush1.msra.mxu0 0.0
    %4690 = vmatprep.subr.mxu0 0.0
    %4691 = vmatpush1.msra.mxu0 0.0
    %4692 = vmatprep.subr.mxu0 0.0
    %4693 = vmatpush1.msra.mxu0 0.0
    %4694 = vmatprep.subr.mxu0 0.0
    %4695 = vmatpush1.msra.mxu0 0.0
    %4696 = vmatprep.subr.mxu0 0.0
    %4697 = vmatpush1.msra.mxu0 0.0
    %4698 = vmatprep.subr.mxu0 0.0
    %4699 = vmatpush1.msra.mxu0 0.0
    %4700 = vmatprep.subr.mxu0 0.0
    %4701 = vmatpush1.msra.mxu0 0.0
    %4702 = vmatprep.subr.mxu0 0.0
    %4703 = vmatpush1.msra.mxu0 0.0
    %4704 = vmatprep.subr.mxu0 0.0
    %4705 = vmatpush1.msra.mxu0 0.0
    %4706 = vmatprep.subr.mxu0 0.0
    %4707 = vmatpush1.msra.mxu0 0.0
    %4708 = vmatprep.subr.mxu0 0.0
    %4709 = vmatpush1.msra.mxu0 0.0
    %4710 = vmatprep.subr.mxu0 0.0
    %4711 = vmatpush1.msra.mxu0 0.0
    %4712 = vmatprep.subr.mxu0 0.0
    %4713 = vmatpush1.msra.mxu0 0.0
    %4714 = vmatprep.subr.mxu0 0.0
    %4715 = vmatpush1.msra.mxu0 0.0
    %4716 = vmatprep.subr.mxu0 0.0
    %4717 = vmatpush1.msra.mxu0 0.0
    %4718 = vmatprep.subr.mxu0 0.0
    %4719 = vmatpush1.msra.mxu0 0.0
    %4720 = vmatprep.subr.mxu0 0.0
    %4721 = vmatpush1.msra.mxu0 0.0
    %4722 = vmatprep.subr.mxu0 0.0
    %4723 = vmatpush1.msra.mxu0 0.0
    %4724 = vmatprep.subr.mxu0 0.0
    %4725 = vmatpush1.msra.mxu0 0.0
    %4726 = vmatprep.subr.mxu0 0.0
    %4727 = vmatpush1.msra.mxu0 0.0
    %4728 = vmatprep.mubr.f32.mxu0 0.0
    %4729 = vmatmul.mubr.f32.gmra.mrb[0].mxu0 %v4662
    %v4730 = vpop.f32.mrb[0].mxu0
    %v4731 = vadd.f32 %v4570, %v4730
    %v4732 = vpop.f32.mrb[0].mxu0
    %4733 = vdwg.mxu0
    %v4734 = vlaneseq
    %v4735 = vshrl.u32 %v4734, 7
    %v4736 = vsub.s32 0, %v4735
    %v4737 = vrot.slane %v4731, %v4736
    %v4738 = vsub.f32 %v56, %v4737
    %v4739 = vsub.f32 %v57, %v4737
    %v4740 = vmul.f32 %v4738, %v4738
    %v4741 = vmul.f32 %v4739, %v4739
    %v4742 = vsel %vm62, %v4740, 0.0
    %4743 = vadd.xlane.f32.xlu0 %v4742
    %v4744 = vpop.xlane.xlu0 %4743
    %v4745 = vsel %vm62, %v4741, 0.0
    %4746 = vadd.xlane.f32.xlu0 %v4745
    %v4747 = vpop.xlane.xlu0 %4746
    %v4748 = vrsqrt.pop %v4744
    %v4749 = vmul.f32 %v4744, %v4748
    %vm4750 = vcmp.eq.f32.partialorder %v4744, inf
    %v4751 = vsel %vm4750, %v4744, %v4749
    %vm4752 = vcmp.eq.f32.partialorder %v4744, 0.0
    %v4753 = vand.u32 %v4744, 2147483648
    %v4754 = vsel %vm4752, %v4753, %v4751
    %v4755 = vrsqrt.pop %v4747
    %v4756 = vmul.f32 %v4747, %v4755
    %vm4757 = vcmp.eq.f32.partialorder %v4747, inf
    %v4758 = vsel %vm4757, %v4747, %v4756
    %vm4759 = vcmp.eq.f32.partialorder %v4747, 0.0
    %v4760 = vand.u32 %v4747, 2147483648
    %v4761 = vsel %vm4759, %v4760, %v4758
    %v4762 = vadd.f32 %v4754, %v4761
    %v4763 = vrot.slane %v4762, 4
    %v4764 = vadd.f32 %v4762, %v4763
    %v4765 = vrot.slane %v4764, 2
    %v4766 = vadd.f32 %v4764, %v4765
    %v4767 = vrot.slane %v4766, 1
    %v4768 = vadd.f32 %v4766, %v4767
    %v4769 = vmul.f32 %v4768, 0.0625
    %v4770 = vsel %vm62, %v56, 0.0
    %v4771 = vsel %vm62, %v57, 0.0
    %v4772 = vadd.f32 %v4770, %v4771
    %v4773 = vrot.slane %v4772, 4
    %v4774 = vadd.f32 %v4772, %v4773
    %v4775 = vrot.slane %v4774, 2
    %v4776 = vadd.f32 %v4774, %v4775
    %v4777 = vrot.slane %v4776, 1
    %v4778 = vadd.f32 %v4776, %v4777
    %v4779 = vmul.f32 %v4778, %v4580
    %v4780 = vsub.f32 %v56, %v4779
    %v4781 = vsub.f32 %v57, %v4779
    %v4782 = vmul.f32 %v4780, %v4780
    %v4783 = vmul.f32 %v4781, %v4781
    %v4784 = vsel %vm62, %v4782, 0.0
    %v4785 = vsel %vm62, %v4783, 0.0
    %v4786 = vadd.f32 %v4784, %v4785
    %v4787 = vrot.slane %v4786, 4
    %v4788 = vadd.f32 %v4786, %v4787
    %v4789 = vrot.slane %v4788, 2
    %v4790 = vadd.f32 %v4788, %v4789
    %v4791 = vrot.slane %v4790, 1
    %v4792 = vadd.f32 %v4790, %v4791
    %v4793 = vmul.f32 %v4792, 0.06666667
    %v4794 = vadd.f32 %v4793, 1e-08
    %v4795 = vlog2.pop %v4794
    %v4796 = vmul.f32 %v4795, 0.6931472
    %v4797 = vsel %vm62, %v4796, 0.0
    %4798 = vadd.xlane.f32.xlu0 %v4797
    %v4799 = vpop.xlane.xlu0 %4798
    %v4800 = vrcp.pop 32.0
    %v4801 = vmul.f32 %v4799, %v4800
    %v4802 = vsub.f32 0.0, %v4801
    %v4803 = vmul.f32 %v4769, 0.99
    %v4804 = vmul.f32 %v4557, 0.56
    %v4805 = vadd.f32 %v4803, %v4804
    %v4806 = vmul.f32 %v4802, 0.1
    %v4807 = vadd.f32 %v4805, %v4806
    %4808 = vst [vmem:[#allocation9] sm:$0x1] %v4807
    // Predicated region
    $region26: #{alignment_loss.1} parent=1 // pred_check
      _
    $region27: #{alignment_loss.1} parent=1 // pred_check_branch
      %4810 = sbr.rel (0) target = $region29
    $region28: #{alignment_loss.1} parent=1 // pred_region
      %s4812 = ssub.s32 16, 16
      %4813 = vsyncadd [#allocation5], %s4812
      %s4815 = sshll.u32 [#allocation9], 4
      %s4816 = int_to_ptr.vmem [resolvable:$true] %s4815
      %4818 = dma.vmem_to_hbm [thread:$0]  %s4816, 16, %s3, [#allocation5]
    $region29: #{alignment_loss.1} parent=1 // pred_fallthru
      _
    // Predicated region
    $region30: #{alignment_loss.1} parent=1 // pred_check
      _
    $region31: #{alignment_loss.1} parent=1 // pred_check_branch
      %4820 = sbr.rel (0) target = $region33
    $region32: #{alignment_loss.1} parent=1 // pred_region
      %4821 = dma.done [#allocation5], 16
    $region33: #{alignment_loss.1} parent=1 // pred_fallthru
      _
    %4822 = vsyncpa [#allocation4], 1
    %4823 = vsyncpa [#allocation7], 1
    %4824 = vsyncpa [#allocation5], 1

</llo_original>
